<compile_context>
chip_gen: v7x
topology: tpu7x:2x2x1
jax: 0.10.0
libtpu: 0.0.40
codegen_flags: <defaults>
</compile_context>

<pallas_src>
import functools
import math

import jax
import jax.numpy as jnp
import numpy as np
from jax.experimental import pallas as pl
from jax.experimental.pallas import tpu as pltpu

LN_EPS = 6.1e-05


# ----------------------------------------------------------------------------
# Single fused kernel: LN + QKV + pos proj + relative attention + W_out.
# ----------------------------------------------------------------------------
def _rel_mha_kernel(B, T, H, DH, scale,
                    x_ref, pos_ref, g_ref, be_ref,
                    wqkv_ref, bqkv_ref, wpos_ref,
                    ubias_ref, vbias_ref, wo_ref, bo_ref,
                    o_ref,
                    qkv_s, pp_s, bdext_s, ctx_s):
    D = H * DH

    # ---- LayerNorm ---------------------------------------------------------
    x = x_ref[...]                                            # (B*T, D)
    mean = jnp.mean(x, axis=-1, keepdims=True)
    var = jnp.mean(jnp.square(x - mean), axis=-1, keepdims=True)
    xn = (x - mean) * jax.lax.rsqrt(var + LN_EPS)
    xn = xn * g_ref[...] + be_ref[...]

    # ---- fused Q/K/V projection (one MXU pass) ------------------------------
    qkv_s[...] = jnp.dot(xn, wqkv_ref[...],
                         preferred_element_type=jnp.float32) + bqkv_ref[...]

    # ---- positional projection (W_pos has no bias; same for every batch) ----
    pp_s[...] = jnp.dot(pos_ref[...], wpos_ref[...],
                        preferred_element_type=jnp.float32)   # (T, D)

    # iota helpers (built once, reused by every head)
    row_ids = jax.lax.broadcasted_iota(jnp.int32, (T, T), 0)
    col_ids = jax.lax.broadcasted_iota(jnp.int32, (T, T), 1)
    # U[i, i+1] = 1  ->  (U @ bd)[i, :] = bd[i+1, :]  (last row = 0)
    shift_up = (col_ids == row_ids + 1).astype(jnp.float32)

    # zero column of the padded rel-shift buffer (written once)
    bdext_s[:, pl.ds(T, 1)] = jnp.zeros((T, 1), jnp.float32)

    for h in range(H):
        c0 = h * DH
        ub_h = ubias_ref[:, pl.ds(c0, DH)]                    # (1, DH)
        vb_h = vbias_ref[:, pl.ds(c0, DH)]                    # (1, DH)
        p_h = pp_s[:, pl.ds(c0, DH)]                          # (T, DH)
        for b in range(B):
            r0 = b * T
            q_bh = qkv_s[pl.ds(r0, T), pl.ds(c0, DH)]         # (T, DH)
            k_bh = qkv_s[pl.ds(r0, T), pl.ds(D + c0, DH)]     # (T, DH)
            v_bh = qkv_s[pl.ds(r0, T), pl.ds(2 * D + c0, DH)]  # (T, DH)

            # content score  AC = (q + u) @ k^T        (contract d_head)
            ac = jax.lax.dot_general(q_bh + ub_h, k_bh,
                                     (((1,), (1,)), ((), ())),
                                     preferred_element_type=jnp.float32)
            # positional score  BD = (q + v) @ p^T
            bd = jax.lax.dot_general(q_bh + vb_h, p_h,
                                     (((1,), (1,)), ((), ())),
                                     preferred_element_type=jnp.float32)

            # ---- rel_shift(bd): skew via padded scratch, no reshapes --------
            # padded layout: [ bd | 0 | bd shifted up one row ]  -> (T, 2T+1)
            # shifted[i, j] = padded[i, j + (T-1-i)]
            bd_up = jnp.dot(shift_up, bd,
                            preferred_element_type=jnp.float32)
            bdext_s[:, pl.ds(0, T)] = bd
            bdext_s[:, pl.ds(T + 1, T)] = bd_up
            shifted = jnp.zeros((T, T), jnp.float32)
            for off in range(T):
                # row i = T-1-off reads columns [off, off+T)
                sl = bdext_s[:, pl.ds(off, T)]
                shifted = shifted + jnp.where(row_ids == (T - 1 - off), sl, 0.0)

            # ---- softmax((AC + rel_shift(BD)) / sqrt(d_model)) ---------------
            # TODO(synk): optional boolean `mask` (masked_fill_ with -1e30)
            # is not implemented; only the mask=None path is reproduced.
            s = (ac + shifted) * scale
            m = jnp.max(s, axis=-1, keepdims=True)
            e = jnp.exp(s - m)
            denom = jnp.sum(e, axis=-1, keepdims=True)
            p = e * pl.reciprocal(denom, approx=True)

            # ---- attn @ v, written directly in the final (B*T, D) layout ----
            ctx_s[pl.ds(r0, T), pl.ds(c0, DH)] = jnp.dot(
                p, v_bh, preferred_element_type=jnp.float32)

    # ---- output projection ---------------------------------------------------
    o_ref[...] = jnp.dot(ctx_s[...], wo_ref[...],
                         preferred_element_type=jnp.float32) + bo_ref[...]


def relative_mha_pallas(x, pos_emb, params, num_heads):
    """Pallas forward matching RelativeMultiHeadAttention.forward(x, mask=None)."""
    B, T, D = x.shape
    H = num_heads
    assert D % H == 0
    DH = D // H
    BT = B * T

    g = params["ln_gamma"].reshape(1, D)
    be = params["ln_beta"].reshape(1, D)
    # torch nn.Linear computes x @ W.T + b  ->  pre-transpose weights (glue).
    w_qkv = jnp.concatenate(
        [params["wq"].T, params["wk"].T, params["wv"].T], axis=1)      # (D, 3D)
    b_qkv = jnp.concatenate(
        [params["bq"], params["bk"], params["bv"]]).reshape(1, 3 * D)
    w_pos = params["wpos"].T
    w_out = params["wo"].T
    b_out = params["bo"].reshape(1, D)
    u_row = params["u"].reshape(1, D)     # (H, DH) -> (1, H*DH), matches q layout
    v_row = params["v"].reshape(1, D)

    x2 = x.reshape(BT, D)
    scale = 1.0 / math.sqrt(D)            # reference divides by sqrt(d_model)

    kernel = functools.partial(_rel_mha_kernel, B, T, H, DH, scale)

    def fs(shape):
        return pl.BlockSpec(shape, lambda i: (0, 0))

    y2 = pl.pallas_call(
        kernel,
        grid=(1,),
        in_specs=[fs((BT, D)), fs((T, D)), fs((1, D)), fs((1, D)),
                  fs((D, 3 * D)), fs((1, 3 * D)), fs((D, D)),
                  fs((1, D)), fs((1, D)), fs((D, D)), fs((1, D))],
        out_specs=fs((BT, D)),
        out_shape=jax.ShapeDtypeStruct((BT, D), jnp.float32),
        scratch_shapes=[
            pltpu.VMEM((BT, 3 * D), jnp.float32),   # q|k|v projections
            pltpu.VMEM((T, D), jnp.float32),        # W_pos(pos_emb)
            pltpu.VMEM((T, 2 * T + 1), jnp.float32),  # rel_shift padded buffer
            pltpu.VMEM((BT, D), jnp.float32),       # attention context slab
        ],
    )(x2, pos_emb, g, be, w_qkv, b_qkv, w_pos, u_row, v_row, w_out, b_out)

    # TODO(synk): nn.Dropout(p=0.1) in training mode (torch RNG) has no clean
    # Pallas equivalent here; eval-mode dropout == identity is used.
    return y2.reshape(B, T, D)


# ----------------------------------------------------------------------------
# Positional table (wrapper-side glue).
# TODO(synk): RelPositionalEncoder source is not part of the spec; a standard
# interleaved sin/cos sinusoidal table is used.  It is passed into the kernel
# as an input, so the attention math is independent of its exact form.
# ----------------------------------------------------------------------------
def rel_positional_encoding(seq_len, d_model):
    pos = jnp.arange(seq_len, dtype=jnp.float32)[:, None]
    inv_freq = 1.0 / (10000.0 ** (jnp.arange(0, d_model, 2,
                                              dtype=jnp.float32) / d_model))
    ang = pos * inv_freq[None, :]
    enc = jnp.zeros((seq_len, d_model), jnp.float32)
    enc = enc.at[:, 0::2].set(jnp.sin(ang))
    enc = enc.at[:, 1::2].set(jnp.cos(ang))
    return enc


# ----------------------------------------------------------------------------
# Pure-JAX line-by-line reference (mirrors the torch forward) for validation.
# ----------------------------------------------------------------------------
def _rel_shift_ref(emb):
    B, H, T1, T2 = emb.shape
    zeros = jnp.zeros((B, H, T1, 1), emb.dtype)
    padded = jnp.concatenate([zeros, emb], axis=-1)        # (B,H,T1,T2+1)
    padded = padded.reshape(B, H, T2 + 1, T1)
    return padded[:, :, 1:].reshape(B, H, T1, T2)          # view_as(emb)


def ref_forward(x, pos_emb, params, num_heads):
    B, T, D = x.shape
    H = num_heads
    DH = D // H
    mean = jnp.mean(x, axis=-1, keepdims=True)
    var = jnp.mean(jnp.square(x - mean), axis=-1, keepdims=True)
    xn = (x - mean) / jnp.sqrt(var + LN_EPS) * params["ln_gamma"] + params["ln_beta"]
    q = xn @ params["wq"].T + params["bq"]
    k = xn @ params["wk"].T + params["bk"]
    v = xn @ params["wv"].T + params["bv"]
    p = jnp.broadcast_to(pos_emb, (B, T, D)) @ params["wpos"].T
    q = q.reshape(B, T, H, DH)
    k = jnp.transpose(k.reshape(B, T, H, DH), (0, 2, 3, 1))   # (B,H,DH,T)
    v = jnp.transpose(v.reshape(B, T, H, DH), (0, 2, 3, 1))
    p = jnp.transpose(p.reshape(B, T, H, DH), (0, 2, 3, 1))
    ac = jnp.matmul(jnp.swapaxes(q + params["u"], 1, 2), k)   # (B,H,T,T)
    bd = jnp.matmul(jnp.swapaxes(q + params["v"], 1, 2), p)   # (B,H,T,T)
    bd = _rel_shift_ref(bd)
    attn = (ac + bd) / math.sqrt(D)
    attn = jax.nn.softmax(attn, axis=-1)
    out = jnp.matmul(attn, jnp.swapaxes(v, 2, 3))             # (B,H,T,DH)
    out = jnp.swapaxes(out, 1, 2).reshape(B, T, D)
    return out @ params["wo"].T + params["bo"]


if __name__ == "__main__":
    num_heads = 4
    d_model = 32          # small but consistent: d_model % num_heads == 0
    B, T = 2, 8
    H, DH = num_heads, d_model // num_heads

    key = jax.random.PRNGKey(0)
    ks = jax.random.split(key, 16)
    params = dict(
        # torch nn.Linear layout: weight (out_features, in_features)
        wq=0.1 * jax.random.normal(ks[0], (d_model, d_model), jnp.float32),
        bq=0.1 * jax.random.normal(ks[1], (d_model,), jnp.float32),
        wk=0.1 * jax.random.normal(ks[2], (d_model, d_model), jnp.float32),
        bk=0.1 * jax.random.normal(ks[3], (d_model,), jnp.float32),
        wv=0.1 * jax.random.normal(ks[4], (d_model, d_model), jnp.float32),
        bv=0.1 * jax.random.normal(ks[5], (d_model,), jnp.float32),
        wpos=0.1 * jax.random.normal(ks[6], (d_model, d_model), jnp.float32),
        wo=0.1 * jax.random.normal(ks[7], (d_model, d_model), jnp.float32),
        bo=0.1 * jax.random.normal(ks[8], (d_model,), jnp.float32),
        u=0.1 * jax.random.normal(ks[9], (H, DH), jnp.float32),
        v=0.1 * jax.random.normal(ks[10], (H, DH), jnp.float32),
        ln_gamma=1.0 + 0.1 * jax.random.normal(ks[11], (d_model,), jnp.float32),
        ln_beta=0.1 * jax.random.normal(ks[12], (d_model,), jnp.float32),
    )
    x = jax.random.normal(ks[13], (B, T, d_model), jnp.float32)
    pos_emb = rel_positional_encoding(T, d_model)

    y = relative_mha_pallas(x, pos_emb, params, num_heads)
    y = jax.block_until_ready(y)

    with jax.default_matmul_precision("highest"):
        y_ref = ref_forward(x, pos_emb, params, num_heads)
    y_ref = jax.block_until_ready(y_ref)

    assert y.shape == y_ref.shape, (y.shape, y_ref.shape)
    np.testing.assert_allclose(np.asarray(y), np.asarray(y_ref),
                               rtol=3e-2, atol=3e-2)
    print("KERNEL_OK")
</pallas_src>

<mosaic_0001>
module attributes {stable_mosaic.version = 11 : i64} {
  func.func @_rel_mha_kernel(%arg0: i32, %arg1: memref<16x32xf32, #tpu.memory_space<vmem>>, %arg2: memref<8x32xf32, #tpu.memory_space<vmem>>, %arg3: memref<1x32xf32, #tpu.memory_space<vmem>>, %arg4: memref<1x32xf32, #tpu.memory_space<vmem>>, %arg5: memref<32x96xf32, #tpu.memory_space<vmem>>, %arg6: memref<1x96xf32, #tpu.memory_space<vmem>>, %arg7: memref<32x32xf32, #tpu.memory_space<vmem>>, %arg8: memref<1x32xf32, #tpu.memory_space<vmem>>, %arg9: memref<1x32xf32, #tpu.memory_space<vmem>>, %arg10: memref<32x32xf32, #tpu.memory_space<vmem>>, %arg11: memref<1x32xf32, #tpu.memory_space<vmem>>, %arg12: memref<16x32xf32, #tpu.memory_space<vmem>>, %arg13: memref<16x96xf32, #tpu.memory_space<vmem>>, %arg14: memref<8x32xf32, #tpu.memory_space<vmem>>, %arg15: memref<8x17xf32, #tpu.memory_space<vmem>>, %arg16: memref<16x32xf32, #tpu.memory_space<vmem>>) attributes {dimension_semantics = [#tpu.dimension_semantics<arbitrary>], iteration_bounds = array<i64: 1>, scalar_prefetch = 0 : i64, scratch_operands = 4 : i64, tpu.core_type = #tpu.core_type<tc>, window_params = [{pipeline_mode = #tpu.pipeline_mode<synchronous>, transform_indices = @transform_0, window_bounds = array<i64: 16, 32>}, {pipeline_mode = #tpu.pipeline_mode<synchronous>, transform_indices = @transform_1, window_bounds = array<i64: 8, 32>}, {pipeline_mode = #tpu.pipeline_mode<synchronous>, transform_indices = @transform_2, window_bounds = array<i64: 1, 32>}, {pipeline_mode = #tpu.pipeline_mode<synchronous>, transform_indices = @transform_3, window_bounds = array<i64: 1, 32>}, {pipeline_mode = #tpu.pipeline_mode<synchronous>, transform_indices = @transform_4, window_bounds = array<i64: 32, 96>}, {pipeline_mode = #tpu.pipeline_mode<synchronous>, transform_indices = @transform_5, window_bounds = array<i64: 1, 96>}, {pipeline_mode = #tpu.pipeline_mode<synchronous>, transform_indices = @transform_6, window_bounds = array<i64: 32, 32>}, {pipeline_mode = #tpu.pipeline_mode<synchronous>, transform_indices = @transform_7, window_bounds = array<i64: 1, 32>}, {pipeline_mode = #tpu.pipeline_mode<synchronous>, transform_indices = @transform_8, window_bounds = array<i64: 1, 32>}, {pipeline_mode = #tpu.pipeline_mode<synchronous>, transform_indices = @transform_9, window_bounds = array<i64: 32, 32>}, {pipeline_mode = #tpu.pipeline_mode<synchronous>, transform_indices = @transform_10, window_bounds = array<i64: 1, 32>}, {pipeline_mode = #tpu.pipeline_mode<synchronous>, transform_indices = @transform_11, window_bounds = array<i64: 16, 32>}]} {
    %c0 = arith.constant 0 : index
    %c0_0 = arith.constant 0 : index
    %0 = vector.load %arg1[%c0, %c0_0] : memref<16x32xf32, #tpu.memory_space<vmem>>, vector<16x32xf32>
    %cst = arith.constant dense<0.000000e+00> : vector<16xf32>
    %1 = vector.multi_reduction <add>, %0, %cst [1] : vector<16x32xf32> to vector<16xf32>
    %2 = vector.shape_cast %1 : vector<16xf32> to vector<16x1xf32>
    %cst_1 = arith.constant 3.200000e+01 : f32
    %3 = vector.broadcast %cst_1 : f32 to vector<16x1xf32>
    %4 = arith.divf %2, %3 : vector<16x1xf32>
    %5 = vector.broadcast %4 : vector<16x1xf32> to vector<16x32xf32>
    %6 = arith.subf %0, %5 : vector<16x32xf32>
    %7 = arith.mulf %6, %6 : vector<16x32xf32>
    %cst_2 = arith.constant dense<0.000000e+00> : vector<16xf32>
    %8 = vector.multi_reduction <add>, %7, %cst_2 [1] : vector<16x32xf32> to vector<16xf32>
    %9 = vector.shape_cast %8 : vector<16xf32> to vector<16x1xf32>
    %cst_3 = arith.constant 3.200000e+01 : f32
    %10 = vector.broadcast %cst_3 : f32 to vector<16x1xf32>
    %11 = arith.divf %9, %10 : vector<16x1xf32>
    %12 = vector.broadcast %4 : vector<16x1xf32> to vector<16x32xf32>
    %13 = arith.subf %0, %12 : vector<16x32xf32>
    %cst_4 = arith.constant 6.100000e-05 : f32
    %14 = vector.broadcast %cst_4 : f32 to vector<16x1xf32>
    %15 = arith.addf %11, %14 : vector<16x1xf32>
    %16 = math.rsqrt %15 : vector<16x1xf32>
    %17 = vector.broadcast %16 : vector<16x1xf32> to vector<16x32xf32>
    %18 = arith.mulf %13, %17 : vector<16x32xf32>
    %c0_5 = arith.constant 0 : index
    %c0_6 = arith.constant 0 : index
    %19 = vector.load %arg3[%c0_5, %c0_6] : memref<1x32xf32, #tpu.memory_space<vmem>>, vector<1x32xf32>
    %20 = vector.broadcast %19 : vector<1x32xf32> to vector<16x32xf32>
    %21 = arith.mulf %18, %20 : vector<16x32xf32>
    %c0_7 = arith.constant 0 : index
    %c0_8 = arith.constant 0 : index
    %22 = vector.load %arg4[%c0_7, %c0_8] : memref<1x32xf32, #tpu.memory_space<vmem>>, vector<1x32xf32>
    %23 = vector.broadcast %22 : vector<1x32xf32> to vector<16x32xf32>
    %24 = arith.addf %21, %23 : vector<16x32xf32>
    %c0_9 = arith.constant 0 : index
    %c0_10 = arith.constant 0 : index
    %25 = vector.load %arg5[%c0_9, %c0_10] : memref<32x96xf32, #tpu.memory_space<vmem>>, vector<32x96xf32>
    %cst_11 = arith.constant dense<0.000000e+00> : vector<16x96xf32>
    %26 = tpu.matmul %24, %25, %cst_11 {dimension_numbers = #tpu.dot_dimension_numbers<[1], [0], [0], [1], [0, 0, 1, 1], [], []>} : vector<16x32xf32>, vector<32x96xf32>, vector<16x96xf32> -> vector<16x96xf32>
    %c0_12 = arith.constant 0 : index
    %c0_13 = arith.constant 0 : index
    %27 = vector.load %arg6[%c0_12, %c0_13] : memref<1x96xf32, #tpu.memory_space<vmem>>, vector<1x96xf32>
    %28 = vector.broadcast %27 : vector<1x96xf32> to vector<16x96xf32>
    %29 = arith.addf %26, %28 : vector<16x96xf32>
    %c0_14 = arith.constant 0 : index
    %c0_15 = arith.constant 0 : index
    %30 = vector.load %arg13[%c0_14, %c0_15] : memref<16x96xf32, #tpu.memory_space<vmem>>, vector<16x96xf32>
    tpu.vector_store %arg13[%c0_14, %c0_15], %29 {strides = array<i32>} : memref<16x96xf32, #tpu.memory_space<vmem>>, vector<16x96xf32>,
    %c0_16 = arith.constant 0 : index
    %c0_17 = arith.constant 0 : index
    %31 = vector.load %arg2[%c0_16, %c0_17] : memref<8x32xf32, #tpu.memory_space<vmem>>, vector<8x32xf32>
    %c0_18 = arith.constant 0 : index
    %c0_19 = arith.constant 0 : index
    %32 = vector.load %arg7[%c0_18, %c0_19] : memref<32x32xf32, #tpu.memory_space<vmem>>, vector<32x32xf32>
    %cst_20 = arith.constant dense<0.000000e+00> : vector<8x32xf32>
    %33 = tpu.matmul %31, %32, %cst_20 {dimension_numbers = #tpu.dot_dimension_numbers<[1], [0], [0], [1], [0, 0, 1, 1], [], []>} : vector<8x32xf32>, vector<32x32xf32>, vector<8x32xf32> -> vector<8x32xf32>
    %c0_21 = arith.constant 0 : index
    %c0_22 = arith.constant 0 : index
    %34 = vector.load %arg14[%c0_21, %c0_22] : memref<8x32xf32, #tpu.memory_space<vmem>>, vector<8x32xf32>
    tpu.vector_store %arg14[%c0_21, %c0_22], %33 {strides = array<i32>} : memref<8x32xf32, #tpu.memory_space<vmem>>, vector<8x32xf32>,
    %35 = tpu.iota {dimensions = array<i32: 0>} : vector<8x8xi32>
    %36 = tpu.iota {dimensions = array<i32: 1>} : vector<8x8xi32>
    %c1_i32 = arith.constant 1 : i32
    %37 = vector.broadcast %c1_i32 : i32 to vector<8x8xi32>
    %38 = arith.addi %35, %37 : vector<8x8xi32>
    %39 = arith.cmpi eq, %36, %38 : vector<8x8xi32>
    %40 = arith.extui %39 : vector<8x8xi1> to vector<8x8xi32>
    %41 = arith.sitofp %40 : vector<8x8xi32> to vector<8x8xf32>
    %cst_23 = arith.constant 0.000000e+00 : f32
    %42 = vector.broadcast %cst_23 : f32 to vector<8x1xf32>
    %c0_24 = arith.constant 0 : index
    %c8 = arith.constant 8 : index
    %43 = vector.load %arg15[%c0_24, %c8] : memref<8x17xf32, #tpu.memory_space<vmem>>, vector<8x1xf32>
    tpu.vector_store %arg15[%c0_24, %c8], %42 {strides = array<i32>} : memref<8x17xf32, #tpu.memory_space<vmem>>, vector<8x1xf32>,
    %c0_25 = arith.constant 0 : index
    %c0_26 = arith.constant 0 : index
    %44 = vector.load %arg8[%c0_25, %c0_26] : memref<1x32xf32, #tpu.memory_space<vmem>>, vector<1x8xf32>
    %c0_27 = arith.constant 0 : index
    %c0_28 = arith.constant 0 : index
    %45 = vector.load %arg9[%c0_27, %c0_28] : memref<1x32xf32, #tpu.memory_space<vmem>>, vector<1x8xf32>
    %c0_29 = arith.constant 0 : index
    %c0_30 = arith.constant 0 : index
    %46 = vector.load %arg14[%c0_29, %c0_30] : memref<8x32xf32, #tpu.memory_space<vmem>>, vector<8x8xf32>
    %c0_31 = arith.constant 0 : index
    %c0_32 = arith.constant 0 : index
    %47 = vector.load %arg13[%c0_31, %c0_32] : memref<16x96xf32, #tpu.memory_space<vmem>>, vector<8x8xf32>
    %c0_33 = arith.constant 0 : index
    %c32 = arith.constant 32 : index
    %48 = vector.load %arg13[%c0_33, %c32] : memref<16x96xf32, #tpu.memory_space<vmem>>, vector<8x8xf32>
    %c0_34 = arith.constant 0 : index
    %c64 = arith.constant 64 : index
    %49 = vector.load %arg13[%c0_34, %c64] : memref<16x96xf32, #tpu.memory_space<vmem>>, vector<8x8xf32>
    %50 = vector.broadcast %44 : vector<1x8xf32> to vector<8x8xf32>
    %51 = arith.addf %47, %50 : vector<8x8xf32>
    %cst_35 = arith.constant dense<0.000000e+00> : vector<8x8xf32>
    %52 = tpu.matmul %51, %48, %cst_35 {dimension_numbers = #tpu.dot_dimension_numbers<[1], [1], [0], [0], [0, 0, 1, 0], [], []>} : vector<8x8xf32>, vector<8x8xf32>, vector<8x8xf32> -> vector<8x8xf32>
    %53 = vector.broadcast %45 : vector<1x8xf32> to vector<8x8xf32>
    %54 = arith.addf %47, %53 : vector<8x8xf32>
    %cst_36 = arith.constant dense<0.000000e+00> : vector<8x8xf32>
    %55 = tpu.matmul %54, %46, %cst_36 {dimension_numbers = #tpu.dot_dimension_numbers<[1], [1], [0], [0], [0, 0, 1, 0], [], []>} : vector<8x8xf32>, vector<8x8xf32>, vector<8x8xf32> -> vector<8x8xf32>
    %cst_37 = arith.constant dense<0.000000e+00> : vector<8x8xf32>
    %56 = tpu.matmul %41, %55, %cst_37 {dimension_numbers = #tpu.dot_dimension_numbers<[1], [0], [0], [1], [0, 0, 1, 1], [], []>} : vector<8x8xf32>, vector<8x8xf32>, vector<8x8xf32> -> vector<8x8xf32>
    %c0_38 = arith.constant 0 : index
    %c0_39 = arith.constant 0 : index
    %57 = vector.load %arg15[%c0_38, %c0_39] : memref<8x17xf32, #tpu.memory_space<vmem>>, vector<8x8xf32>
    tpu.vector_store %arg15[%c0_38, %c0_39], %55 {strides = array<i32>} : memref<8x17xf32, #tpu.memory_space<vmem>>, vector<8x8xf32>,
    %c0_40 = arith.constant 0 : index
    %c9 = arith.constant 9 : index
    %58 = vector.load %arg15[%c0_40, %c9] : memref<8x17xf32, #tpu.memory_space<vmem>>, vector<8x8xf32>
    tpu.vector_store %arg15[%c0_40, %c9], %56 {strides = array<i32>} : memref<8x17xf32, #tpu.memory_space<vmem>>, vector<8x8xf32>,
    %cst_41 = arith.constant 0.000000e+00 : f32
    %59 = vector.broadcast %cst_41 : f32 to vector<8x8xf32>
    %c0_42 = arith.constant 0 : index
    %c0_43 = arith.constant 0 : index
    %60 = vector.load %arg15[%c0_42, %c0_43] : memref<8x17xf32, #tpu.memory_space<vmem>>, vector<8x8xf32>
    %c7_i32 = arith.constant 7 : i32
    %61 = vector.broadcast %c7_i32 : i32 to vector<8x8xi32>
    %62 = arith.cmpi eq, %35, %61 : vector<8x8xi32>
    %cst_44 = arith.constant 0.000000e+00 : f32
    %63 = vector.broadcast %cst_44 : f32 to vector<8x8xf32>
    %64 = arith.select %62, %60, %63 : vector<8x8xi1>, vector<8x8xf32>
    %65 = arith.addf %59, %64 : vector<8x8xf32>
    %c0_45 = arith.constant 0 : index
    %c1 = arith.constant 1 : index
    %66 = vector.load %arg15[%c0_45, %c1] : memref<8x17xf32, #tpu.memory_space<vmem>>, vector<8x8xf32>
    %c6_i32 = arith.constant 6 : i32
    %67 = vector.broadcast %c6_i32 : i32 to vector<8x8xi32>
    %68 = arith.cmpi eq, %35, %67 : vector<8x8xi32>
    %cst_46 = arith.constant 0.000000e+00 : f32
    %69 = vector.broadcast %cst_46 : f32 to vector<8x8xf32>
    %70 = arith.select %68, %66, %69 : vector<8x8xi1>, vector<8x8xf32>
    %71 = arith.addf %65, %70 : vector<8x8xf32>
    %c0_47 = arith.constant 0 : index
    %c2 = arith.constant 2 : index
    %72 = vector.load %arg15[%c0_47, %c2] : memref<8x17xf32, #tpu.memory_space<vmem>>, vector<8x8xf32>
    %c5_i32 = arith.constant 5 : i32
    %73 = vector.broadcast %c5_i32 : i32 to vector<8x8xi32>
    %74 = arith.cmpi eq, %35, %73 : vector<8x8xi32>
    %cst_48 = arith.constant 0.000000e+00 : f32
    %75 = vector.broadcast %cst_48 : f32 to vector<8x8xf32>
    %76 = arith.select %74, %72, %75 : vector<8x8xi1>, vector<8x8xf32>
    %77 = arith.addf %71, %76 : vector<8x8xf32>
    %c0_49 = arith.constant 0 : index
    %c3 = arith.constant 3 : index
    %78 = vector.load %arg15[%c0_49, %c3] : memref<8x17xf32, #tpu.memory_space<vmem>>, vector<8x8xf32>
    %c4_i32 = arith.constant 4 : i32
    %79 = vector.broadcast %c4_i32 : i32 to vector<8x8xi32>
    %80 = arith.cmpi eq, %35, %79 : vector<8x8xi32>
    %cst_50 = arith.constant 0.000000e+00 : f32
    %81 = vector.broadcast %cst_50 : f32 to vector<8x8xf32>
    %82 = arith.select %80, %78, %81 : vector<8x8xi1>, vector<8x8xf32>
    %83 = arith.addf %77, %82 : vector<8x8xf32>
    %c0_51 = arith.constant 0 : index
    %c4 = arith.constant 4 : index
    %84 = vector.load %arg15[%c0_51, %c4] : memref<8x17xf32, #tpu.memory_space<vmem>>, vector<8x8xf32>
    %c3_i32 = arith.constant 3 : i32
    %85 = vector.broadcast %c3_i32 : i32 to vector<8x8xi32>
    %86 = arith.cmpi eq, %35, %85 : vector<8x8xi32>
    %cst_52 = arith.constant 0.000000e+00 : f32
    %87 = vector.broadcast %cst_52 : f32 to vector<8x8xf32>
    %88 = arith.select %86, %84, %87 : vector<8x8xi1>, vector<8x8xf32>
    %89 = arith.addf %83, %88 : vector<8x8xf32>
    %c0_53 = arith.constant 0 : index
    %c5 = arith.constant 5 : index
    %90 = vector.load %arg15[%c0_53, %c5] : memref<8x17xf32, #tpu.memory_space<vmem>>, vector<8x8xf32>
    %c2_i32 = arith.constant 2 : i32
    %91 = vector.broadcast %c2_i32 : i32 to vector<8x8xi32>
    %92 = arith.cmpi eq, %35, %91 : vector<8x8xi32>
    %cst_54 = arith.constant 0.000000e+00 : f32
    %93 = vector.broadcast %cst_54 : f32 to vector<8x8xf32>
    %94 = arith.select %92, %90, %93 : vector<8x8xi1>, vector<8x8xf32>
    %95 = arith.addf %89, %94 : vector<8x8xf32>
    %c0_55 = arith.constant 0 : index
    %c6 = arith.constant 6 : index
    %96 = vector.load %arg15[%c0_55, %c6] : memref<8x17xf32, #tpu.memory_space<vmem>>, vector<8x8xf32>
    %c1_i32_56 = arith.constant 1 : i32
    %97 = vector.broadcast %c1_i32_56 : i32 to vector<8x8xi32>
    %98 = arith.cmpi eq, %35, %97 : vector<8x8xi32>
    %cst_57 = arith.constant 0.000000e+00 : f32
    %99 = vector.broadcast %cst_57 : f32 to vector<8x8xf32>
    %100 = arith.select %98, %96, %99 : vector<8x8xi1>, vector<8x8xf32>
    %101 = arith.addf %95, %100 : vector<8x8xf32>
    %c0_58 = arith.constant 0 : index
    %c7 = arith.constant 7 : index
    %102 = vector.load %arg15[%c0_58, %c7] : memref<8x17xf32, #tpu.memory_space<vmem>>, vector<8x8xf32>
    %c0_i32 = arith.constant 0 : i32
    %103 = vector.broadcast %c0_i32 : i32 to vector<8x8xi32>
    %104 = arith.cmpi eq, %35, %103 : vector<8x8xi32>
    %cst_59 = arith.constant 0.000000e+00 : f32
    %105 = vector.broadcast %cst_59 : f32 to vector<8x8xf32>
    %106 = arith.select %104, %102, %105 : vector<8x8xi1>, vector<8x8xf32>
    %107 = arith.addf %101, %106 : vector<8x8xf32>
    %108 = arith.addf %52, %107 : vector<8x8xf32>
    %cst_60 = arith.constant 0.176776692 : f32
    %109 = vector.broadcast %cst_60 : f32 to vector<8x8xf32>
    %110 = arith.mulf %108, %109 : vector<8x8xf32>
    %cst_61 = arith.constant dense<0xFF800000> : vector<8xf32>
    %111 = vector.multi_reduction <maximumf>, %110, %cst_61 [1] : vector<8x8xf32> to vector<8xf32>
    %112 = vector.shape_cast %111 : vector<8xf32> to vector<8x1xf32>
    %113 = vector.broadcast %112 : vector<8x1xf32> to vector<8x8xf32>
    %114 = arith.subf %110, %113 : vector<8x8xf32>
    %115 = math.exp %114 : vector<8x8xf32>
    %cst_62 = arith.constant dense<0.000000e+00> : vector<8xf32>
    %116 = vector.multi_reduction <add>, %115, %cst_62 [1] : vector<8x8xf32> to vector<8xf32>
    %117 = vector.shape_cast %116 : vector<8xf32> to vector<8x1xf32>
    %118 = tpu.reciprocal %117 {approx = true} : vector<8x1xf32> -> vector<8x1xf32>
    %119 = vector.broadcast %118 : vector<8x1xf32> to vector<8x8xf32>
    %120 = arith.mulf %115, %119 : vector<8x8xf32>
    %cst_63 = arith.constant dense<0.000000e+00> : vector<8x8xf32>
    %121 = tpu.matmul %120, %49, %cst_63 {dimension_numbers = #tpu.dot_dimension_numbers<[1], [0], [0], [1], [0, 0, 1, 1], [], []>} : vector<8x8xf32>, vector<8x8xf32>, vector<8x8xf32> -> vector<8x8xf32>
    %c0_64 = arith.constant 0 : index
    %c0_65 = arith.constant 0 : index
    %122 = vector.load %arg16[%c0_64, %c0_65] : memref<16x32xf32, #tpu.memory_space<vmem>>, vector<8x8xf32>
    tpu.vector_store %arg16[%c0_64, %c0_65], %121 {strides = array<i32>} : memref<16x32xf32, #tpu.memory_space<vmem>>, vector<8x8xf32>,
    %c8_66 = arith.constant 8 : index
    %c0_67 = arith.constant 0 : index
    %123 = vector.load %arg13[%c8_66, %c0_67] : memref<16x96xf32, #tpu.memory_space<vmem>>, vector<8x8xf32>
    %c8_68 = arith.constant 8 : index
    %c32_69 = arith.constant 32 : index
    %124 = vector.load %arg13[%c8_68, %c32_69] : memref<16x96xf32, #tpu.memory_space<vmem>>, vector<8x8xf32>
    %c8_70 = arith.constant 8 : index
    %c64_71 = arith.constant 64 : index
    %125 = vector.load %arg13[%c8_70, %c64_71] : memref<16x96xf32, #tpu.memory_space<vmem>>, vector<8x8xf32>
    %126 = vector.broadcast %44 : vector<1x8xf32> to vector<8x8xf32>
    %127 = arith.addf %123, %126 : vector<8x8xf32>
    %cst_72 = arith.constant dense<0.000000e+00> : vector<8x8xf32>
    %128 = tpu.matmul %127, %124, %cst_72 {dimension_numbers = #tpu.dot_dimension_numbers<[1], [1], [0], [0], [0, 0, 1, 0], [], []>} : vector<8x8xf32>, vector<8x8xf32>, vector<8x8xf32> -> vector<8x8xf32>
    %129 = vector.broadcast %45 : vector<1x8xf32> to vector<8x8xf32>
    %130 = arith.addf %123, %129 : vector<8x8xf32>
    %cst_73 = arith.constant dense<0.000000e+00> : vector<8x8xf32>
    %131 = tpu.matmul %130, %46, %cst_73 {dimension_numbers = #tpu.dot_dimension_numbers<[1], [1], [0], [0], [0, 0, 1, 0], [], []>} : vector<8x8xf32>, vector<8x8xf32>, vector<8x8xf32> -> vector<8x8xf32>
    %cst_74 = arith.constant dense<0.000000e+00> : vector<8x8xf32>
    %132 = tpu.matmul %41, %131, %cst_74 {dimension_numbers = #tpu.dot_dimension_numbers<[1], [0], [0], [1], [0, 0, 1, 1], [], []>} : vector<8x8xf32>, vector<8x8xf32>, vector<8x8xf32> -> vector<8x8xf32>
    %c0_75 = arith.constant 0 : index
    %c0_76 = arith.constant 0 : index
    %133 = vector.load %arg15[%c0_75, %c0_76] : memref<8x17xf32, #tpu.memory_space<vmem>>, vector<8x8xf32>
    tpu.vector_store %arg15[%c0_75, %c0_76], %131 {strides = array<i32>} : memref<8x17xf32, #tpu.memory_space<vmem>>, vector<8x8xf32>,
    %c0_77 = arith.constant 0 : index
    %c9_78 = arith.constant 9 : index
    %134 = vector.load %arg15[%c0_77, %c9_78] : memref<8x17xf32, #tpu.memory_space<vmem>>, vector<8x8xf32>
    tpu.vector_store %arg15[%c0_77, %c9_78], %132 {strides = array<i32>} : memref<8x17xf32, #tpu.memory_space<vmem>>, vector<8x8xf32>,
    %cst_79 = arith.constant 0.000000e+00 : f32
    %135 = vector.broadcast %cst_79 : f32 to vector<8x8xf32>
    %c0_80 = arith.constant 0 : index
    %c0_81 = arith.constant 0 : index
    %136 = vector.load %arg15[%c0_80, %c0_81] : memref<8x17xf32, #tpu.memory_space<vmem>>, vector<8x8xf32>
    %c7_i32_82 = arith.constant 7 : i32
    %137 = vector.broadcast %c7_i32_82 : i32 to vector<8x8xi32>
    %138 = arith.cmpi eq, %35, %137 : vector<8x8xi32>
    %cst_83 = arith.constant 0.000000e+00 : f32
    %139 = vector.broadcast %cst_83 : f32 to vector<8x8xf32>
    %140 = arith.select %138, %136, %139 : vector<8x8xi1>, vector<8x8xf32>
    %141 = arith.addf %135, %140 : vector<8x8xf32>
    %c0_84 = arith.constant 0 : index
    %c1_85 = arith.constant 1 : index
    %142 = vector.load %arg15[%c0_84, %c1_85] : memref<8x17xf32, #tpu.memory_space<vmem>>, vector<8x8xf32>
    %c6_i32_86 = arith.constant 6 : i32
    %143 = vector.broadcast %c6_i32_86 : i32 to vector<8x8xi32>
    %144 = arith.cmpi eq, %35, %143 : vector<8x8xi32>
    %cst_87 = arith.constant 0.000000e+00 : f32
    %145 = vector.broadcast %cst_87 : f32 to vector<8x8xf32>
    %146 = arith.select %144, %142, %145 : vector<8x8xi1>, vector<8x8xf32>
    %147 = arith.addf %141, %146 : vector<8x8xf32>
    %c0_88 = arith.constant 0 : index
    %c2_89 = arith.constant 2 : index
    %148 = vector.load %arg15[%c0_88, %c2_89] : memref<8x17xf32, #tpu.memory_space<vmem>>, vector<8x8xf32>
    %c5_i32_90 = arith.constant 5 : i32
    %149 = vector.broadcast %c5_i32_90 : i32 to vector<8x8xi32>
    %150 = arith.cmpi eq, %35, %149 : vector<8x8xi32>
    %cst_91 = arith.constant 0.000000e+00 : f32
    %151 = vector.broadcast %cst_91 : f32 to vector<8x8xf32>
    %152 = arith.select %150, %148, %151 : vector<8x8xi1>, vector<8x8xf32>
    %153 = arith.addf %147, %152 : vector<8x8xf32>
    %c0_92 = arith.constant 0 : index
    %c3_93 = arith.constant 3 : index
    %154 = vector.load %arg15[%c0_92, %c3_93] : memref<8x17xf32, #tpu.memory_space<vmem>>, vector<8x8xf32>
    %c4_i32_94 = arith.constant 4 : i32
    %155 = vector.broadcast %c4_i32_94 : i32 to vector<8x8xi32>
    %156 = arith.cmpi eq, %35, %155 : vector<8x8xi32>
    %cst_95 = arith.constant 0.000000e+00 : f32
    %157 = vector.broadcast %cst_95 : f32 to vector<8x8xf32>
    %158 = arith.select %156, %154, %157 : vector<8x8xi1>, vector<8x8xf32>
    %159 = arith.addf %153, %158 : vector<8x8xf32>
    %c0_96 = arith.constant 0 : index
    %c4_97 = arith.constant 4 : index
    %160 = vector.load %arg15[%c0_96, %c4_97] : memref<8x17xf32, #tpu.memory_space<vmem>>, vector<8x8xf32>
    %c3_i32_98 = arith.constant 3 : i32
    %161 = vector.broadcast %c3_i32_98 : i32 to vector<8x8xi32>
    %162 = arith.cmpi eq, %35, %161 : vector<8x8xi32>
    %cst_99 = arith.constant 0.000000e+00 : f32
    %163 = vector.broadcast %cst_99 : f32 to vector<8x8xf32>
    %164 = arith.select %162, %160, %163 : vector<8x8xi1>, vector<8x8xf32>
    %165 = arith.addf %159, %164 : vector<8x8xf32>
    %c0_100 = arith.constant 0 : index
    %c5_101 = arith.constant 5 : index
    %166 = vector.load %arg15[%c0_100, %c5_101] : memref<8x17xf32, #tpu.memory_space<vmem>>, vector<8x8xf32>
    %c2_i32_102 = arith.constant 2 : i32
    %167 = vector.broadcast %c2_i32_102 : i32 to vector<8x8xi32>
    %168 = arith.cmpi eq, %35, %167 : vector<8x8xi32>
    %cst_103 = arith.constant 0.000000e+00 : f32
    %169 = vector.broadcast %cst_103 : f32 to vector<8x8xf32>
    %170 = arith.select %168, %166, %169 : vector<8x8xi1>, vector<8x8xf32>
    %171 = arith.addf %165, %170 : vector<8x8xf32>
    %c0_104 = arith.constant 0 : index
    %c6_105 = arith.constant 6 : index
    %172 = vector.load %arg15[%c0_104, %c6_105] : memref<8x17xf32, #tpu.memory_space<vmem>>, vector<8x8xf32>
    %c1_i32_106 = arith.constant 1 : i32
    %173 = vector.broadcast %c1_i32_106 : i32 to vector<8x8xi32>
    %174 = arith.cmpi eq, %35, %173 : vector<8x8xi32>
    %cst_107 = arith.constant 0.000000e+00 : f32
    %175 = vector.broadcast %cst_107 : f32 to vector<8x8xf32>
    %176 = arith.select %174, %172, %175 : vector<8x8xi1>, vector<8x8xf32>
    %177 = arith.addf %171, %176 : vector<8x8xf32>
    %c0_108 = arith.constant 0 : index
    %c7_109 = arith.constant 7 : index
    %178 = vector.load %arg15[%c0_108, %c7_109] : memref<8x17xf32, #tpu.memory_space<vmem>>, vector<8x8xf32>
    %c0_i32_110 = arith.constant 0 : i32
    %179 = vector.broadcast %c0_i32_110 : i32 to vector<8x8xi32>
    %180 = arith.cmpi eq, %35, %179 : vector<8x8xi32>
    %cst_111 = arith.constant 0.000000e+00 : f32
    %181 = vector.broadcast %cst_111 : f32 to vector<8x8xf32>
    %182 = arith.select %180, %178, %181 : vector<8x8xi1>, vector<8x8xf32>
    %183 = arith.addf %177, %182 : vector<8x8xf32>
    %184 = arith.addf %128, %183 : vector<8x8xf32>
    %cst_112 = arith.constant 0.176776692 : f32
    %185 = vector.broadcast %cst_112 : f32 to vector<8x8xf32>
    %186 = arith.mulf %184, %185 : vector<8x8xf32>
    %cst_113 = arith.constant dense<0xFF800000> : vector<8xf32>
    %187 = vector.multi_reduction <maximumf>, %186, %cst_113 [1] : vector<8x8xf32> to vector<8xf32>
    %188 = vector.shape_cast %187 : vector<8xf32> to vector<8x1xf32>
    %189 = vector.broadcast %188 : vector<8x1xf32> to vector<8x8xf32>
    %190 = arith.subf %186, %189 : vector<8x8xf32>
    %191 = math.exp %190 : vector<8x8xf32>
    %cst_114 = arith.constant dense<0.000000e+00> : vector<8xf32>
    %192 = vector.multi_reduction <add>, %191, %cst_114 [1] : vector<8x8xf32> to vector<8xf32>
    %193 = vector.shape_cast %192 : vector<8xf32> to vector<8x1xf32>
    %194 = tpu.reciprocal %193 {approx = true} : vector<8x1xf32> -> vector<8x1xf32>
    %195 = vector.broadcast %194 : vector<8x1xf32> to vector<8x8xf32>
    %196 = arith.mulf %191, %195 : vector<8x8xf32>
    %cst_115 = arith.constant dense<0.000000e+00> : vector<8x8xf32>
    %197 = tpu.matmul %196, %125, %cst_115 {dimension_numbers = #tpu.dot_dimension_numbers<[1], [0], [0], [1], [0, 0, 1, 1], [], []>} : vector<8x8xf32>, vector<8x8xf32>, vector<8x8xf32> -> vector<8x8xf32>
    %c8_116 = arith.constant 8 : index
    %c0_117 = arith.constant 0 : index
    %198 = vector.load %arg16[%c8_116, %c0_117] : memref<16x32xf32, #tpu.memory_space<vmem>>, vector<8x8xf32>
    tpu.vector_store %arg16[%c8_116, %c0_117], %197 {strides = array<i32>} : memref<16x32xf32, #tpu.memory_space<vmem>>, vector<8x8xf32>,
    %c0_118 = arith.constant 0 : index
    %c8_119 = arith.constant 8 : index
    %199 = vector.load %arg8[%c0_118, %c8_119] : memref<1x32xf32, #tpu.memory_space<vmem>>, vector<1x8xf32>
    %c0_120 = arith.constant 0 : index
    %c8_121 = arith.constant 8 : index
    %200 = vector.load %arg9[%c0_120, %c8_121] : memref<1x32xf32, #tpu.memory_space<vmem>>, vector<1x8xf32>
    %c0_122 = arith.constant 0 : index
    %c8_123 = arith.constant 8 : index
    %201 = vector.load %arg14[%c0_122, %c8_123] : memref<8x32xf32, #tpu.memory_space<vmem>>, vector<8x8xf32>
    %c0_124 = arith.constant 0 : index
    %c8_125 = arith.constant 8 : index
    %202 = vector.load %arg13[%c0_124, %c8_125] : memref<16x96xf32, #tpu.memory_space<vmem>>, vector<8x8xf32>
    %c0_126 = arith.constant 0 : index
    %c40 = arith.constant 40 : index
    %203 = vector.load %arg13[%c0_126, %c40] : memref<16x96xf32, #tpu.memory_space<vmem>>, vector<8x8xf32>
    %c0_127 = arith.constant 0 : index
    %c72 = arith.constant 72 : index
    %204 = vector.load %arg13[%c0_127, %c72] : memref<16x96xf32, #tpu.memory_space<vmem>>, vector<8x8xf32>
    %205 = vector.broadcast %199 : vector<1x8xf32> to vector<8x8xf32>
    %206 = arith.addf %202, %205 : vector<8x8xf32>
    %cst_128 = arith.constant dense<0.000000e+00> : vector<8x8xf32>
    %207 = tpu.matmul %206, %203, %cst_128 {dimension_numbers = #tpu.dot_dimension_numbers<[1], [1], [0], [0], [0, 0, 1, 0], [], []>} : vector<8x8xf32>, vector<8x8xf32>, vector<8x8xf32> -> vector<8x8xf32>
    %208 = vector.broadcast %200 : vector<1x8xf32> to vector<8x8xf32>
    %209 = arith.addf %202, %208 : vector<8x8xf32>
    %cst_129 = arith.constant dense<0.000000e+00> : vector<8x8xf32>
    %210 = tpu.matmul %209, %201, %cst_129 {dimension_numbers = #tpu.dot_dimension_numbers<[1], [1], [0], [0], [0, 0, 1, 0], [], []>} : vector<8x8xf32>, vector<8x8xf32>, vector<8x8xf32> -> vector<8x8xf32>
    %cst_130 = arith.constant dense<0.000000e+00> : vector<8x8xf32>
    %211 = tpu.matmul %41, %210, %cst_130 {dimension_numbers = #tpu.dot_dimension_numbers<[1], [0], [0], [1], [0, 0, 1, 1], [], []>} : vector<8x8xf32>, vector<8x8xf32>, vector<8x8xf32> -> vector<8x8xf32>
    %c0_131 = arith.constant 0 : index
    %c0_132 = arith.constant 0 : index
    %212 = vector.load %arg15[%c0_131, %c0_132] : memref<8x17xf32, #tpu.memory_space<vmem>>, vector<8x8xf32>
    tpu.vector_store %arg15[%c0_131, %c0_132], %210 {strides = array<i32>} : memref<8x17xf32, #tpu.memory_space<vmem>>, vector<8x8xf32>,
    %c0_133 = arith.constant 0 : index
    %c9_134 = arith.constant 9 : index
    %213 = vector.load %arg15[%c0_133, %c9_134] : memref<8x17xf32, #tpu.memory_space<vmem>>, vector<8x8xf32>
    tpu.vector_store %arg15[%c0_133, %c9_134], %211 {strides = array<i32>} : memref<8x17xf32, #tpu.memory_space<vmem>>, vector<8x8xf32>,
    %cst_135 = arith.constant 0.000000e+00 : f32
    %214 = vector.broadcast %cst_135 : f32 to vector<8x8xf32>
    %c0_136 = arith.constant 0 : index
    %c0_137 = arith.constant 0 : index
    %215 = vector.load %arg15[%c0_136, %c0_137] : memref<8x17xf32, #tpu.memory_space<vmem>>, vector<8x8xf32>
    %c7_i32_138 = arith.constant 7 : i32
    %216 = vector.broadcast %c7_i32_138 : i32 to vector<8x8xi32>
    %217 = arith.cmpi eq, %35, %216 : vector<8x8xi32>
    %cst_139 = arith.constant 0.000000e+00 : f32
    %218 = vector.broadcast %cst_139 : f32 to vector<8x8xf32>
    %219 = arith.select %217, %215, %218 : vector<8x8xi1>, vector<8x8xf32>
    %220 = arith.addf %214, %219 : vector<8x8xf32>
    %c0_140 = arith.constant 0 : index
    %c1_141 = arith.constant 1 : index
    %221 = vector.load %arg15[%c0_140, %c1_141] : memref<8x17xf32, #tpu.memory_space<vmem>>, vector<8x8xf32>
    %c6_i32_142 = arith.constant 6 : i32
    %222 = vector.broadcast %c6_i32_142 : i32 to vector<8x8xi32>
    %223 = arith.cmpi eq, %35, %222 : vector<8x8xi32>
    %cst_143 = arith.constant 0.000000e+00 : f32
    %224 = vector.broadcast %cst_143 : f32 to vector<8x8xf32>
    %225 = arith.select %223, %221, %224 : vector<8x8xi1>, vector<8x8xf32>
    %226 = arith.addf %220, %225 : vector<8x8xf32>
    %c0_144 = arith.constant 0 : index
    %c2_145 = arith.constant 2 : index
    %227 = vector.load %arg15[%c0_144, %c2_145] : memref<8x17xf32, #tpu.memory_space<vmem>>, vector<8x8xf32>
    %c5_i32_146 = arith.constant 5 : i32
    %228 = vector.broadcast %c5_i32_146 : i32 to vector<8x8xi32>
    %229 = arith.cmpi eq, %35, %228 : vector<8x8xi32>
    %cst_147 = arith.constant 0.000000e+00 : f32
    %230 = vector.broadcast %cst_147 : f32 to vector<8x8xf32>
    %231 = arith.select %229, %227, %230 : vector<8x8xi1>, vector<8x8xf32>
    %232 = arith.addf %226, %231 : vector<8x8xf32>
    %c0_148 = arith.constant 0 : index
    %c3_149 = arith.constant 3 : index
    %233 = vector.load %arg15[%c0_148, %c3_149] : memref<8x17xf32, #tpu.memory_space<vmem>>, vector<8x8xf32>
    %c4_i32_150 = arith.constant 4 : i32
    %234 = vector.broadcast %c4_i32_150 : i32 to vector<8x8xi32>
    %235 = arith.cmpi eq, %35, %234 : vector<8x8xi32>
    %cst_151 = arith.constant 0.000000e+00 : f32
    %236 = vector.broadcast %cst_151 : f32 to vector<8x8xf32>
    %237 = arith.select %235, %233, %236 : vector<8x8xi1>, vector<8x8xf32>
    %238 = arith.addf %232, %237 : vector<8x8xf32>
    %c0_152 = arith.constant 0 : index
    %c4_153 = arith.constant 4 : index
    %239 = vector.load %arg15[%c0_152, %c4_153] : memref<8x17xf32, #tpu.memory_space<vmem>>, vector<8x8xf32>
    %c3_i32_154 = arith.constant 3 : i32
    %240 = vector.broadcast %c3_i32_154 : i32 to vector<8x8xi32>
    %241 = arith.cmpi eq, %35, %240 : vector<8x8xi32>
    %cst_155 = arith.constant 0.000000e+00 : f32
    %242 = vector.broadcast %cst_155 : f32 to vector<8x8xf32>
    %243 = arith.select %241, %239, %242 : vector<8x8xi1>, vector<8x8xf32>
    %244 = arith.addf %238, %243 : vector<8x8xf32>
    %c0_156 = arith.constant 0 : index
    %c5_157 = arith.constant 5 : index
    %245 = vector.load %arg15[%c0_156, %c5_157] : memref<8x17xf32, #tpu.memory_space<vmem>>, vector<8x8xf32>
    %c2_i32_158 = arith.constant 2 : i32
    %246 = vector.broadcast %c2_i32_158 : i32 to vector<8x8xi32>
    %247 = arith.cmpi eq, %35, %246 : vector<8x8xi32>
    %cst_159 = arith.constant 0.000000e+00 : f32
    %248 = vector.broadcast %cst_159 : f32 to vector<8x8xf32>
    %249 = arith.select %247, %245, %248 : vector<8x8xi1>, vector<8x8xf32>
    %250 = arith.addf %244, %249 : vector<8x8xf32>
    %c0_160 = arith.constant 0 : index
    %c6_161 = arith.constant 6 : index
    %251 = vector.load %arg15[%c0_160, %c6_161] : memref<8x17xf32, #tpu.memory_space<vmem>>, vector<8x8xf32>
    %c1_i32_162 = arith.constant 1 : i32
    %252 = vector.broadcast %c1_i32_162 : i32 to vector<8x8xi32>
    %253 = arith.cmpi eq, %35, %252 : vector<8x8xi32>
    %cst_163 = arith.constant 0.000000e+00 : f32
    %254 = vector.broadcast %cst_163 : f32 to vector<8x8xf32>
    %255 = arith.select %253, %251, %254 : vector<8x8xi1>, vector<8x8xf32>
    %256 = arith.addf %250, %255 : vector<8x8xf32>
    %c0_164 = arith.constant 0 : index
    %c7_165 = arith.constant 7 : index
    %257 = vector.load %arg15[%c0_164, %c7_165] : memref<8x17xf32, #tpu.memory_space<vmem>>, vector<8x8xf32>
    %c0_i32_166 = arith.constant 0 : i32
    %258 = vector.broadcast %c0_i32_166 : i32 to vector<8x8xi32>
    %259 = arith.cmpi eq, %35, %258 : vector<8x8xi32>
    %cst_167 = arith.constant 0.000000e+00 : f32
    %260 = vector.broadcast %cst_167 : f32 to vector<8x8xf32>
    %261 = arith.select %259, %257, %260 : vector<8x8xi1>, vector<8x8xf32>
    %262 = arith.addf %256, %261 : vector<8x8xf32>
    %263 = arith.addf %207, %262 : vector<8x8xf32>
    %cst_168 = arith.constant 0.176776692 : f32
    %264 = vector.broadcast %cst_168 : f32 to vector<8x8xf32>
    %265 = arith.mulf %263, %264 : vector<8x8xf32>
    %cst_169 = arith.constant dense<0xFF800000> : vector<8xf32>
    %266 = vector.multi_reduction <maximumf>, %265, %cst_169 [1] : vector<8x8xf32> to vector<8xf32>
    %267 = vector.shape_cast %266 : vector<8xf32> to vector<8x1xf32>
    %268 = vector.broadcast %267 : vector<8x1xf32> to vector<8x8xf32>
    %269 = arith.subf %265, %268 : vector<8x8xf32>
    %270 = math.exp %269 : vector<8x8xf32>
    %cst_170 = arith.constant dense<0.000000e+00> : vector<8xf32>
    %271 = vector.multi_reduction <add>, %270, %cst_170 [1] : vector<8x8xf32> to vector<8xf32>
    %272 = vector.shape_cast %271 : vector<8xf32> to vector<8x1xf32>
    %273 = tpu.reciprocal %272 {approx = true} : vector<8x1xf32> -> vector<8x1xf32>
    %274 = vector.broadcast %273 : vector<8x1xf32> to vector<8x8xf32>
    %275 = arith.mulf %270, %274 : vector<8x8xf32>
    %cst_171 = arith.constant dense<0.000000e+00> : vector<8x8xf32>
    %276 = tpu.matmul %275, %204, %cst_171 {dimension_numbers = #tpu.dot_dimension_numbers<[1], [0], [0], [1], [0, 0, 1, 1], [], []>} : vector<8x8xf32>, vector<8x8xf32>, vector<8x8xf32> -> vector<8x8xf32>
    %c0_172 = arith.constant 0 : index
    %c8_173 = arith.constant 8 : index
    %277 = vector.load %arg16[%c0_172, %c8_173] : memref<16x32xf32, #tpu.memory_space<vmem>>, vector<8x8xf32>
    tpu.vector_store %arg16[%c0_172, %c8_173], %276 {strides = array<i32>} : memref<16x32xf32, #tpu.memory_space<vmem>>, vector<8x8xf32>,
    %c8_174 = arith.constant 8 : index
    %c8_175 = arith.constant 8 : index
    %278 = vector.load %arg13[%c8_174, %c8_175] : memref<16x96xf32, #tpu.memory_space<vmem>>, vector<8x8xf32>
    %c8_176 = arith.constant 8 : index
    %c40_177 = arith.constant 40 : index
    %279 = vector.load %arg13[%c8_176, %c40_177] : memref<16x96xf32, #tpu.memory_space<vmem>>, vector<8x8xf32>
    %c8_178 = arith.constant 8 : index
    %c72_179 = arith.constant 72 : index
    %280 = vector.load %arg13[%c8_178, %c72_179] : memref<16x96xf32, #tpu.memory_space<vmem>>, vector<8x8xf32>
    %281 = vector.broadcast %199 : vector<1x8xf32> to vector<8x8xf32>
    %282 = arith.addf %278, %281 : vector<8x8xf32>
    %cst_180 = arith.constant dense<0.000000e+00> : vector<8x8xf32>
    %283 = tpu.matmul %282, %279, %cst_180 {dimension_numbers = #tpu.dot_dimension_numbers<[1], [1], [0], [0], [0, 0, 1, 0], [], []>} : vector<8x8xf32>, vector<8x8xf32>, vector<8x8xf32> -> vector<8x8xf32>
    %284 = vector.broadcast %200 : vector<1x8xf32> to vector<8x8xf32>
    %285 = arith.addf %278, %284 : vector<8x8xf32>
    %cst_181 = arith.constant dense<0.000000e+00> : vector<8x8xf32>
    %286 = tpu.matmul %285, %201, %cst_181 {dimension_numbers = #tpu.dot_dimension_numbers<[1], [1], [0], [0], [0, 0, 1, 0], [], []>} : vector<8x8xf32>, vector<8x8xf32>, vector<8x8xf32> -> vector<8x8xf32>
    %cst_182 = arith.constant dense<0.000000e+00> : vector<8x8xf32>
    %287 = tpu.matmul %41, %286, %cst_182 {dimension_numbers = #tpu.dot_dimension_numbers<[1], [0], [0], [1], [0, 0, 1, 1], [], []>} : vector<8x8xf32>, vector<8x8xf32>, vector<8x8xf32> -> vector<8x8xf32>
    %c0_183 = arith.constant 0 : index
    %c0_184 = arith.constant 0 : index
    %288 = vector.load %arg15[%c0_183, %c0_184] : memref<8x17xf32, #tpu.memory_space<vmem>>, vector<8x8xf32>
    tpu.vector_store %arg15[%c0_183, %c0_184], %286 {strides = array<i32>} : memref<8x17xf32, #tpu.memory_space<vmem>>, vector<8x8xf32>,
    %c0_185 = arith.constant 0 : index
    %c9_186 = arith.constant 9 : index
    %289 = vector.load %arg15[%c0_185, %c9_186] : memref<8x17xf32, #tpu.memory_space<vmem>>, vector<8x8xf32>
    tpu.vector_store %arg15[%c0_185, %c9_186], %287 {strides = array<i32>} : memref<8x17xf32, #tpu.memory_space<vmem>>, vector<8x8xf32>,
    %cst_187 = arith.constant 0.000000e+00 : f32
    %290 = vector.broadcast %cst_187 : f32 to vector<8x8xf32>
    %c0_188 = arith.constant 0 : index
    %c0_189 = arith.constant 0 : index
    %291 = vector.load %arg15[%c0_188, %c0_189] : memref<8x17xf32, #tpu.memory_space<vmem>>, vector<8x8xf32>
    %c7_i32_190 = arith.constant 7 : i32
    %292 = vector.broadcast %c7_i32_190 : i32 to vector<8x8xi32>
    %293 = arith.cmpi eq, %35, %292 : vector<8x8xi32>
    %cst_191 = arith.constant 0.000000e+00 : f32
    %294 = vector.broadcast %cst_191 : f32 to vector<8x8xf32>
    %295 = arith.select %293, %291, %294 : vector<8x8xi1>, vector<8x8xf32>
    %296 = arith.addf %290, %295 : vector<8x8xf32>
    %c0_192 = arith.constant 0 : index
    %c1_193 = arith.constant 1 : index
    %297 = vector.load %arg15[%c0_192, %c1_193] : memref<8x17xf32, #tpu.memory_space<vmem>>, vector<8x8xf32>
    %c6_i32_194 = arith.constant 6 : i32
    %298 = vector.broadcast %c6_i32_194 : i32 to vector<8x8xi32>
    %299 = arith.cmpi eq, %35, %298 : vector<8x8xi32>
    %cst_195 = arith.constant 0.000000e+00 : f32
    %300 = vector.broadcast %cst_195 : f32 to vector<8x8xf32>
    %301 = arith.select %299, %297, %300 : vector<8x8xi1>, vector<8x8xf32>
    %302 = arith.addf %296, %301 : vector<8x8xf32>
    %c0_196 = arith.constant 0 : index
    %c2_197 = arith.constant 2 : index
    %303 = vector.load %arg15[%c0_196, %c2_197] : memref<8x17xf32, #tpu.memory_space<vmem>>, vector<8x8xf32>
    %c5_i32_198 = arith.constant 5 : i32
    %304 = vector.broadcast %c5_i32_198 : i32 to vector<8x8xi32>
    %305 = arith.cmpi eq, %35, %304 : vector<8x8xi32>
    %cst_199 = arith.constant 0.000000e+00 : f32
    %306 = vector.broadcast %cst_199 : f32 to vector<8x8xf32>
    %307 = arith.select %305, %303, %306 : vector<8x8xi1>, vector<8x8xf32>
    %308 = arith.addf %302, %307 : vector<8x8xf32>
    %c0_200 = arith.constant 0 : index
    %c3_201 = arith.constant 3 : index
    %309 = vector.load %arg15[%c0_200, %c3_201] : memref<8x17xf32, #tpu.memory_space<vmem>>, vector<8x8xf32>
    %c4_i32_202 = arith.constant 4 : i32
    %310 = vector.broadcast %c4_i32_202 : i32 to vector<8x8xi32>
    %311 = arith.cmpi eq, %35, %310 : vector<8x8xi32>
    %cst_203 = arith.constant 0.000000e+00 : f32
    %312 = vector.broadcast %cst_203 : f32 to vector<8x8xf32>
    %313 = arith.select %311, %309, %312 : vector<8x8xi1>, vector<8x8xf32>
    %314 = arith.addf %308, %313 : vector<8x8xf32>
    %c0_204 = arith.constant 0 : index
    %c4_205 = arith.constant 4 : index
    %315 = vector.load %arg15[%c0_204, %c4_205] : memref<8x17xf32, #tpu.memory_space<vmem>>, vector<8x8xf32>
    %c3_i32_206 = arith.constant 3 : i32
    %316 = vector.broadcast %c3_i32_206 : i32 to vector<8x8xi32>
    %317 = arith.cmpi eq, %35, %316 : vector<8x8xi32>
    %cst_207 = arith.constant 0.000000e+00 : f32
    %318 = vector.broadcast %cst_207 : f32 to vector<8x8xf32>
    %319 = arith.select %317, %315, %318 : vector<8x8xi1>, vector<8x8xf32>
    %320 = arith.addf %314, %319 : vector<8x8xf32>
    %c0_208 = arith.constant 0 : index
    %c5_209 = arith.constant 5 : index
    %321 = vector.load %arg15[%c0_208, %c5_209] : memref<8x17xf32, #tpu.memory_space<vmem>>, vector<8x8xf32>
    %c2_i32_210 = arith.constant 2 : i32
    %322 = vector.broadcast %c2_i32_210 : i32 to vector<8x8xi32>
    %323 = arith.cmpi eq, %35, %322 : vector<8x8xi32>
    %cst_211 = arith.constant 0.000000e+00 : f32
    %324 = vector.broadcast %cst_211 : f32 to vector<8x8xf32>
    %325 = arith.select %323, %321, %324 : vector<8x8xi1>, vector<8x8xf32>
    %326 = arith.addf %320, %325 : vector<8x8xf32>
    %c0_212 = arith.constant 0 : index
    %c6_213 = arith.constant 6 : index
    %327 = vector.load %arg15[%c0_212, %c6_213] : memref<8x17xf32, #tpu.memory_space<vmem>>, vector<8x8xf32>
    %c1_i32_214 = arith.constant 1 : i32
    %328 = vector.broadcast %c1_i32_214 : i32 to vector<8x8xi32>
    %329 = arith.cmpi eq, %35, %328 : vector<8x8xi32>
    %cst_215 = arith.constant 0.000000e+00 : f32
    %330 = vector.broadcast %cst_215 : f32 to vector<8x8xf32>
    %331 = arith.select %329, %327, %330 : vector<8x8xi1>, vector<8x8xf32>
    %332 = arith.addf %326, %331 : vector<8x8xf32>
    %c0_216 = arith.constant 0 : index
    %c7_217 = arith.constant 7 : index
    %333 = vector.load %arg15[%c0_216, %c7_217] : memref<8x17xf32, #tpu.memory_space<vmem>>, vector<8x8xf32>
    %c0_i32_218 = arith.constant 0 : i32
    %334 = vector.broadcast %c0_i32_218 : i32 to vector<8x8xi32>
    %335 = arith.cmpi eq, %35, %334 : vector<8x8xi32>
    %cst_219 = arith.constant 0.000000e+00 : f32
    %336 = vector.broadcast %cst_219 : f32 to vector<8x8xf32>
    %337 = arith.select %335, %333, %336 : vector<8x8xi1>, vector<8x8xf32>
    %338 = arith.addf %332, %337 : vector<8x8xf32>
    %339 = arith.addf %283, %338 : vector<8x8xf32>
    %cst_220 = arith.constant 0.176776692 : f32
    %340 = vector.broadcast %cst_220 : f32 to vector<8x8xf32>
    %341 = arith.mulf %339, %340 : vector<8x8xf32>
    %cst_221 = arith.constant dense<0xFF800000> : vector<8xf32>
    %342 = vector.multi_reduction <maximumf>, %341, %cst_221 [1] : vector<8x8xf32> to vector<8xf32>
    %343 = vector.shape_cast %342 : vector<8xf32> to vector<8x1xf32>
    %344 = vector.broadcast %343 : vector<8x1xf32> to vector<8x8xf32>
    %345 = arith.subf %341, %344 : vector<8x8xf32>
    %346 = math.exp %345 : vector<8x8xf32>
    %cst_222 = arith.constant dense<0.000000e+00> : vector<8xf32>
    %347 = vector.multi_reduction <add>, %346, %cst_222 [1] : vector<8x8xf32> to vector<8xf32>
    %348 = vector.shape_cast %347 : vector<8xf32> to vector<8x1xf32>
    %349 = tpu.reciprocal %348 {approx = true} : vector<8x1xf32> -> vector<8x1xf32>
    %350 = vector.broadcast %349 : vector<8x1xf32> to vector<8x8xf32>
    %351 = arith.mulf %346, %350 : vector<8x8xf32>
    %cst_223 = arith.constant dense<0.000000e+00> : vector<8x8xf32>
    %352 = tpu.matmul %351, %280, %cst_223 {dimension_numbers = #tpu.dot_dimension_numbers<[1], [0], [0], [1], [0, 0, 1, 1], [], []>} : vector<8x8xf32>, vector<8x8xf32>, vector<8x8xf32> -> vector<8x8xf32>
    %c8_224 = arith.constant 8 : index
    %c8_225 = arith.constant 8 : index
    %353 = vector.load %arg16[%c8_224, %c8_225] : memref<16x32xf32, #tpu.memory_space<vmem>>, vector<8x8xf32>
    tpu.vector_store %arg16[%c8_224, %c8_225], %352 {strides = array<i32>} : memref<16x32xf32, #tpu.memory_space<vmem>>, vector<8x8xf32>,
    %c0_226 = arith.constant 0 : index
    %c16 = arith.constant 16 : index
    %354 = vector.load %arg8[%c0_226, %c16] : memref<1x32xf32, #tpu.memory_space<vmem>>, vector<1x8xf32>
    %c0_227 = arith.constant 0 : index
    %c16_228 = arith.constant 16 : index
    %355 = vector.load %arg9[%c0_227, %c16_228] : memref<1x32xf32, #tpu.memory_space<vmem>>, vector<1x8xf32>
    %c0_229 = arith.constant 0 : index
    %c16_230 = arith.constant 16 : index
    %356 = vector.load %arg14[%c0_229, %c16_230] : memref<8x32xf32, #tpu.memory_space<vmem>>, vector<8x8xf32>
    %c0_231 = arith.constant 0 : index
    %c16_232 = arith.constant 16 : index
    %357 = vector.load %arg13[%c0_231, %c16_232] : memref<16x96xf32, #tpu.memory_space<vmem>>, vector<8x8xf32>
    %c0_233 = arith.constant 0 : index
    %c48 = arith.constant 48 : index
    %358 = vector.load %arg13[%c0_233, %c48] : memref<16x96xf32, #tpu.memory_space<vmem>>, vector<8x8xf32>
    %c0_234 = arith.constant 0 : index
    %c80 = arith.constant 80 : index
    %359 = vector.load %arg13[%c0_234, %c80] : memref<16x96xf32, #tpu.memory_space<vmem>>, vector<8x8xf32>
    %360 = vector.broadcast %354 : vector<1x8xf32> to vector<8x8xf32>
    %361 = arith.addf %357, %360 : vector<8x8xf32>
    %cst_235 = arith.constant dense<0.000000e+00> : vector<8x8xf32>
    %362 = tpu.matmul %361, %358, %cst_235 {dimension_numbers = #tpu.dot_dimension_numbers<[1], [1], [0], [0], [0, 0, 1, 0], [], []>} : vector<8x8xf32>, vector<8x8xf32>, vector<8x8xf32> -> vector<8x8xf32>
    %363 = vector.broadcast %355 : vector<1x8xf32> to vector<8x8xf32>
    %364 = arith.addf %357, %363 : vector<8x8xf32>
    %cst_236 = arith.constant dense<0.000000e+00> : vector<8x8xf32>
    %365 = tpu.matmul %364, %356, %cst_236 {dimension_numbers = #tpu.dot_dimension_numbers<[1], [1], [0], [0], [0, 0, 1, 0], [], []>} : vector<8x8xf32>, vector<8x8xf32>, vector<8x8xf32> -> vector<8x8xf32>
    %cst_237 = arith.constant dense<0.000000e+00> : vector<8x8xf32>
    %366 = tpu.matmul %41, %365, %cst_237 {dimension_numbers = #tpu.dot_dimension_numbers<[1], [0], [0], [1], [0, 0, 1, 1], [], []>} : vector<8x8xf32>, vector<8x8xf32>, vector<8x8xf32> -> vector<8x8xf32>
    %c0_238 = arith.constant 0 : index
    %c0_239 = arith.constant 0 : index
    %367 = vector.load %arg15[%c0_238, %c0_239] : memref<8x17xf32, #tpu.memory_space<vmem>>, vector<8x8xf32>
    tpu.vector_store %arg15[%c0_238, %c0_239], %365 {strides = array<i32>} : memref<8x17xf32, #tpu.memory_space<vmem>>, vector<8x8xf32>,
    %c0_240 = arith.constant 0 : index
    %c9_241 = arith.constant 9 : index
    %368 = vector.load %arg15[%c0_240, %c9_241] : memref<8x17xf32, #tpu.memory_space<vmem>>, vector<8x8xf32>
    tpu.vector_store %arg15[%c0_240, %c9_241], %366 {strides = array<i32>} : memref<8x17xf32, #tpu.memory_space<vmem>>, vector<8x8xf32>,
    %cst_242 = arith.constant 0.000000e+00 : f32
    %369 = vector.broadcast %cst_242 : f32 to vector<8x8xf32>
    %c0_243 = arith.constant 0 : index
    %c0_244 = arith.constant 0 : index
    %370 = vector.load %arg15[%c0_243, %c0_244] : memref<8x17xf32, #tpu.memory_space<vmem>>, vector<8x8xf32>
    %c7_i32_245 = arith.constant 7 : i32
    %371 = vector.broadcast %c7_i32_245 : i32 to vector<8x8xi32>
    %372 = arith.cmpi eq, %35, %371 : vector<8x8xi32>
    %cst_246 = arith.constant 0.000000e+00 : f32
    %373 = vector.broadcast %cst_246 : f32 to vector<8x8xf32>
    %374 = arith.select %372, %370, %373 : vector<8x8xi1>, vector<8x8xf32>
    %375 = arith.addf %369, %374 : vector<8x8xf32>
    %c0_247 = arith.constant 0 : index
    %c1_248 = arith.constant 1 : index
    %376 = vector.load %arg15[%c0_247, %c1_248] : memref<8x17xf32, #tpu.memory_space<vmem>>, vector<8x8xf32>
    %c6_i32_249 = arith.constant 6 : i32
    %377 = vector.broadcast %c6_i32_249 : i32 to vector<8x8xi32>
    %378 = arith.cmpi eq, %35, %377 : vector<8x8xi32>
    %cst_250 = arith.constant 0.000000e+00 : f32
    %379 = vector.broadcast %cst_250 : f32 to vector<8x8xf32>
    %380 = arith.select %378, %376, %379 : vector<8x8xi1>, vector<8x8xf32>
    %381 = arith.addf %375, %380 : vector<8x8xf32>
    %c0_251 = arith.constant 0 : index
    %c2_252 = arith.constant 2 : index
    %382 = vector.load %arg15[%c0_251, %c2_252] : memref<8x17xf32, #tpu.memory_space<vmem>>, vector<8x8xf32>
    %c5_i32_253 = arith.constant 5 : i32
    %383 = vector.broadcast %c5_i32_253 : i32 to vector<8x8xi32>
    %384 = arith.cmpi eq, %35, %383 : vector<8x8xi32>
    %cst_254 = arith.constant 0.000000e+00 : f32
    %385 = vector.broadcast %cst_254 : f32 to vector<8x8xf32>
    %386 = arith.select %384, %382, %385 : vector<8x8xi1>, vector<8x8xf32>
    %387 = arith.addf %381, %386 : vector<8x8xf32>
    %c0_255 = arith.constant 0 : index
    %c3_256 = arith.constant 3 : index
    %388 = vector.load %arg15[%c0_255, %c3_256] : memref<8x17xf32, #tpu.memory_space<vmem>>, vector<8x8xf32>
    %c4_i32_257 = arith.constant 4 : i32
    %389 = vector.broadcast %c4_i32_257 : i32 to vector<8x8xi32>
    %390 = arith.cmpi eq, %35, %389 : vector<8x8xi32>
    %cst_258 = arith.constant 0.000000e+00 : f32
    %391 = vector.broadcast %cst_258 : f32 to vector<8x8xf32>
    %392 = arith.select %390, %388, %391 : vector<8x8xi1>, vector<8x8xf32>
    %393 = arith.addf %387, %392 : vector<8x8xf32>
    %c0_259 = arith.constant 0 : index
    %c4_260 = arith.constant 4 : index
    %394 = vector.load %arg15[%c0_259, %c4_260] : memref<8x17xf32, #tpu.memory_space<vmem>>, vector<8x8xf32>
    %c3_i32_261 = arith.constant 3 : i32
    %395 = vector.broadcast %c3_i32_261 : i32 to vector<8x8xi32>
    %396 = arith.cmpi eq, %35, %395 : vector<8x8xi32>
    %cst_262 = arith.constant 0.000000e+00 : f32
    %397 = vector.broadcast %cst_262 : f32 to vector<8x8xf32>
    %398 = arith.select %396, %394, %397 : vector<8x8xi1>, vector<8x8xf32>
    %399 = arith.addf %393, %398 : vector<8x8xf32>
    %c0_263 = arith.constant 0 : index
    %c5_264 = arith.constant 5 : index
    %400 = vector.load %arg15[%c0_263, %c5_264] : memref<8x17xf32, #tpu.memory_space<vmem>>, vector<8x8xf32>
    %c2_i32_265 = arith.constant 2 : i32
    %401 = vector.broadcast %c2_i32_265 : i32 to vector<8x8xi32>
    %402 = arith.cmpi eq, %35, %401 : vector<8x8xi32>
    %cst_266 = arith.constant 0.000000e+00 : f32
    %403 = vector.broadcast %cst_266 : f32 to vector<8x8xf32>
    %404 = arith.select %402, %400, %403 : vector<8x8xi1>, vector<8x8xf32>
    %405 = arith.addf %399, %404 : vector<8x8xf32>
    %c0_267 = arith.constant 0 : index
    %c6_268 = arith.constant 6 : index
    %406 = vector.load %arg15[%c0_267, %c6_268] : memref<8x17xf32, #tpu.memory_space<vmem>>, vector<8x8xf32>
    %c1_i32_269 = arith.constant 1 : i32
    %407 = vector.broadcast %c1_i32_269 : i32 to vector<8x8xi32>
    %408 = arith.cmpi eq, %35, %407 : vector<8x8xi32>
    %cst_270 = arith.constant 0.000000e+00 : f32
    %409 = vector.broadcast %cst_270 : f32 to vector<8x8xf32>
    %410 = arith.select %408, %406, %409 : vector<8x8xi1>, vector<8x8xf32>
    %411 = arith.addf %405, %410 : vector<8x8xf32>
    %c0_271 = arith.constant 0 : index
    %c7_272 = arith.constant 7 : index
    %412 = vector.load %arg15[%c0_271, %c7_272] : memref<8x17xf32, #tpu.memory_space<vmem>>, vector<8x8xf32>
    %c0_i32_273 = arith.constant 0 : i32
    %413 = vector.broadcast %c0_i32_273 : i32 to vector<8x8xi32>
    %414 = arith.cmpi eq, %35, %413 : vector<8x8xi32>
    %cst_274 = arith.constant 0.000000e+00 : f32
    %415 = vector.broadcast %cst_274 : f32 to vector<8x8xf32>
    %416 = arith.select %414, %412, %415 : vector<8x8xi1>, vector<8x8xf32>
    %417 = arith.addf %411, %416 : vector<8x8xf32>
    %418 = arith.addf %362, %417 : vector<8x8xf32>
    %cst_275 = arith.constant 0.176776692 : f32
    %419 = vector.broadcast %cst_275 : f32 to vector<8x8xf32>
    %420 = arith.mulf %418, %419 : vector<8x8xf32>
    %cst_276 = arith.constant dense<0xFF800000> : vector<8xf32>
    %421 = vector.multi_reduction <maximumf>, %420, %cst_276 [1] : vector<8x8xf32> to vector<8xf32>
    %422 = vector.shape_cast %421 : vector<8xf32> to vector<8x1xf32>
    %423 = vector.broadcast %422 : vector<8x1xf32> to vector<8x8xf32>
    %424 = arith.subf %420, %423 : vector<8x8xf32>
    %425 = math.exp %424 : vector<8x8xf32>
    %cst_277 = arith.constant dense<0.000000e+00> : vector<8xf32>
    %426 = vector.multi_reduction <add>, %425, %cst_277 [1] : vector<8x8xf32> to vector<8xf32>
    %427 = vector.shape_cast %426 : vector<8xf32> to vector<8x1xf32>
    %428 = tpu.reciprocal %427 {approx = true} : vector<8x1xf32> -> vector<8x1xf32>
    %429 = vector.broadcast %428 : vector<8x1xf32> to vector<8x8xf32>
    %430 = arith.mulf %425, %429 : vector<8x8xf32>
    %cst_278 = arith.constant dense<0.000000e+00> : vector<8x8xf32>
    %431 = tpu.matmul %430, %359, %cst_278 {dimension_numbers = #tpu.dot_dimension_numbers<[1], [0], [0], [1], [0, 0, 1, 1], [], []>} : vector<8x8xf32>, vector<8x8xf32>, vector<8x8xf32> -> vector<8x8xf32>
    %c0_279 = arith.constant 0 : index
    %c16_280 = arith.constant 16 : index
    %432 = vector.load %arg16[%c0_279, %c16_280] : memref<16x32xf32, #tpu.memory_space<vmem>>, vector<8x8xf32>
    tpu.vector_store %arg16[%c0_279, %c16_280], %431 {strides = array<i32>} : memref<16x32xf32, #tpu.memory_space<vmem>>, vector<8x8xf32>,
    %c8_281 = arith.constant 8 : index
    %c16_282 = arith.constant 16 : index
    %433 = vector.load %arg13[%c8_281, %c16_282] : memref<16x96xf32, #tpu.memory_space<vmem>>, vector<8x8xf32>
    %c8_283 = arith.constant 8 : index
    %c48_284 = arith.constant 48 : index
    %434 = vector.load %arg13[%c8_283, %c48_284] : memref<16x96xf32, #tpu.memory_space<vmem>>, vector<8x8xf32>
    %c8_285 = arith.constant 8 : index
    %c80_286 = arith.constant 80 : index
    %435 = vector.load %arg13[%c8_285, %c80_286] : memref<16x96xf32, #tpu.memory_space<vmem>>, vector<8x8xf32>
    %436 = vector.broadcast %354 : vector<1x8xf32> to vector<8x8xf32>
    %437 = arith.addf %433, %436 : vector<8x8xf32>
    %cst_287 = arith.constant dense<0.000000e+00> : vector<8x8xf32>
    %438 = tpu.matmul %437, %434, %cst_287 {dimension_numbers = #tpu.dot_dimension_numbers<[1], [1], [0], [0], [0, 0, 1, 0], [], []>} : vector<8x8xf32>, vector<8x8xf32>, vector<8x8xf32> -> vector<8x8xf32>
    %439 = vector.broadcast %355 : vector<1x8xf32> to vector<8x8xf32>
    %440 = arith.addf %433, %439 : vector<8x8xf32>
    %cst_288 = arith.constant dense<0.000000e+00> : vector<8x8xf32>
    %441 = tpu.matmul %440, %356, %cst_288 {dimension_numbers = #tpu.dot_dimension_numbers<[1], [1], [0], [0], [0, 0, 1, 0], [], []>} : vector<8x8xf32>, vector<8x8xf32>, vector<8x8xf32> -> vector<8x8xf32>
    %cst_289 = arith.constant dense<0.000000e+00> : vector<8x8xf32>
    %442 = tpu.matmul %41, %441, %cst_289 {dimension_numbers = #tpu.dot_dimension_numbers<[1], [0], [0], [1], [0, 0, 1, 1], [], []>} : vector<8x8xf32>, vector<8x8xf32>, vector<8x8xf32> -> vector<8x8xf32>
    %c0_290 = arith.constant 0 : index
    %c0_291 = arith.constant 0 : index
    %443 = vector.load %arg15[%c0_290, %c0_291] : memref<8x17xf32, #tpu.memory_space<vmem>>, vector<8x8xf32>
    tpu.vector_store %arg15[%c0_290, %c0_291], %441 {strides = array<i32>} : memref<8x17xf32, #tpu.memory_space<vmem>>, vector<8x8xf32>,
    %c0_292 = arith.constant 0 : index
    %c9_293 = arith.constant 9 : index
    %444 = vector.load %arg15[%c0_292, %c9_293] : memref<8x17xf32, #tpu.memory_space<vmem>>, vector<8x8xf32>
    tpu.vector_store %arg15[%c0_292, %c9_293], %442 {strides = array<i32>} : memref<8x17xf32, #tpu.memory_space<vmem>>, vector<8x8xf32>,
    %cst_294 = arith.constant 0.000000e+00 : f32
    %445 = vector.broadcast %cst_294 : f32 to vector<8x8xf32>
    %c0_295 = arith.constant 0 : index
    %c0_296 = arith.constant 0 : index
    %446 = vector.load %arg15[%c0_295, %c0_296] : memref<8x17xf32, #tpu.memory_space<vmem>>, vector<8x8xf32>
    %c7_i32_297 = arith.constant 7 : i32
    %447 = vector.broadcast %c7_i32_297 : i32 to vector<8x8xi32>
    %448 = arith.cmpi eq, %35, %447 : vector<8x8xi32>
    %cst_298 = arith.constant 0.000000e+00 : f32
    %449 = vector.broadcast %cst_298 : f32 to vector<8x8xf32>
    %450 = arith.select %448, %446, %449 : vector<8x8xi1>, vector<8x8xf32>
    %451 = arith.addf %445, %450 : vector<8x8xf32>
    %c0_299 = arith.constant 0 : index
    %c1_300 = arith.constant 1 : index
    %452 = vector.load %arg15[%c0_299, %c1_300] : memref<8x17xf32, #tpu.memory_space<vmem>>, vector<8x8xf32>
    %c6_i32_301 = arith.constant 6 : i32
    %453 = vector.broadcast %c6_i32_301 : i32 to vector<8x8xi32>
    %454 = arith.cmpi eq, %35, %453 : vector<8x8xi32>
    %cst_302 = arith.constant 0.000000e+00 : f32
    %455 = vector.broadcast %cst_302 : f32 to vector<8x8xf32>
    %456 = arith.select %454, %452, %455 : vector<8x8xi1>, vector<8x8xf32>
    %457 = arith.addf %451, %456 : vector<8x8xf32>
    %c0_303 = arith.constant 0 : index
    %c2_304 = arith.constant 2 : index
    %458 = vector.load %arg15[%c0_303, %c2_304] : memref<8x17xf32, #tpu.memory_space<vmem>>, vector<8x8xf32>
    %c5_i32_305 = arith.constant 5 : i32
    %459 = vector.broadcast %c5_i32_305 : i32 to vector<8x8xi32>
    %460 = arith.cmpi eq, %35, %459 : vector<8x8xi32>
    %cst_306 = arith.constant 0.000000e+00 : f32
    %461 = vector.broadcast %cst_306 : f32 to vector<8x8xf32>
    %462 = arith.select %460, %458, %461 : vector<8x8xi1>, vector<8x8xf32>
    %463 = arith.addf %457, %462 : vector<8x8xf32>
    %c0_307 = arith.constant 0 : index
    %c3_308 = arith.constant 3 : index
    %464 = vector.load %arg15[%c0_307, %c3_308] : memref<8x17xf32, #tpu.memory_space<vmem>>, vector<8x8xf32>
    %c4_i32_309 = arith.constant 4 : i32
    %465 = vector.broadcast %c4_i32_309 : i32 to vector<8x8xi32>
    %466 = arith.cmpi eq, %35, %465 : vector<8x8xi32>
    %cst_310 = arith.constant 0.000000e+00 : f32
    %467 = vector.broadcast %cst_310 : f32 to vector<8x8xf32>
    %468 = arith.select %466, %464, %467 : vector<8x8xi1>, vector<8x8xf32>
    %469 = arith.addf %463, %468 : vector<8x8xf32>
    %c0_311 = arith.constant 0 : index
    %c4_312 = arith.constant 4 : index
    %470 = vector.load %arg15[%c0_311, %c4_312] : memref<8x17xf32, #tpu.memory_space<vmem>>, vector<8x8xf32>
    %c3_i32_313 = arith.constant 3 : i32
    %471 = vector.broadcast %c3_i32_313 : i32 to vector<8x8xi32>
    %472 = arith.cmpi eq, %35, %471 : vector<8x8xi32>
    %cst_314 = arith.constant 0.000000e+00 : f32
    %473 = vector.broadcast %cst_314 : f32 to vector<8x8xf32>
    %474 = arith.select %472, %470, %473 : vector<8x8xi1>, vector<8x8xf32>
    %475 = arith.addf %469, %474 : vector<8x8xf32>
    %c0_315 = arith.constant 0 : index
    %c5_316 = arith.constant 5 : index
    %476 = vector.load %arg15[%c0_315, %c5_316] : memref<8x17xf32, #tpu.memory_space<vmem>>, vector<8x8xf32>
    %c2_i32_317 = arith.constant 2 : i32
    %477 = vector.broadcast %c2_i32_317 : i32 to vector<8x8xi32>
    %478 = arith.cmpi eq, %35, %477 : vector<8x8xi32>
    %cst_318 = arith.constant 0.000000e+00 : f32
    %479 = vector.broadcast %cst_318 : f32 to vector<8x8xf32>
    %480 = arith.select %478, %476, %479 : vector<8x8xi1>, vector<8x8xf32>
    %481 = arith.addf %475, %480 : vector<8x8xf32>
    %c0_319 = arith.constant 0 : index
    %c6_320 = arith.constant 6 : index
    %482 = vector.load %arg15[%c0_319, %c6_320] : memref<8x17xf32, #tpu.memory_space<vmem>>, vector<8x8xf32>
    %c1_i32_321 = arith.constant 1 : i32
    %483 = vector.broadcast %c1_i32_321 : i32 to vector<8x8xi32>
    %484 = arith.cmpi eq, %35, %483 : vector<8x8xi32>
    %cst_322 = arith.constant 0.000000e+00 : f32
    %485 = vector.broadcast %cst_322 : f32 to vector<8x8xf32>
    %486 = arith.select %484, %482, %485 : vector<8x8xi1>, vector<8x8xf32>
    %487 = arith.addf %481, %486 : vector<8x8xf32>
    %c0_323 = arith.constant 0 : index
    %c7_324 = arith.constant 7 : index
    %488 = vector.load %arg15[%c0_323, %c7_324] : memref<8x17xf32, #tpu.memory_space<vmem>>, vector<8x8xf32>
    %c0_i32_325 = arith.constant 0 : i32
    %489 = vector.broadcast %c0_i32_325 : i32 to vector<8x8xi32>
    %490 = arith.cmpi eq, %35, %489 : vector<8x8xi32>
    %cst_326 = arith.constant 0.000000e+00 : f32
    %491 = vector.broadcast %cst_326 : f32 to vector<8x8xf32>
    %492 = arith.select %490, %488, %491 : vector<8x8xi1>, vector<8x8xf32>
    %493 = arith.addf %487, %492 : vector<8x8xf32>
    %494 = arith.addf %438, %493 : vector<8x8xf32>
    %cst_327 = arith.constant 0.176776692 : f32
    %495 = vector.broadcast %cst_327 : f32 to vector<8x8xf32>
    %496 = arith.mulf %494, %495 : vector<8x8xf32>
    %cst_328 = arith.constant dense<0xFF800000> : vector<8xf32>
    %497 = vector.multi_reduction <maximumf>, %496, %cst_328 [1] : vector<8x8xf32> to vector<8xf32>
    %498 = vector.shape_cast %497 : vector<8xf32> to vector<8x1xf32>
    %499 = vector.broadcast %498 : vector<8x1xf32> to vector<8x8xf32>
    %500 = arith.subf %496, %499 : vector<8x8xf32>
    %501 = math.exp %500 : vector<8x8xf32>
    %cst_329 = arith.constant dense<0.000000e+00> : vector<8xf32>
    %502 = vector.multi_reduction <add>, %501, %cst_329 [1] : vector<8x8xf32> to vector<8xf32>
    %503 = vector.shape_cast %502 : vector<8xf32> to vector<8x1xf32>
    %504 = tpu.reciprocal %503 {approx = true} : vector<8x1xf32> -> vector<8x1xf32>
    %505 = vector.broadcast %504 : vector<8x1xf32> to vector<8x8xf32>
    %506 = arith.mulf %501, %505 : vector<8x8xf32>
    %cst_330 = arith.constant dense<0.000000e+00> : vector<8x8xf32>
    %507 = tpu.matmul %506, %435, %cst_330 {dimension_numbers = #tpu.dot_dimension_numbers<[1], [0], [0], [1], [0, 0, 1, 1], [], []>} : vector<8x8xf32>, vector<8x8xf32>, vector<8x8xf32> -> vector<8x8xf32>
    %c8_331 = arith.constant 8 : index
    %c16_332 = arith.constant 16 : index
    %508 = vector.load %arg16[%c8_331, %c16_332] : memref<16x32xf32, #tpu.memory_space<vmem>>, vector<8x8xf32>
    tpu.vector_store %arg16[%c8_331, %c16_332], %507 {strides = array<i32>} : memref<16x32xf32, #tpu.memory_space<vmem>>, vector<8x8xf32>,
    %c0_333 = arith.constant 0 : index
    %c24 = arith.constant 24 : index
    %509 = vector.load %arg8[%c0_333, %c24] : memref<1x32xf32, #tpu.memory_space<vmem>>, vector<1x8xf32>
    %c0_334 = arith.constant 0 : index
    %c24_335 = arith.constant 24 : index
    %510 = vector.load %arg9[%c0_334, %c24_335] : memref<1x32xf32, #tpu.memory_space<vmem>>, vector<1x8xf32>
    %c0_336 = arith.constant 0 : index
    %c24_337 = arith.constant 24 : index
    %511 = vector.load %arg14[%c0_336, %c24_337] : memref<8x32xf32, #tpu.memory_space<vmem>>, vector<8x8xf32>
    %c0_338 = arith.constant 0 : index
    %c24_339 = arith.constant 24 : index
    %512 = vector.load %arg13[%c0_338, %c24_339] : memref<16x96xf32, #tpu.memory_space<vmem>>, vector<8x8xf32>
    %c0_340 = arith.constant 0 : index
    %c56 = arith.constant 56 : index
    %513 = vector.load %arg13[%c0_340, %c56] : memref<16x96xf32, #tpu.memory_space<vmem>>, vector<8x8xf32>
    %c0_341 = arith.constant 0 : index
    %c88 = arith.constant 88 : index
    %514 = vector.load %arg13[%c0_341, %c88] : memref<16x96xf32, #tpu.memory_space<vmem>>, vector<8x8xf32>
    %515 = vector.broadcast %509 : vector<1x8xf32> to vector<8x8xf32>
    %516 = arith.addf %512, %515 : vector<8x8xf32>
    %cst_342 = arith.constant dense<0.000000e+00> : vector<8x8xf32>
    %517 = tpu.matmul %516, %513, %cst_342 {dimension_numbers = #tpu.dot_dimension_numbers<[1], [1], [0], [0], [0, 0, 1, 0], [], []>} : vector<8x8xf32>, vector<8x8xf32>, vector<8x8xf32> -> vector<8x8xf32>
    %518 = vector.broadcast %510 : vector<1x8xf32> to vector<8x8xf32>
    %519 = arith.addf %512, %518 : vector<8x8xf32>
    %cst_343 = arith.constant dense<0.000000e+00> : vector<8x8xf32>
    %520 = tpu.matmul %519, %511, %cst_343 {dimension_numbers = #tpu.dot_dimension_numbers<[1], [1], [0], [0], [0, 0, 1, 0], [], []>} : vector<8x8xf32>, vector<8x8xf32>, vector<8x8xf32> -> vector<8x8xf32>
    %cst_344 = arith.constant dense<0.000000e+00> : vector<8x8xf32>
    %521 = tpu.matmul %41, %520, %cst_344 {dimension_numbers = #tpu.dot_dimension_numbers<[1], [0], [0], [1], [0, 0, 1, 1], [], []>} : vector<8x8xf32>, vector<8x8xf32>, vector<8x8xf32> -> vector<8x8xf32>
    %c0_345 = arith.constant 0 : index
    %c0_346 = arith.constant 0 : index
    %522 = vector.load %arg15[%c0_345, %c0_346] : memref<8x17xf32, #tpu.memory_space<vmem>>, vector<8x8xf32>
    tpu.vector_store %arg15[%c0_345, %c0_346], %520 {strides = array<i32>} : memref<8x17xf32, #tpu.memory_space<vmem>>, vector<8x8xf32>,
    %c0_347 = arith.constant 0 : index
    %c9_348 = arith.constant 9 : index
    %523 = vector.load %arg15[%c0_347, %c9_348] : memref<8x17xf32, #tpu.memory_space<vmem>>, vector<8x8xf32>
    tpu.vector_store %arg15[%c0_347, %c9_348], %521 {strides = array<i32>} : memref<8x17xf32, #tpu.memory_space<vmem>>, vector<8x8xf32>,
    %cst_349 = arith.constant 0.000000e+00 : f32
    %524 = vector.broadcast %cst_349 : f32 to vector<8x8xf32>
    %c0_350 = arith.constant 0 : index
    %c0_351 = arith.constant 0 : index
    %525 = vector.load %arg15[%c0_350, %c0_351] : memref<8x17xf32, #tpu.memory_space<vmem>>, vector<8x8xf32>
    %c7_i32_352 = arith.constant 7 : i32
    %526 = vector.broadcast %c7_i32_352 : i32 to vector<8x8xi32>
    %527 = arith.cmpi eq, %35, %526 : vector<8x8xi32>
    %cst_353 = arith.constant 0.000000e+00 : f32
    %528 = vector.broadcast %cst_353 : f32 to vector<8x8xf32>
    %529 = arith.select %527, %525, %528 : vector<8x8xi1>, vector<8x8xf32>
    %530 = arith.addf %524, %529 : vector<8x8xf32>
    %c0_354 = arith.constant 0 : index
    %c1_355 = arith.constant 1 : index
    %531 = vector.load %arg15[%c0_354, %c1_355] : memref<8x17xf32, #tpu.memory_space<vmem>>, vector<8x8xf32>
    %c6_i32_356 = arith.constant 6 : i32
    %532 = vector.broadcast %c6_i32_356 : i32 to vector<8x8xi32>
    %533 = arith.cmpi eq, %35, %532 : vector<8x8xi32>
    %cst_357 = arith.constant 0.000000e+00 : f32
    %534 = vector.broadcast %cst_357 : f32 to vector<8x8xf32>
    %535 = arith.select %533, %531, %534 : vector<8x8xi1>, vector<8x8xf32>
    %536 = arith.addf %530, %535 : vector<8x8xf32>
    %c0_358 = arith.constant 0 : index
    %c2_359 = arith.constant 2 : index
    %537 = vector.load %arg15[%c0_358, %c2_359] : memref<8x17xf32, #tpu.memory_space<vmem>>, vector<8x8xf32>
    %c5_i32_360 = arith.constant 5 : i32
    %538 = vector.broadcast %c5_i32_360 : i32 to vector<8x8xi32>
    %539 = arith.cmpi eq, %35, %538 : vector<8x8xi32>
    %cst_361 = arith.constant 0.000000e+00 : f32
    %540 = vector.broadcast %cst_361 : f32 to vector<8x8xf32>
    %541 = arith.select %539, %537, %540 : vector<8x8xi1>, vector<8x8xf32>
    %542 = arith.addf %536, %541 : vector<8x8xf32>
    %c0_362 = arith.constant 0 : index
    %c3_363 = arith.constant 3 : index
    %543 = vector.load %arg15[%c0_362, %c3_363] : memref<8x17xf32, #tpu.memory_space<vmem>>, vector<8x8xf32>
    %c4_i32_364 = arith.constant 4 : i32
    %544 = vector.broadcast %c4_i32_364 : i32 to vector<8x8xi32>
    %545 = arith.cmpi eq, %35, %544 : vector<8x8xi32>
    %cst_365 = arith.constant 0.000000e+00 : f32
    %546 = vector.broadcast %cst_365 : f32 to vector<8x8xf32>
    %547 = arith.select %545, %543, %546 : vector<8x8xi1>, vector<8x8xf32>
    %548 = arith.addf %542, %547 : vector<8x8xf32>
    %c0_366 = arith.constant 0 : index
    %c4_367 = arith.constant 4 : index
    %549 = vector.load %arg15[%c0_366, %c4_367] : memref<8x17xf32, #tpu.memory_space<vmem>>, vector<8x8xf32>
    %c3_i32_368 = arith.constant 3 : i32
    %550 = vector.broadcast %c3_i32_368 : i32 to vector<8x8xi32>
    %551 = arith.cmpi eq, %35, %550 : vector<8x8xi32>
    %cst_369 = arith.constant 0.000000e+00 : f32
    %552 = vector.broadcast %cst_369 : f32 to vector<8x8xf32>
    %553 = arith.select %551, %549, %552 : vector<8x8xi1>, vector<8x8xf32>
    %554 = arith.addf %548, %553 : vector<8x8xf32>
    %c0_370 = arith.constant 0 : index
    %c5_371 = arith.constant 5 : index
    %555 = vector.load %arg15[%c0_370, %c5_371] : memref<8x17xf32, #tpu.memory_space<vmem>>, vector<8x8xf32>
    %c2_i32_372 = arith.constant 2 : i32
    %556 = vector.broadcast %c2_i32_372 : i32 to vector<8x8xi32>
    %557 = arith.cmpi eq, %35, %556 : vector<8x8xi32>
    %cst_373 = arith.constant 0.000000e+00 : f32
    %558 = vector.broadcast %cst_373 : f32 to vector<8x8xf32>
    %559 = arith.select %557, %555, %558 : vector<8x8xi1>, vector<8x8xf32>
    %560 = arith.addf %554, %559 : vector<8x8xf32>
    %c0_374 = arith.constant 0 : index
    %c6_375 = arith.constant 6 : index
    %561 = vector.load %arg15[%c0_374, %c6_375] : memref<8x17xf32, #tpu.memory_space<vmem>>, vector<8x8xf32>
    %c1_i32_376 = arith.constant 1 : i32
    %562 = vector.broadcast %c1_i32_376 : i32 to vector<8x8xi32>
    %563 = arith.cmpi eq, %35, %562 : vector<8x8xi32>
    %cst_377 = arith.constant 0.000000e+00 : f32
    %564 = vector.broadcast %cst_377 : f32 to vector<8x8xf32>
    %565 = arith.select %563, %561, %564 : vector<8x8xi1>, vector<8x8xf32>
    %566 = arith.addf %560, %565 : vector<8x8xf32>
    %c0_378 = arith.constant 0 : index
    %c7_379 = arith.constant 7 : index
    %567 = vector.load %arg15[%c0_378, %c7_379] : memref<8x17xf32, #tpu.memory_space<vmem>>, vector<8x8xf32>
    %c0_i32_380 = arith.constant 0 : i32
    %568 = vector.broadcast %c0_i32_380 : i32 to vector<8x8xi32>
    %569 = arith.cmpi eq, %35, %568 : vector<8x8xi32>
    %cst_381 = arith.constant 0.000000e+00 : f32
    %570 = vector.broadcast %cst_381 : f32 to vector<8x8xf32>
    %571 = arith.select %569, %567, %570 : vector<8x8xi1>, vector<8x8xf32>
    %572 = arith.addf %566, %571 : vector<8x8xf32>
    %573 = arith.addf %517, %572 : vector<8x8xf32>
    %cst_382 = arith.constant 0.176776692 : f32
    %574 = vector.broadcast %cst_382 : f32 to vector<8x8xf32>
    %575 = arith.mulf %573, %574 : vector<8x8xf32>
    %cst_383 = arith.constant dense<0xFF800000> : vector<8xf32>
    %576 = vector.multi_reduction <maximumf>, %575, %cst_383 [1] : vector<8x8xf32> to vector<8xf32>
    %577 = vector.shape_cast %576 : vector<8xf32> to vector<8x1xf32>
    %578 = vector.broadcast %577 : vector<8x1xf32> to vector<8x8xf32>
    %579 = arith.subf %575, %578 : vector<8x8xf32>
    %580 = math.exp %579 : vector<8x8xf32>
    %cst_384 = arith.constant dense<0.000000e+00> : vector<8xf32>
    %581 = vector.multi_reduction <add>, %580, %cst_384 [1] : vector<8x8xf32> to vector<8xf32>
    %582 = vector.shape_cast %581 : vector<8xf32> to vector<8x1xf32>
    %583 = tpu.reciprocal %582 {approx = true} : vector<8x1xf32> -> vector<8x1xf32>
    %584 = vector.broadcast %583 : vector<8x1xf32> to vector<8x8xf32>
    %585 = arith.mulf %580, %584 : vector<8x8xf32>
    %cst_385 = arith.constant dense<0.000000e+00> : vector<8x8xf32>
    %586 = tpu.matmul %585, %514, %cst_385 {dimension_numbers = #tpu.dot_dimension_numbers<[1], [0], [0], [1], [0, 0, 1, 1], [], []>} : vector<8x8xf32>, vector<8x8xf32>, vector<8x8xf32> -> vector<8x8xf32>
    %c0_386 = arith.constant 0 : index
    %c24_387 = arith.constant 24 : index
    %587 = vector.load %arg16[%c0_386, %c24_387] : memref<16x32xf32, #tpu.memory_space<vmem>>, vector<8x8xf32>
    tpu.vector_store %arg16[%c0_386, %c24_387], %586 {strides = array<i32>} : memref<16x32xf32, #tpu.memory_space<vmem>>, vector<8x8xf32>,
    %c8_388 = arith.constant 8 : index
    %c24_389 = arith.constant 24 : index
    %588 = vector.load %arg13[%c8_388, %c24_389] : memref<16x96xf32, #tpu.memory_space<vmem>>, vector<8x8xf32>
    %c8_390 = arith.constant 8 : index
    %c56_391 = arith.constant 56 : index
    %589 = vector.load %arg13[%c8_390, %c56_391] : memref<16x96xf32, #tpu.memory_space<vmem>>, vector<8x8xf32>
    %c8_392 = arith.constant 8 : index
    %c88_393 = arith.constant 88 : index
    %590 = vector.load %arg13[%c8_392, %c88_393] : memref<16x96xf32, #tpu.memory_space<vmem>>, vector<8x8xf32>
    %591 = vector.broadcast %509 : vector<1x8xf32> to vector<8x8xf32>
    %592 = arith.addf %588, %591 : vector<8x8xf32>
    %cst_394 = arith.constant dense<0.000000e+00> : vector<8x8xf32>
    %593 = tpu.matmul %592, %589, %cst_394 {dimension_numbers = #tpu.dot_dimension_numbers<[1], [1], [0], [0], [0, 0, 1, 0], [], []>} : vector<8x8xf32>, vector<8x8xf32>, vector<8x8xf32> -> vector<8x8xf32>
    %594 = vector.broadcast %510 : vector<1x8xf32> to vector<8x8xf32>
    %595 = arith.addf %588, %594 : vector<8x8xf32>
    %cst_395 = arith.constant dense<0.000000e+00> : vector<8x8xf32>
    %596 = tpu.matmul %595, %511, %cst_395 {dimension_numbers = #tpu.dot_dimension_numbers<[1], [1], [0], [0], [0, 0, 1, 0], [], []>} : vector<8x8xf32>, vector<8x8xf32>, vector<8x8xf32> -> vector<8x8xf32>
    %cst_396 = arith.constant dense<0.000000e+00> : vector<8x8xf32>
    %597 = tpu.matmul %41, %596, %cst_396 {dimension_numbers = #tpu.dot_dimension_numbers<[1], [0], [0], [1], [0, 0, 1, 1], [], []>} : vector<8x8xf32>, vector<8x8xf32>, vector<8x8xf32> -> vector<8x8xf32>
    %c0_397 = arith.constant 0 : index
    %c0_398 = arith.constant 0 : index
    %598 = vector.load %arg15[%c0_397, %c0_398] : memref<8x17xf32, #tpu.memory_space<vmem>>, vector<8x8xf32>
    tpu.vector_store %arg15[%c0_397, %c0_398], %596 {strides = array<i32>} : memref<8x17xf32, #tpu.memory_space<vmem>>, vector<8x8xf32>,
    %c0_399 = arith.constant 0 : index
    %c9_400 = arith.constant 9 : index
    %599 = vector.load %arg15[%c0_399, %c9_400] : memref<8x17xf32, #tpu.memory_space<vmem>>, vector<8x8xf32>
    tpu.vector_store %arg15[%c0_399, %c9_400], %597 {strides = array<i32>} : memref<8x17xf32, #tpu.memory_space<vmem>>, vector<8x8xf32>,
    %cst_401 = arith.constant 0.000000e+00 : f32
    %600 = vector.broadcast %cst_401 : f32 to vector<8x8xf32>
    %c0_402 = arith.constant 0 : index
    %c0_403 = arith.constant 0 : index
    %601 = vector.load %arg15[%c0_402, %c0_403] : memref<8x17xf32, #tpu.memory_space<vmem>>, vector<8x8xf32>
    %c7_i32_404 = arith.constant 7 : i32
    %602 = vector.broadcast %c7_i32_404 : i32 to vector<8x8xi32>
    %603 = arith.cmpi eq, %35, %602 : vector<8x8xi32>
    %cst_405 = arith.constant 0.000000e+00 : f32
    %604 = vector.broadcast %cst_405 : f32 to vector<8x8xf32>
    %605 = arith.select %603, %601, %604 : vector<8x8xi1>, vector<8x8xf32>
    %606 = arith.addf %600, %605 : vector<8x8xf32>
    %c0_406 = arith.constant 0 : index
    %c1_407 = arith.constant 1 : index
    %607 = vector.load %arg15[%c0_406, %c1_407] : memref<8x17xf32, #tpu.memory_space<vmem>>, vector<8x8xf32>
    %c6_i32_408 = arith.constant 6 : i32
    %608 = vector.broadcast %c6_i32_408 : i32 to vector<8x8xi32>
    %609 = arith.cmpi eq, %35, %608 : vector<8x8xi32>
    %cst_409 = arith.constant 0.000000e+00 : f32
    %610 = vector.broadcast %cst_409 : f32 to vector<8x8xf32>
    %611 = arith.select %609, %607, %610 : vector<8x8xi1>, vector<8x8xf32>
    %612 = arith.addf %606, %611 : vector<8x8xf32>
    %c0_410 = arith.constant 0 : index
    %c2_411 = arith.constant 2 : index
    %613 = vector.load %arg15[%c0_410, %c2_411] : memref<8x17xf32, #tpu.memory_space<vmem>>, vector<8x8xf32>
    %c5_i32_412 = arith.constant 5 : i32
    %614 = vector.broadcast %c5_i32_412 : i32 to vector<8x8xi32>
    %615 = arith.cmpi eq, %35, %614 : vector<8x8xi32>
    %cst_413 = arith.constant 0.000000e+00 : f32
    %616 = vector.broadcast %cst_413 : f32 to vector<8x8xf32>
    %617 = arith.select %615, %613, %616 : vector<8x8xi1>, vector<8x8xf32>
    %618 = arith.addf %612, %617 : vector<8x8xf32>
    %c0_414 = arith.constant 0 : index
    %c3_415 = arith.constant 3 : index
    %619 = vector.load %arg15[%c0_414, %c3_415] : memref<8x17xf32, #tpu.memory_space<vmem>>, vector<8x8xf32>
    %c4_i32_416 = arith.constant 4 : i32
    %620 = vector.broadcast %c4_i32_416 : i32 to vector<8x8xi32>
    %621 = arith.cmpi eq, %35, %620 : vector<8x8xi32>
    %cst_417 = arith.constant 0.000000e+00 : f32
    %622 = vector.broadcast %cst_417 : f32 to vector<8x8xf32>
    %623 = arith.select %621, %619, %622 : vector<8x8xi1>, vector<8x8xf32>
    %624 = arith.addf %618, %623 : vector<8x8xf32>
    %c0_418 = arith.constant 0 : index
    %c4_419 = arith.constant 4 : index
    %625 = vector.load %arg15[%c0_418, %c4_419] : memref<8x17xf32, #tpu.memory_space<vmem>>, vector<8x8xf32>
    %c3_i32_420 = arith.constant 3 : i32
    %626 = vector.broadcast %c3_i32_420 : i32 to vector<8x8xi32>
    %627 = arith.cmpi eq, %35, %626 : vector<8x8xi32>
    %cst_421 = arith.constant 0.000000e+00 : f32
    %628 = vector.broadcast %cst_421 : f32 to vector<8x8xf32>
    %629 = arith.select %627, %625, %628 : vector<8x8xi1>, vector<8x8xf32>
    %630 = arith.addf %624, %629 : vector<8x8xf32>
    %c0_422 = arith.constant 0 : index
    %c5_423 = arith.constant 5 : index
    %631 = vector.load %arg15[%c0_422, %c5_423] : memref<8x17xf32, #tpu.memory_space<vmem>>, vector<8x8xf32>
    %c2_i32_424 = arith.constant 2 : i32
    %632 = vector.broadcast %c2_i32_424 : i32 to vector<8x8xi32>
    %633 = arith.cmpi eq, %35, %632 : vector<8x8xi32>
    %cst_425 = arith.constant 0.000000e+00 : f32
    %634 = vector.broadcast %cst_425 : f32 to vector<8x8xf32>
    %635 = arith.select %633, %631, %634 : vector<8x8xi1>, vector<8x8xf32>
    %636 = arith.addf %630, %635 : vector<8x8xf32>
    %c0_426 = arith.constant 0 : index
    %c6_427 = arith.constant 6 : index
    %637 = vector.load %arg15[%c0_426, %c6_427] : memref<8x17xf32, #tpu.memory_space<vmem>>, vector<8x8xf32>
    %c1_i32_428 = arith.constant 1 : i32
    %638 = vector.broadcast %c1_i32_428 : i32 to vector<8x8xi32>
    %639 = arith.cmpi eq, %35, %638 : vector<8x8xi32>
    %cst_429 = arith.constant 0.000000e+00 : f32
    %640 = vector.broadcast %cst_429 : f32 to vector<8x8xf32>
    %641 = arith.select %639, %637, %640 : vector<8x8xi1>, vector<8x8xf32>
    %642 = arith.addf %636, %641 : vector<8x8xf32>
    %c0_430 = arith.constant 0 : index
    %c7_431 = arith.constant 7 : index
    %643 = vector.load %arg15[%c0_430, %c7_431] : memref<8x17xf32, #tpu.memory_space<vmem>>, vector<8x8xf32>
    %c0_i32_432 = arith.constant 0 : i32
    %644 = vector.broadcast %c0_i32_432 : i32 to vector<8x8xi32>
    %645 = arith.cmpi eq, %35, %644 : vector<8x8xi32>
    %cst_433 = arith.constant 0.000000e+00 : f32
    %646 = vector.broadcast %cst_433 : f32 to vector<8x8xf32>
    %647 = arith.select %645, %643, %646 : vector<8x8xi1>, vector<8x8xf32>
    %648 = arith.addf %642, %647 : vector<8x8xf32>
    %649 = arith.addf %593, %648 : vector<8x8xf32>
    %cst_434 = arith.constant 0.176776692 : f32
    %650 = vector.broadcast %cst_434 : f32 to vector<8x8xf32>
    %651 = arith.mulf %649, %650 : vector<8x8xf32>
    %cst_435 = arith.constant dense<0xFF800000> : vector<8xf32>
    %652 = vector.multi_reduction <maximumf>, %651, %cst_435 [1] : vector<8x8xf32> to vector<8xf32>
    %653 = vector.shape_cast %652 : vector<8xf32> to vector<8x1xf32>
    %654 = vector.broadcast %653 : vector<8x1xf32> to vector<8x8xf32>
    %655 = arith.subf %651, %654 : vector<8x8xf32>
    %656 = math.exp %655 : vector<8x8xf32>
    %cst_436 = arith.constant dense<0.000000e+00> : vector<8xf32>
    %657 = vector.multi_reduction <add>, %656, %cst_436 [1] : vector<8x8xf32> to vector<8xf32>
    %658 = vector.shape_cast %657 : vector<8xf32> to vector<8x1xf32>
    %659 = tpu.reciprocal %658 {approx = true} : vector<8x1xf32> -> vector<8x1xf32>
    %660 = vector.broadcast %659 : vector<8x1xf32> to vector<8x8xf32>
    %661 = arith.mulf %656, %660 : vector<8x8xf32>
    %cst_437 = arith.constant dense<0.000000e+00> : vector<8x8xf32>
    %662 = tpu.matmul %661, %590, %cst_437 {dimension_numbers = #tpu.dot_dimension_numbers<[1], [0], [0], [1], [0, 0, 1, 1], [], []>} : vector<8x8xf32>, vector<8x8xf32>, vector<8x8xf32> -> vector<8x8xf32>
    %c8_438 = arith.constant 8 : index
    %c24_439 = arith.constant 24 : index
    %663 = vector.load %arg16[%c8_438, %c24_439] : memref<16x32xf32, #tpu.memory_space<vmem>>, vector<8x8xf32>
    tpu.vector_store %arg16[%c8_438, %c24_439], %662 {strides = array<i32>} : memref<16x32xf32, #tpu.memory_space<vmem>>, vector<8x8xf32>,
    %c0_440 = arith.constant 0 : index
    %c0_441 = arith.constant 0 : index
    %664 = vector.load %arg16[%c0_440, %c0_441] : memref<16x32xf32, #tpu.memory_space<vmem>>, vector<16x32xf32>
    %c0_442 = arith.constant 0 : index
    %c0_443 = arith.constant 0 : index
    %665 = vector.load %arg10[%c0_442, %c0_443] : memref<32x32xf32, #tpu.memory_space<vmem>>, vector<32x32xf32>
    %cst_444 = arith.constant dense<0.000000e+00> : vector<16x32xf32>
    %666 = tpu.matmul %664, %665, %cst_444 {dimension_numbers = #tpu.dot_dimension_numbers<[1], [0], [0], [1], [0, 0, 1, 1], [], []>} : vector<16x32xf32>, vector<32x32xf32>, vector<16x32xf32> -> vector<16x32xf32>
    %c0_445 = arith.constant 0 : index
    %c0_446 = arith.constant 0 : index
    %667 = vector.load %arg11[%c0_445, %c0_446] : memref<1x32xf32, #tpu.memory_space<vmem>>, vector<1x32xf32>
    %668 = vector.broadcast %667 : vector<1x32xf32> to vector<16x32xf32>
    %669 = arith.addf %666, %668 : vector<16x32xf32>
    %c0_447 = arith.constant 0 : index
    %c0_448 = arith.constant 0 : index
    %670 = vector.load %arg12[%c0_447, %c0_448] : memref<16x32xf32, #tpu.memory_space<vmem>>, vector<16x32xf32>
    tpu.vector_store %arg12[%c0_447, %c0_448], %669 {strides = array<i32>} : memref<16x32xf32, #tpu.memory_space<vmem>>, vector<16x32xf32>,
    return
  }
  func.func @transform_0(%arg0: i32) -> (i32, i32) {
    %c0_i32 = arith.constant 0 : i32
    %c0_i32_0 = arith.constant 0 : i32
    %c0_i32_1 = arith.constant 0 : i32
    return %c0_i32, %c0_i32_0 : i32, i32
  }
  func.func @transform_1(%arg0: i32) -> (i32, i32) {
    %c0_i32 = arith.constant 0 : i32
    %c0_i32_0 = arith.constant 0 : i32
    %c0_i32_1 = arith.constant 0 : i32
    return %c0_i32, %c0_i32_0 : i32, i32
  }
  func.func @transform_2(%arg0: i32) -> (i32, i32) {
    %c0_i32 = arith.constant 0 : i32
    %c0_i32_0 = arith.constant 0 : i32
    %c0_i32_1 = arith.constant 0 : i32
    return %c0_i32, %c0_i32_0 : i32, i32
  }
  func.func @transform_3(%arg0: i32) -> (i32, i32) {
    %c0_i32 = arith.constant 0 : i32
    %c0_i32_0 = arith.constant 0 : i32
    %c0_i32_1 = arith.constant 0 : i32
    return %c0_i32, %c0_i32_0 : i32, i32
  }
  func.func @transform_4(%arg0: i32) -> (i32, i32) {
    %c0_i32 = arith.constant 0 : i32
    %c0_i32_0 = arith.constant 0 : i32
    %c0_i32_1 = arith.constant 0 : i32
    return %c0_i32, %c0_i32_0 : i32, i32
  }
  func.func @transform_5(%arg0: i32) -> (i32, i32) {
    %c0_i32 = arith.constant 0 : i32
    %c0_i32_0 = arith.constant 0 : i32
    %c0_i32_1 = arith.constant 0 : i32
    return %c0_i32, %c0_i32_0 : i32, i32
  }
  func.func @transform_6(%arg0: i32) -> (i32, i32) {
    %c0_i32 = arith.constant 0 : i32
    %c0_i32_0 = arith.constant 0 : i32
    %c0_i32_1 = arith.constant 0 : i32
    return %c0_i32, %c0_i32_0 : i32, i32
  }
  func.func @transform_7(%arg0: i32) -> (i32, i32) {
    %c0_i32 = arith.constant 0 : i32
    %c0_i32_0 = arith.constant 0 : i32
    %c0_i32_1 = arith.constant 0 : i32
    return %c0_i32, %c0_i32_0 : i32, i32
  }
  func.func @transform_8(%arg0: i32) -> (i32, i32) {
    %c0_i32 = arith.constant 0 : i32
    %c0_i32_0 = arith.constant 0 : i32
    %c0_i32_1 = arith.constant 0 : i32
    return %c0_i32, %c0_i32_0 : i32, i32
  }
  func.func @transform_9(%arg0: i32) -> (i32, i32) {
    %c0_i32 = arith.constant 0 : i32
    %c0_i32_0 = arith.constant 0 : i32
    %c0_i32_1 = arith.constant 0 : i32
    return %c0_i32, %c0_i32_0 : i32, i32
  }
  func.func @transform_10(%arg0: i32) -> (i32, i32) {
    %c0_i32 = arith.constant 0 : i32
    %c0_i32_0 = arith.constant 0 : i32
    %c0_i32_1 = arith.constant 0 : i32
    return %c0_i32, %c0_i32_0 : i32, i32
  }
  func.func @transform_11(%arg0: i32) -> (i32, i32) {
    %c0_i32 = arith.constant 0 : i32
    %c0_i32_0 = arith.constant 0 : i32
    %c0_i32_1 = arith.constant 0 : i32
    return %c0_i32, %c0_i32_0 : i32, i32
  }
}

</mosaic_0001>

<llo_original>
// kernel: tpu_custom_call.1
$region0: #{tpu_custom_call.1}
  #allocation0 [shape = 'u32[]', space=smem, size = 0x4, offset = 0x4, fixed_abs, tag = 'smem constant byte address 0x4 - core index']
  #allocation1 [shape = 'u32[144,128]{1,0:T(1,128)}', space=vmem, size = 0x12000, scoped, tag = 'internal scratch']
  #allocation2 [shape = 'f32[16,96]{1,0:T(8,128)}', space=vmem, size = 0x2000, scoped, tag = 'scratch operand']
  #allocation3 [shape = 'f32[8,32]{1,0:T(8,128)}', space=vmem, size = 0x1000, scoped, tag = 'scratch operand']
  #allocation4 [shape = 'f32[8,17]{1,0:T(8,128)}', space=vmem, size = 0x1000, scoped, tag = 'scratch operand']
  #allocation5 [shape = 'f32[16,32]{1,0:T(8,128)}', space=vmem, size = 0x2000, scoped, tag = 'scratch operand']
  %s0 = inlined_call_operand.hbm [shape: f32[16,32], index: 0, kind: input, shape index: {}]
  %s1 = inlined_call_operand.hbm [shape: f32[8,32], index: 1, kind: input, shape index: {}]
  %s2 = inlined_call_operand.vmem [shape: f32[1,32], index: 2, kind: input, shape index: {}]
  %s3 = inlined_call_operand.vmem [shape: f32[1,32], index: 3, kind: input, shape index: {}]
  %s4 = inlined_call_operand.hbm [shape: f32[32,96], index: 4, kind: input, shape index: {}]
  %s5 = inlined_call_operand.hbm [shape: f32[1,96], index: 5, kind: input, shape index: {}]
  %s6 = inlined_call_operand.hbm [shape: f32[32,32], index: 6, kind: input, shape index: {}]
  %s7 = inlined_call_operand.hbm [shape: f32[1,32], index: 7, kind: input, shape index: {}]
  %s8 = inlined_call_operand.hbm [shape: f32[1,32], index: 8, kind: input, shape index: {}]
  %s9 = inlined_call_operand.vmem [shape: f32[32,32], index: 9, kind: input, shape index: {}]
  %s10 = inlined_call_operand.vmem [shape: f32[1,32], index: 10, kind: input, shape index: {}]
  %s11 = inlined_call_operand.hbm [shape: f32[16,32], index: 11, kind: output, shape index: {}]
  %s12 = sld [smem:[#allocation0]]
  $region82: #{tpu_custom_call.1} parent=0
    _
  %s14 = ssub.s32 1, %s12
  %s15 = scalar_select 0, %s14, %s12
  $region1: #{tpu_custom_call.1} parent=0
    #allocation6 [shape = 'u8[8192]{0}', space=vmem, size = 0x2000, scoped, tag = 'input window, operand 0, single buffered']
    #allocation7 [shape = 's32[1]{0}', space=sflag, size = 0x4, scoped, tag = 'scoped memory for tpu_custom_call.1']
    #allocation8 [shape = 's32[1]{0}', space=sflag, size = 0x4, scoped, tag = 'scoped memory for tpu_custom_call.1']
    #allocation9 [shape = 'u8[4096]{0}', space=vmem, size = 0x1000, scoped, tag = 'input window, operand 1, single buffered']
    #allocation10 [shape = 's32[1]{0}', space=sflag, size = 0x4, scoped, tag = 'scoped memory for tpu_custom_call.1']
    #allocation11 [shape = 'u8[16384]{0}', space=vmem, size = 0x4000, scoped, tag = 'input window, operand 4, single buffered']
    #allocation12 [shape = 'u8[512]{0}', space=vmem, size = 0x400, scoped, tag = 'input window, operand 5, single buffered']
    #allocation13 [shape = 's32[1]{0}', space=sflag, size = 0x4, scoped, tag = 'scoped memory for tpu_custom_call.1']
    #allocation14 [shape = 'u8[16384]{0}', space=vmem, size = 0x4000, scoped, tag = 'input window, operand 6, single buffered']
    #allocation15 [shape = 'u8[512]{0}', space=vmem, size = 0x400, scoped, tag = 'input window, operand 7, single buffered']
    #allocation16 [shape = 's32[1]{0}', space=sflag, size = 0x4, scoped, tag = 'scoped memory for tpu_custom_call.1']
    #allocation17 [shape = 'u8[512]{0}', space=vmem, size = 0x400, scoped, tag = 'input window, operand 8, single buffered']
    #allocation18 [shape = 'u8[8192]{0}', space=vmem, size = 0x2000, scoped, tag = 'output window, operand 0, single buffered']
    %16 = vsyncpa [#allocation7], 0
    %17 = vsyncpa [#allocation10], 0
    %18 = vsyncpa [#allocation13], 0
    %19 = vsyncpa [#allocation16], 0
    %20 = vsyncpa [#allocation8], 0
    // Predicated region
    $region2: #{tpu_custom_call.1} parent=1 // pred_check
      _
    $region3: #{tpu_custom_call.1} parent=1 // pred_check_branch
      %22 = sbr.rel (0) target = $region5
    $region4: #{tpu_custom_call.1} parent=1 // pred_region
      %s24 = ssub.s32 256, 256
      %25 = vsyncadd [#allocation7], %s24
      %s26 = sshll.u32 [#allocation6], 4
      %s27 = int_to_ptr.vmem [resolvable:$true] %s26
      %32 = dma.hbm_to_vmem [thread:$0]  %s0, 256, %s27, [#allocation7], 128, 128, 8
    $region5: #{tpu_custom_call.1} parent=1 // pred_fallthru
      _
    // Predicated region
    $region6: #{tpu_custom_call.1} parent=1 // pred_check
      _
    $region7: #{tpu_custom_call.1} parent=1 // pred_check_branch
      %34 = sbr.rel (0) target = $region9
    $region8: #{tpu_custom_call.1} parent=1 // pred_region
      %s36 = ssub.s32 128, 128
      %37 = vsyncadd [#allocation10], %s36
      %s39 = sshll.u32 [#allocation9], 4
      %s40 = int_to_ptr.vmem [resolvable:$true] %s39
      %42 = dma.hbm_to_vmem [thread:$0]  %s1, 128, %s40, [#allocation10]
    $region9: #{tpu_custom_call.1} parent=1 // pred_fallthru
      _
    // Predicated region
    $region10: #{tpu_custom_call.1} parent=1 // pred_check
      _
    $region11: #{tpu_custom_call.1} parent=1 // pred_check_branch
      %44 = sbr.rel (0) target = $region13
    $region12: #{tpu_custom_call.1} parent=1 // pred_region
      _
    $region13: #{tpu_custom_call.1} parent=1 // pred_fallthru
      _
    // Predicated region
    $region14: #{tpu_custom_call.1} parent=1 // pred_check
      _
    $region15: #{tpu_custom_call.1} parent=1 // pred_check_branch
      %46 = sbr.rel (0) target = $region17
    $region16: #{tpu_custom_call.1} parent=1 // pred_region
      _
    $region17: #{tpu_custom_call.1} parent=1 // pred_fallthru
      _
    // Predicated region
    $region18: #{tpu_custom_call.1} parent=1 // pred_check
      _
    $region19: #{tpu_custom_call.1} parent=1 // pred_check_branch
      %48 = sbr.rel (0) target = $region21
    $region20: #{tpu_custom_call.1} parent=1 // pred_region
      %s50 = ssub.s32 512, 512
      %51 = vsyncadd [#allocation10], %s50
      %s52 = sshll.u32 [#allocation11], 4
      %s53 = int_to_ptr.vmem [resolvable:$true] %s52
      %58 = dma.hbm_to_vmem [thread:$0]  %s4, 512, %s53, [#allocation10], 128, 128, 8
    $region21: #{tpu_custom_call.1} parent=1 // pred_fallthru
      _
    // Predicated region
    $region22: #{tpu_custom_call.1} parent=1 // pred_check
      _
    $region23: #{tpu_custom_call.1} parent=1 // pred_check_branch
      %60 = sbr.rel (0) target = $region25
    $region24: #{tpu_custom_call.1} parent=1 // pred_region
      %s62 = ssub.s32 16, 16
      %63 = vsyncadd [#allocation13], %s62
      %s65 = sshll.u32 [#allocation12], 4
      %s66 = int_to_ptr.vmem [resolvable:$true] %s65
      %68 = dma.hbm_to_vmem [thread:$0]  %s5, 16, %s66, [#allocation13]
    $region25: #{tpu_custom_call.1} parent=1 // pred_fallthru
      _
    // Predicated region
    $region26: #{tpu_custom_call.1} parent=1 // pred_check
      _
    $region27: #{tpu_custom_call.1} parent=1 // pred_check_branch
      %70 = sbr.rel (0) target = $region29
    $region28: #{tpu_custom_call.1} parent=1 // pred_region
      %s72 = ssub.s32 512, 512
      %73 = vsyncadd [#allocation13], %s72
      %s74 = sshll.u32 [#allocation14], 4
      %s75 = int_to_ptr.vmem [resolvable:$true] %s74
      %80 = dma.hbm_to_vmem [thread:$0]  %s6, 512, %s75, [#allocation13], 128, 128, 8
    $region29: #{tpu_custom_call.1} parent=1 // pred_fallthru
      _
    // Predicated region
    $region30: #{tpu_custom_call.1} parent=1 // pred_check
      _
    $region31: #{tpu_custom_call.1} parent=1 // pred_check_branch
      %82 = sbr.rel (0) target = $region33
    $region32: #{tpu_custom_call.1} parent=1 // pred_region
      %s84 = ssub.s32 16, 16
      %85 = vsyncadd [#allocation16], %s84
      %s87 = sshll.u32 [#allocation15], 4
      %s88 = int_to_ptr.vmem [resolvable:$true] %s87
      %90 = dma.hbm_to_vmem [thread:$0]  %s7, 16, %s88, [#allocation16]
    $region33: #{tpu_custom_call.1} parent=1 // pred_fallthru
      _
    // Predicated region
    $region34: #{tpu_custom_call.1} parent=1 // pred_check
      _
    $region35: #{tpu_custom_call.1} parent=1 // pred_check_branch
      %92 = sbr.rel (0) target = $region37
    $region36: #{tpu_custom_call.1} parent=1 // pred_region
      %s94 = ssub.s32 16, 16
      %95 = vsyncadd [#allocation16], %s94
      %s97 = sshll.u32 [#allocation17], 4
      %s98 = int_to_ptr.vmem [resolvable:$true] %s97
      %100 = dma.hbm_to_vmem [thread:$0]  %s8, 16, %s98, [#allocation16]
    $region37: #{tpu_custom_call.1} parent=1 // pred_fallthru
      _
    // Predicated region
    $region38: #{tpu_custom_call.1} parent=1 // pred_check
      _
    $region39: #{tpu_custom_call.1} parent=1 // pred_check_branch
      %102 = sbr.rel (0) target = $region41
    $region40: #{tpu_custom_call.1} parent=1 // pred_region
      _
    $region41: #{tpu_custom_call.1} parent=1 // pred_fallthru
      _
    // Predicated region
    $region42: #{tpu_custom_call.1} parent=1 // pred_check
      _
    $region43: #{tpu_custom_call.1} parent=1 // pred_check_branch
      %104 = sbr.rel (0) target = $region45
    $region44: #{tpu_custom_call.1} parent=1 // pred_region
      _
    $region45: #{tpu_custom_call.1} parent=1 // pred_fallthru
      _
    // Predicated region
    $region46: #{tpu_custom_call.1} parent=1 // pred_check
      _
    $region47: #{tpu_custom_call.1} parent=1 // pred_check_branch
      %106 = sbr.rel (0) target = $region49
    $region48: #{tpu_custom_call.1} parent=1 // pred_region
      %107 = dma.done [#allocation7], 256
    $region49: #{tpu_custom_call.1} parent=1 // pred_fallthru
      _
    // Predicated region
    $region50: #{tpu_custom_call.1} parent=1 // pred_check
      _
    $region51: #{tpu_custom_call.1} parent=1 // pred_check_branch
      %109 = sbr.rel (0) target = $region53
    $region52: #{tpu_custom_call.1} parent=1 // pred_region
      %110 = dma.done [#allocation10], 128
    $region53: #{tpu_custom_call.1} parent=1 // pred_fallthru
      _
    // Predicated region
    $region54: #{tpu_custom_call.1} parent=1 // pred_check
      _
    $region55: #{tpu_custom_call.1} parent=1 // pred_check_branch
      %112 = sbr.rel (0) target = $region57
    $region56: #{tpu_custom_call.1} parent=1 // pred_region
      %113 = dma.done [#allocation10], 512
    $region57: #{tpu_custom_call.1} parent=1 // pred_fallthru
      _
    // Predicated region
    $region58: #{tpu_custom_call.1} parent=1 // pred_check
      _
    $region59: #{tpu_custom_call.1} parent=1 // pred_check_branch
      %115 = sbr.rel (0) target = $region61
    $region60: #{tpu_custom_call.1} parent=1 // pred_region
      %116 = dma.done [#allocation13], 16
    $region61: #{tpu_custom_call.1} parent=1 // pred_fallthru
      _
    // Predicated region
    $region62: #{tpu_custom_call.1} parent=1 // pred_check
      _
    $region63: #{tpu_custom_call.1} parent=1 // pred_check_branch
      %118 = sbr.rel (0) target = $region65
    $region64: #{tpu_custom_call.1} parent=1 // pred_region
      %119 = dma.done [#allocation13], 512
    $region65: #{tpu_custom_call.1} parent=1 // pred_fallthru
      _
    // Predicated region
    $region66: #{tpu_custom_call.1} parent=1 // pred_check
      _
    $region67: #{tpu_custom_call.1} parent=1 // pred_check_branch
      %121 = sbr.rel (0) target = $region69
    $region68: #{tpu_custom_call.1} parent=1 // pred_region
      %122 = dma.done [#allocation16], 16
    $region69: #{tpu_custom_call.1} parent=1 // pred_fallthru
      _
    // Predicated region
    $region70: #{tpu_custom_call.1} parent=1 // pred_check
      _
    $region71: #{tpu_custom_call.1} parent=1 // pred_check_branch
      %124 = sbr.rel (0) target = $region73
    $region72: #{tpu_custom_call.1} parent=1 // pred_region
      %125 = dma.done [#allocation16], 16
    $region73: #{tpu_custom_call.1} parent=1 // pred_fallthru
      _
    %v126 = vld [vmem:[#allocation6] sm:$0xff]
    %v127 = vld [vmem:[#allocation6 + $0x8] sm:$0xff]
    %vm128 = vcmask 261120
    %v129 = vsel %vm128, %v126, 0.0
    %130 = vadd.xlane.f32.xlu0 %v129
    %v131 = vpop.xlane.xlu0 %130
    %v132 = vsel %vm128, %v127, 0.0
    %133 = vadd.xlane.f32.xlu0 %v132
    %v134 = vpop.xlane.xlu0 %133
    %v135 = vrcp.pop 32.0
    %v136 = vmul.f32 %v131, %v135
    %v137 = vmul.f32 %v134, %v135
    %v138 = vsub.f32 %v126, %v136
    %v139 = vsub.f32 %v127, %v137
    %v140 = vmul.f32 %v138, %v138
    %v141 = vmul.f32 %v139, %v139
    %v142 = vsel %vm128, %v140, 0.0
    %143 = vadd.xlane.f32.xlu0 %v142
    %v144 = vpop.xlane.xlu0 %143
    %v145 = vsel %vm128, %v141, 0.0
    %146 = vadd.xlane.f32.xlu0 %v145
    %v147 = vpop.xlane.xlu0 %146
    %v148 = vmul.f32 %v144, %v135
    %v149 = vmul.f32 %v147, %v135
    %v150 = vadd.f32 %v148, 6.1e-05
    %v151 = vadd.f32 %v149, 6.1e-05
    %v152 = vrsqrt.pop %v150
    %v153 = vrsqrt.pop %v151
    %v154 = vmul.f32 %v138, %v152
    %v155 = vmul.f32 %v139, %v153
    %v156 = vld [vmem:[%s2] sm:$0x1]
    %v158 = vlaneseq
    %v159 = vshrl.u32 %v158, 7
    %v160 = vsub.s32 0, %v159
    %v161 = vrot.slane %v156, %v160
    %v163 = vmul.f32 %v154, %v161
    %v164 = vmul.f32 %v155, %v161
    %v165 = vld [vmem:[%s3] sm:$0x1]
    %v167 = vlaneseq
    %v168 = vshrl.u32 %v167, 7
    %v169 = vsub.s32 0, %v168
    %v170 = vrot.slane %v165, %v169
    %v172 = vadd.f32 %v163, %v170
    %v173 = vadd.f32 %v164, %v170
    %v174 = vld [vmem:[#allocation11] sm:$0xff]
    %v175 = vld [vmem:[#allocation11 + $0x8] sm:$0xff]
    %v176 = vld [vmem:[#allocation11 + $0x10] sm:$0xff]
    %v177 = vld [vmem:[#allocation11 + $0x18] sm:$0xff]
    %v178 = vld [vmem:[#allocation12] sm:$0x1]
    %v180 = vlaneseq
    %v181 = vshrl.u32 %v180, 7
    %v182 = vsub.s32 0, %v181
    %v183 = vrot.slane %v178, %v182
    %v186 = vsel %vm128, %v172, 0
    %v189 = vsel %vm128, %v173, 0
    %191 = vmatprep.subr.mxu0 0.0
    %192 = vmatpush1.msra.mxu0 %v174
    %193 = vmatprep.subr.mxu0 0.0
    %194 = vmatpush1.msra.mxu0 %v175
    %195 = vmatprep.subr.mxu0 0.0
    %196 = vmatpush1.msra.mxu0 %v176
    %197 = vmatprep.subr.mxu0 0.0
    %198 = vmatpush1.msra.mxu0 %v177
    %199 = vmatprep.subr.mxu0 0.0
    %200 = vmatpush1.msra.mxu0 0.0
    %201 = vmatprep.subr.mxu0 0.0
    %202 = vmatpush1.msra.mxu0 0.0
    %203 = vmatprep.subr.mxu0 0.0
    %204 = vmatpush1.msra.mxu0 0.0
    %205 = vmatprep.subr.mxu0 0.0
    %206 = vmatpush1.msra.mxu0 0.0
    %207 = vmatprep.subr.mxu0 0.0
    %208 = vmatpush1.msra.mxu0 0.0
    %209 = vmatprep.subr.mxu0 0.0
    %210 = vmatpush1.msra.mxu0 0.0
    %211 = vmatprep.subr.mxu0 0.0
    %212 = vmatpush1.msra.mxu0 0.0
    %213 = vmatprep.subr.mxu0 0.0
    %214 = vmatpush1.msra.mxu0 0.0
    %215 = vmatprep.subr.mxu0 0.0
    %216 = vmatpush1.msra.mxu0 0.0
    %217 = vmatprep.subr.mxu0 0.0
    %218 = vmatpush1.msra.mxu0 0.0
    %219 = vmatprep.subr.mxu0 0.0
    %220 = vmatpush1.msra.mxu0 0.0
    %221 = vmatprep.subr.mxu0 0.0
    %222 = vmatpush1.msra.mxu0 0.0
    %223 = vmatprep.subr.mxu0 0.0
    %224 = vmatpush1.msra.mxu0 0.0
    %225 = vmatprep.subr.mxu0 0.0
    %226 = vmatpush1.msra.mxu0 0.0
    %227 = vmatprep.subr.mxu0 0.0
    %228 = vmatpush1.msra.mxu0 0.0
    %229 = vmatprep.subr.mxu0 0.0
    %230 = vmatpush1.msra.mxu0 0.0
    %231 = vmatprep.subr.mxu0 0.0
    %232 = vmatpush1.msra.mxu0 0.0
    %233 = vmatprep.subr.mxu0 0.0
    %234 = vmatpush1.msra.mxu0 0.0
    %235 = vmatprep.subr.mxu0 0.0
    %236 = vmatpush1.msra.mxu0 0.0
    %237 = vmatprep.subr.mxu0 0.0
    %238 = vmatpush1.msra.mxu0 0.0
    %239 = vmatprep.subr.mxu0 0.0
    %240 = vmatpush1.msra.mxu0 0.0
    %241 = vmatprep.subr.mxu0 0.0
    %242 = vmatpush1.msra.mxu0 0.0
    %243 = vmatprep.subr.mxu0 0.0
    %244 = vmatpush1.msra.mxu0 0.0
    %245 = vmatprep.subr.mxu0 0.0
    %246 = vmatpush1.msra.mxu0 0.0
    %247 = vmatprep.subr.mxu0 0.0
    %248 = vmatpush1.msra.mxu0 0.0
    %249 = vmatprep.subr.mxu0 0.0
    %250 = vmatpush1.msra.mxu0 0.0
    %251 = vmatprep.subr.mxu0 0.0
    %252 = vmatpush1.msra.mxu0 0.0
    %253 = vmatprep.subr.mxu0 0.0
    %254 = vmatpush1.msra.mxu0 0.0
    %255 = vmatprep.mubr.f32.mxu0 0.0
    %256 = vmatmul.mubr.f32.gmra.mrb[0].mxu0 %v186
    %v257 = vpop.f32.mrb[0].mxu0
    %v258 = vadd.f32 %v183, %v257
    %v259 = vpop.f32.mrb[0].mxu0
    %260 = vmatprep.mubr.f32.mxu0 0.0
    %261 = vmatmul.mubr.f32.gmra.mrb[0].mxu0 %v189
    %v262 = vpop.f32.mrb[0].mxu0
    %v263 = vadd.f32 %v183, %v262
    %v264 = vpop.f32.mrb[0].mxu0
    %265 = vdwg.mxu0
    %vm266 = vcmask 785408
    %267 = vst.msk [vmem:[#allocation2] sm:$0xff] %vm266, %v258
    %268 = vst.msk [vmem:[#allocation2 + $0x8] sm:$0xff] %vm266, %v263
    %v269 = vld [vmem:[#allocation9] sm:$0xff]
    %v270 = vld [vmem:[#allocation14] sm:$0xff]
    %v271 = vld [vmem:[#allocation14 + $0x8] sm:$0xff]
    %v272 = vld [vmem:[#allocation14 + $0x10] sm:$0xff]
    %v273 = vld [vmem:[#allocation14 + $0x18] sm:$0xff]
    %v275 = vsel %vm128, %v269, 0
    %277 = vmatprep.subr.mxu0 0.0
    %278 = vmatpush1.msra.mxu0 %v270
    %279 = vmatprep.subr.mxu0 0.0
    %280 = vmatpush1.msra.mxu0 %v271
    %281 = vmatprep.subr.mxu0 0.0
    %282 = vmatpush1.msra.mxu0 %v272
    %283 = vmatprep.subr.mxu0 0.0
    %284 = vmatpush1.msra.mxu0 %v273
    %285 = vmatprep.subr.mxu0 0.0
    %286 = vmatpush1.msra.mxu0 0.0
    %287 = vmatprep.subr.mxu0 0.0
    %288 = vmatpush1.msra.mxu0 0.0
    %289 = vmatprep.subr.mxu0 0.0
    %290 = vmatpush1.msra.mxu0 0.0
    %291 = vmatprep.subr.mxu0 0.0
    %292 = vmatpush1.msra.mxu0 0.0
    %293 = vmatprep.subr.mxu0 0.0
    %294 = vmatpush1.msra.mxu0 0.0
    %295 = vmatprep.subr.mxu0 0.0
    %296 = vmatpush1.msra.mxu0 0.0
    %297 = vmatprep.subr.mxu0 0.0
    %298 = vmatpush1.msra.mxu0 0.0
    %299 = vmatprep.subr.mxu0 0.0
    %300 = vmatpush1.msra.mxu0 0.0
    %301 = vmatprep.subr.mxu0 0.0
    %302 = vmatpush1.msra.mxu0 0.0
    %303 = vmatprep.subr.mxu0 0.0
    %304 = vmatpush1.msra.mxu0 0.0
    %305 = vmatprep.subr.mxu0 0.0
    %306 = vmatpush1.msra.mxu0 0.0
    %307 = vmatprep.subr.mxu0 0.0
    %308 = vmatpush1.msra.mxu0 0.0
    %309 = vmatprep.subr.mxu0 0.0
    %310 = vmatpush1.msra.mxu0 0.0
    %311 = vmatprep.subr.mxu0 0.0
    %312 = vmatpush1.msra.mxu0 0.0
    %313 = vmatprep.subr.mxu0 0.0
    %314 = vmatpush1.msra.mxu0 0.0
    %315 = vmatprep.subr.mxu0 0.0
    %316 = vmatpush1.msra.mxu0 0.0
    %317 = vmatprep.subr.mxu0 0.0
    %318 = vmatpush1.msra.mxu0 0.0
    %319 = vmatprep.subr.mxu0 0.0
    %320 = vmatpush1.msra.mxu0 0.0
    %321 = vmatprep.subr.mxu0 0.0
    %322 = vmatpush1.msra.mxu0 0.0
    %323 = vmatprep.subr.mxu0 0.0
    %324 = vmatpush1.msra.mxu0 0.0
    %325 = vmatprep.subr.mxu0 0.0
    %326 = vmatpush1.msra.mxu0 0.0
    %327 = vmatprep.subr.mxu0 0.0
    %328 = vmatpush1.msra.mxu0 0.0
    %329 = vmatprep.subr.mxu0 0.0
    %330 = vmatpush1.msra.mxu0 0.0
    %331 = vmatprep.subr.mxu0 0.0
    %332 = vmatpush1.msra.mxu0 0.0
    %333 = vmatprep.subr.mxu0 0.0
    %334 = vmatpush1.msra.mxu0 0.0
    %335 = vmatprep.subr.mxu0 0.0
    %336 = vmatpush1.msra.mxu0 0.0
    %337 = vmatprep.subr.mxu0 0.0
    %338 = vmatpush1.msra.mxu0 0.0
    %339 = vmatprep.subr.mxu0 0.0
    %340 = vmatpush1.msra.mxu0 0.0
    %341 = vmatprep.mubr.f32.mxu0 0.0
    %342 = vmatmul.mubr.f32.gmra.mrb[0].mxu0 %v275
    %v343 = vpop.f32.mrb[0].mxu0
    %v344 = vadd.f32 0.0, %v343
    %v345 = vpop.f32.mrb[0].mxu0
    %346 = vdwg.mxu0
    %347 = vst.msk [vmem:[#allocation3] sm:$0xff] %vm128, %v344
    %v348 = vlaneseq
    %v349 = vshrl.u32 %v348, 7
    %v350 = vlaneseq
    %v351 = vand.u32 %v350, 127
    %v352 = vadd.s32 %v349, 1
    %vm353 = vcmp.eq.s32.totalorder %v351, %v352
    %v354 = vsel %vm353, 1, 0
    %v355 = vcvt.s32.f32 %v354
    %vm356 = vcmask 72768
    %357 = vst.msk [vmem:[#allocation4] sm:$0xff] %vm356, 0.0
    %v358 = vld [vmem:[#allocation15] sm:$0x1]
    %v359 = vld [vmem:[#allocation17] sm:$0x1]
    %v360 = vld [vmem:[#allocation3] sm:$0xff]
    %v361 = vld [vmem:[#allocation2] sm:$0xff]
    %v363 = vlaneseq
    %v364 = vshrl.u32 %v363, 7
    %v365 = vsub.s32 0, %v364
    %v366 = vrot.slane %v358, %v365
    %v368 = vadd.f32 %v361, %v366
    %v370 = vlaneseq
    %v371 = vshrl.u32 %v370, 7
    %v372 = vsub.s32 0, %v371
    %v373 = vrot.slane %v359, %v372
    %v375 = vadd.f32 %v361, %v373
    %vm376 = vcmask 64512
    %v378 = vsel %vm376, %v375, 0
    %v381 = vsel %vm376, %v360, 0
    %383 = vmatprep.subr.mxu0 0.0
    %384 = vmatpush1.xpose.msra.mxu0 %v381
    %385 = vmatprep.subr.mxu0 0.0
    %386 = vmatpush1.xpose.msra.mxu0 0.0
    %387 = vmatprep.subr.mxu0 0.0
    %388 = vmatpush1.xpose.msra.mxu0 0.0
    %389 = vmatprep.subr.mxu0 0.0
    %390 = vmatpush1.xpose.msra.mxu0 0.0
    %391 = vmatprep.subr.mxu0 0.0
    %392 = vmatpush1.xpose.msra.mxu0 0.0
    %393 = vmatprep.subr.mxu0 0.0
    %394 = vmatpush1.xpose.msra.mxu0 0.0
    %395 = vmatprep.subr.mxu0 0.0
    %396 = vmatpush1.xpose.msra.mxu0 0.0
    %397 = vmatprep.subr.mxu0 0.0
    %398 = vmatpush1.xpose.msra.mxu0 0.0
    %399 = vmatprep.subr.mxu0 0.0
    %400 = vmatpush1.xpose.msra.mxu0 0.0
    %401 = vmatprep.subr.mxu0 0.0
    %402 = vmatpush1.xpose.msra.mxu0 0.0
    %403 = vmatprep.subr.mxu0 0.0
    %404 = vmatpush1.xpose.msra.mxu0 0.0
    %405 = vmatprep.subr.mxu0 0.0
    %406 = vmatpush1.xpose.msra.mxu0 0.0
    %407 = vmatprep.subr.mxu0 0.0
    %408 = vmatpush1.xpose.msra.mxu0 0.0
    %409 = vmatprep.subr.mxu0 0.0
    %410 = vmatpush1.xpose.msra.mxu0 0.0
    %411 = vmatprep.subr.mxu0 0.0
    %412 = vmatpush1.xpose.msra.mxu0 0.0
    %413 = vmatprep.subr.mxu0 0.0
    %414 = vmatpush1.xpose.msra.mxu0 0.0
    %415 = vmatprep.subr.mxu0 0.0
    %416 = vmatpush1.xpose.msra.mxu0 0.0
    %417 = vmatprep.subr.mxu0 0.0
    %418 = vmatpush1.xpose.msra.mxu0 0.0
    %419 = vmatprep.subr.mxu0 0.0
    %420 = vmatpush1.xpose.msra.mxu0 0.0
    %421 = vmatprep.subr.mxu0 0.0
    %422 = vmatpush1.xpose.msra.mxu0 0.0
    %423 = vmatprep.subr.mxu0 0.0
    %424 = vmatpush1.xpose.msra.mxu0 0.0
    %425 = vmatprep.subr.mxu0 0.0
    %426 = vmatpush1.xpose.msra.mxu0 0.0
    %427 = vmatprep.subr.mxu0 0.0
    %428 = vmatpush1.xpose.msra.mxu0 0.0
    %429 = vmatprep.subr.mxu0 0.0
    %430 = vmatpush1.xpose.msra.mxu0 0.0
    %431 = vmatprep.subr.mxu0 0.0
    %432 = vmatpush1.xpose.msra.mxu0 0.0
    %433 = vmatprep.subr.mxu0 0.0
    %434 = vmatpush1.xpose.msra.mxu0 0.0
    %435 = vmatprep.subr.mxu0 0.0
    %436 = vmatpush1.xpose.msra.mxu0 0.0
    %437 = vmatprep.subr.mxu0 0.0
    %438 = vmatpush1.xpose.msra.mxu0 0.0
    %439 = vmatprep.subr.mxu0 0.0
    %440 = vmatpush1.xpose.msra.mxu0 0.0
    %441 = vmatprep.subr.mxu0 0.0
    %442 = vmatpush1.xpose.msra.mxu0 0.0
    %443 = vmatprep.subr.mxu0 0.0
    %444 = vmatpush1.xpose.msra.mxu0 0.0
    %445 = vmatprep.subr.mxu0 0.0
    %446 = vmatpush1.xpose.msra.mxu0 0.0
    %447 = vmatprep.mubr.f32.mxu0 0.0
    %448 = vmatmul.mubr.f32.gmra.mrb[0].mxu0 %v378
    %v449 = vpop.f32.mrb[0].mxu0
    %v450 = vadd.f32 0.0, %v449
    %v451 = vpop.f32.mrb[0].mxu0
    %452 = vdwg.mxu0
    %v454 = vsel %vm376, %v355, 0
    %456 = vmatprep.subr.mxu0 0.0
    %457 = vmatpush1.msra.mxu0 %v450
    %458 = vmatprep.subr.mxu0 0.0
    %459 = vmatpush1.msra.mxu0 0.0
    %460 = vmatprep.subr.mxu0 0.0
    %461 = vmatpush1.msra.mxu0 0.0
    %462 = vmatprep.subr.mxu0 0.0
    %463 = vmatpush1.msra.mxu0 0.0
    %464 = vmatprep.subr.mxu0 0.0
    %465 = vmatpush1.msra.mxu0 0.0
    %466 = vmatprep.subr.mxu0 0.0
    %467 = vmatpush1.msra.mxu0 0.0
    %468 = vmatprep.subr.mxu0 0.0
    %469 = vmatpush1.msra.mxu0 0.0
    %470 = vmatprep.subr.mxu0 0.0
    %471 = vmatpush1.msra.mxu0 0.0
    %472 = vmatprep.subr.mxu0 0.0
    %473 = vmatpush1.msra.mxu0 0.0
    %474 = vmatprep.subr.mxu0 0.0
    %475 = vmatpush1.msra.mxu0 0.0
    %476 = vmatprep.subr.mxu0 0.0
    %477 = vmatpush1.msra.mxu0 0.0
    %478 = vmatprep.subr.mxu0 0.0
    %479 = vmatpush1.msra.mxu0 0.0
    %480 = vmatprep.subr.mxu0 0.0
    %481 = vmatpush1.msra.mxu0 0.0
    %482 = vmatprep.subr.mxu0 0.0
    %483 = vmatpush1.msra.mxu0 0.0
    %484 = vmatprep.subr.mxu0 0.0
    %485 = vmatpush1.msra.mxu0 0.0
    %486 = vmatprep.subr.mxu0 0.0
    %487 = vmatpush1.msra.mxu0 0.0
    %488 = vmatprep.subr.mxu0 0.0
    %489 = vmatpush1.msra.mxu0 0.0
    %490 = vmatprep.subr.mxu0 0.0
    %491 = vmatpush1.msra.mxu0 0.0
    %492 = vmatprep.subr.mxu0 0.0
    %493 = vmatpush1.msra.mxu0 0.0
    %494 = vmatprep.subr.mxu0 0.0
    %495 = vmatpush1.msra.mxu0 0.0
    %496 = vmatprep.subr.mxu0 0.0
    %497 = vmatpush1.msra.mxu0 0.0
    %498 = vmatprep.subr.mxu0 0.0
    %499 = vmatpush1.msra.mxu0 0.0
    %500 = vmatprep.subr.mxu0 0.0
    %501 = vmatpush1.msra.mxu0 0.0
    %502 = vmatprep.subr.mxu0 0.0
    %503 = vmatpush1.msra.mxu0 0.0
    %504 = vmatprep.subr.mxu0 0.0
    %505 = vmatpush1.msra.mxu0 0.0
    %506 = vmatprep.subr.mxu0 0.0
    %507 = vmatpush1.msra.mxu0 0.0
    %508 = vmatprep.subr.mxu0 0.0
    %509 = vmatpush1.msra.mxu0 0.0
    %510 = vmatprep.subr.mxu0 0.0
    %511 = vmatpush1.msra.mxu0 0.0
    %512 = vmatprep.subr.mxu0 0.0
    %513 = vmatpush1.msra.mxu0 0.0
    %514 = vmatprep.subr.mxu0 0.0
    %515 = vmatpush1.msra.mxu0 0.0
    %516 = vmatprep.subr.mxu0 0.0
    %517 = vmatpush1.msra.mxu0 0.0
    %518 = vmatprep.subr.mxu0 0.0
    %519 = vmatpush1.msra.mxu0 0.0
    %520 = vmatprep.mubr.f32.mxu0 0.0
    %521 = vmatmul.mubr.f32.gmra.mrb[0].mxu0 %v454
    %v522 = vpop.f32.mrb[0].mxu0
    %v523 = vadd.f32 0.0, %v522
    %v524 = vpop.f32.mrb[0].mxu0
    %525 = vdwg.mxu0
    %526 = vst.msk [vmem:[#allocation4] sm:$0xff] %vm376, %v450
    %528 = vrot.lane.b32.xlu0 %v523, 9
    %v529 = vpop.permute.xlu0 %528
    %vm531 = vcmask 138312
    %532 = vst.msk [vmem:[#allocation4] sm:$0xff] %vm531, %v529
    %v533 = vld [vmem:[#allocation4] sm:$0xff]
    %vm534 = vcmp.eq.s32.totalorder %v349, 7
    %v535 = vsel %vm534, %v533, 0.0
    %v536 = vadd.f32 %v535, 0.0
    %vm537 = vcmp.eq.s32.totalorder %v349, 6
    %v538 = vsel %vm537, %v533, 0.0
    %540 = vrot.lane.b32.xlu0 %v538, 127
    %v541 = vpop.permute.xlu0 %540
    %v543 = vadd.f32 %v536, %v541
    %vm544 = vcmp.eq.s32.totalorder %v349, 5
    %v545 = vsel %vm544, %v533, 0.0
    %547 = vrot.lane.b32.xlu0 %v545, 126
    %v548 = vpop.permute.xlu0 %547
    %v550 = vadd.f32 %v543, %v548
    %vm551 = vcmp.eq.s32.totalorder %v349, 4
    %v552 = vsel %vm551, %v533, 0.0
    %554 = vrot.lane.b32.xlu0 %v552, 125
    %v555 = vpop.permute.xlu0 %554
    %v557 = vadd.f32 %v550, %v555
    %vm558 = vcmp.eq.s32.totalorder %v349, 3
    %v559 = vsel %vm558, %v533, 0.0
    %561 = vrot.lane.b32.xlu0 %v559, 124
    %v562 = vpop.permute.xlu0 %561
    %v564 = vadd.f32 %v557, %v562
    %vm565 = vcmp.eq.s32.totalorder %v349, 2
    %v566 = vsel %vm565, %v533, 0.0
    %568 = vrot.lane.b32.xlu0 %v566, 123
    %v569 = vpop.permute.xlu0 %568
    %v571 = vadd.f32 %v564, %v569
    %vm572 = vcmp.eq.s32.totalorder %v349, 1
    %v573 = vsel %vm572, %v533, 0.0
    %575 = vrot.lane.b32.xlu0 %v573, 122
    %v576 = vpop.permute.xlu0 %575
    %v578 = vadd.f32 %v571, %v576
    %vm579 = vcmp.eq.s32.totalorder %v349, 0
    %v580 = vsel %vm579, %v533, 0.0
    %582 = vrot.lane.b32.xlu0 %v580, 121
    %v583 = vpop.permute.xlu0 %582
    %v585 = vadd.f32 %v578, %v583
    %587 = vrot.lane.b32.xlu0 %v361, 96
    %v588 = vpop.permute.xlu0 %587
    %v590 = vsel %vm376, %v368, 0
    %v592 = vsel %vm376, %v588, 0
    %594 = vmatprep.subr.mxu0 0.0
    %595 = vmatpush1.xpose.msra.mxu0 %v592
    %596 = vmatprep.subr.mxu0 0.0
    %597 = vmatpush1.xpose.msra.mxu0 0.0
    %598 = vmatprep.subr.mxu0 0.0
    %599 = vmatpush1.xpose.msra.mxu0 0.0
    %600 = vmatprep.subr.mxu0 0.0
    %601 = vmatpush1.xpose.msra.mxu0 0.0
    %602 = vmatprep.subr.mxu0 0.0
    %603 = vmatpush1.xpose.msra.mxu0 0.0
    %604 = vmatprep.subr.mxu0 0.0
    %605 = vmatpush1.xpose.msra.mxu0 0.0
    %606 = vmatprep.subr.mxu0 0.0
    %607 = vmatpush1.xpose.msra.mxu0 0.0
    %608 = vmatprep.subr.mxu0 0.0
    %609 = vmatpush1.xpose.msra.mxu0 0.0
    %610 = vmatprep.subr.mxu0 0.0
    %611 = vmatpush1.xpose.msra.mxu0 0.0
    %612 = vmatprep.subr.mxu0 0.0
    %613 = vmatpush1.xpose.msra.mxu0 0.0
    %614 = vmatprep.subr.mxu0 0.0
    %615 = vmatpush1.xpose.msra.mxu0 0.0
    %616 = vmatprep.subr.mxu0 0.0
    %617 = vmatpush1.xpose.msra.mxu0 0.0
    %618 = vmatprep.subr.mxu0 0.0
    %619 = vmatpush1.xpose.msra.mxu0 0.0
    %620 = vmatprep.subr.mxu0 0.0
    %621 = vmatpush1.xpose.msra.mxu0 0.0
    %622 = vmatprep.subr.mxu0 0.0
    %623 = vmatpush1.xpose.msra.mxu0 0.0
    %624 = vmatprep.subr.mxu0 0.0
    %625 = vmatpush1.xpose.msra.mxu0 0.0
    %626 = vmatprep.subr.mxu0 0.0
    %627 = vmatpush1.xpose.msra.mxu0 0.0
    %628 = vmatprep.subr.mxu0 0.0
    %629 = vmatpush1.xpose.msra.mxu0 0.0
    %630 = vmatprep.subr.mxu0 0.0
    %631 = vmatpush1.xpose.msra.mxu0 0.0
    %632 = vmatprep.subr.mxu0 0.0
    %633 = vmatpush1.xpose.msra.mxu0 0.0
    %634 = vmatprep.subr.mxu0 0.0
    %635 = vmatpush1.xpose.msra.mxu0 0.0
    %636 = vmatprep.subr.mxu0 0.0
    %637 = vmatpush1.xpose.msra.mxu0 0.0
    %638 = vmatprep.subr.mxu0 0.0
    %639 = vmatpush1.xpose.msra.mxu0 0.0
    %640 = vmatprep.subr.mxu0 0.0
    %641 = vmatpush1.xpose.msra.mxu0 0.0
    %642 = vmatprep.subr.mxu0 0.0
    %643 = vmatpush1.xpose.msra.mxu0 0.0
    %644 = vmatprep.subr.mxu0 0.0
    %645 = vmatpush1.xpose.msra.mxu0 0.0
    %646 = vmatprep.subr.mxu0 0.0
    %647 = vmatpush1.xpose.msra.mxu0 0.0
    %648 = vmatprep.subr.mxu0 0.0
    %649 = vmatpush1.xpose.msra.mxu0 0.0
    %650 = vmatprep.subr.mxu0 0.0
    %651 = vmatpush1.xpose.msra.mxu0 0.0
    %652 = vmatprep.subr.mxu0 0.0
    %653 = vmatpush1.xpose.msra.mxu0 0.0
    %654 = vmatprep.subr.mxu0 0.0
    %655 = vmatpush1.xpose.msra.mxu0 0.0
    %656 = vmatprep.subr.mxu0 0.0
    %657 = vmatpush1.xpose.msra.mxu0 0.0
    %658 = vmatprep.mubr.f32.mxu0 0.0
    %659 = vmatmul.mubr.f32.gmra.mrb[0].mxu0 %v590
    %v660 = vpop.f32.mrb[0].mxu0
    %v661 = vadd.f32 %v585, %v660
    %v662 = vpop.f32.mrb[0].mxu0
    %663 = vdwg.mxu0
    %v664 = vmul.f32 %v661, 0.17677669
    %v665 = vsel %vm376, %v664, -inf
    %666 = vmax.xlane.f32.xlu0 %v665
    %v667 = vpop.xlane.xlu0 %666
    %v668 = vsub.f32 %v664, %v667
    %v669 = vmul.f32 %v668, 1.442695
    %v670 = vpow.pop %v669
    %v671 = vsel %vm376, %v670, 0.0
    %672 = vadd.xlane.f32.xlu0 %v671
    %v673 = vpop.xlane.xlu0 %672
    %v674 = vrcp.pop %v673
    %v675 = vmul.f32 %v670, %v674
    %676 = vrot.lane.b32.xlu0 %v361, 64
    %v677 = vpop.permute.xlu0 %676
    %v680 = vsel %vm376, %v675, 0
    %682 = vmatprep.subr.mxu0 0.0
    %683 = vmatpush1.msra.mxu0 %v677
    %684 = vmatprep.subr.mxu0 0.0
    %685 = vmatpush1.msra.mxu0 0.0
    %686 = vmatprep.subr.mxu0 0.0
    %687 = vmatpush1.msra.mxu0 0.0
    %688 = vmatprep.subr.mxu0 0.0
    %689 = vmatpush1.msra.mxu0 0.0
    %690 = vmatprep.subr.mxu0 0.0
    %691 = vmatpush1.msra.mxu0 0.0
    %692 = vmatprep.subr.mxu0 0.0
    %693 = vmatpush1.msra.mxu0 0.0
    %694 = vmatprep.subr.mxu0 0.0
    %695 = vmatpush1.msra.mxu0 0.0
    %696 = vmatprep.subr.mxu0 0.0
    %697 = vmatpush1.msra.mxu0 0.0
    %698 = vmatprep.subr.mxu0 0.0
    %699 = vmatpush1.msra.mxu0 0.0
    %700 = vmatprep.subr.mxu0 0.0
    %701 = vmatpush1.msra.mxu0 0.0
    %702 = vmatprep.subr.mxu0 0.0
    %703 = vmatpush1.msra.mxu0 0.0
    %704 = vmatprep.subr.mxu0 0.0
    %705 = vmatpush1.msra.mxu0 0.0
    %706 = vmatprep.subr.mxu0 0.0
    %707 = vmatpush1.msra.mxu0 0.0
    %708 = vmatprep.subr.mxu0 0.0
    %709 = vmatpush1.msra.mxu0 0.0
    %710 = vmatprep.subr.mxu0 0.0
    %711 = vmatpush1.msra.mxu0 0.0
    %712 = vmatprep.subr.mxu0 0.0
    %713 = vmatpush1.msra.mxu0 0.0
    %714 = vmatprep.subr.mxu0 0.0
    %715 = vmatpush1.msra.mxu0 0.0
    %716 = vmatprep.subr.mxu0 0.0
    %717 = vmatpush1.msra.mxu0 0.0
    %718 = vmatprep.subr.mxu0 0.0
    %719 = vmatpush1.msra.mxu0 0.0
    %720 = vmatprep.subr.mxu0 0.0
    %721 = vmatpush1.msra.mxu0 0.0
    %722 = vmatprep.subr.mxu0 0.0
    %723 = vmatpush1.msra.mxu0 0.0
    %724 = vmatprep.subr.mxu0 0.0
    %725 = vmatpush1.msra.mxu0 0.0
    %726 = vmatprep.subr.mxu0 0.0
    %727 = vmatpush1.msra.mxu0 0.0
    %728 = vmatprep.subr.mxu0 0.0
    %729 = vmatpush1.msra.mxu0 0.0
    %730 = vmatprep.subr.mxu0 0.0
    %731 = vmatpush1.msra.mxu0 0.0
    %732 = vmatprep.subr.mxu0 0.0
    %733 = vmatpush1.msra.mxu0 0.0
    %734 = vmatprep.subr.mxu0 0.0
    %735 = vmatpush1.msra.mxu0 0.0
    %736 = vmatprep.subr.mxu0 0.0
    %737 = vmatpush1.msra.mxu0 0.0
    %738 = vmatprep.subr.mxu0 0.0
    %739 = vmatpush1.msra.mxu0 0.0
    %740 = vmatprep.subr.mxu0 0.0
    %741 = vmatpush1.msra.mxu0 0.0
    %742 = vmatprep.subr.mxu0 0.0
    %743 = vmatpush1.msra.mxu0 0.0
    %744 = vmatprep.subr.mxu0 0.0
    %745 = vmatpush1.msra.mxu0 0.0
    %746 = vmatprep.mubr.f32.mxu0 0.0
    %747 = vmatmul.mubr.f32.gmra.mrb[0].mxu0 %v680
    %v748 = vpop.f32.mrb[0].mxu0
    %v749 = vadd.f32 0.0, %v748
    %v750 = vpop.f32.mrb[0].mxu0
    %751 = vdwg.mxu0
    %752 = vst.msk [vmem:[#allocation5] sm:$0xff] %vm376, %v749
    %v753 = vld [vmem:[#allocation2 + $0x8] sm:$0xff]
    %v754 = vadd.f32 %v753, %v366
    %v755 = vadd.f32 %v753, %v373
    %v757 = vsel %vm376, %v755, 0
    %759 = vmatprep.subr.mxu0 0.0
    %760 = vmatpush1.xpose.msra.mxu0 %v381
    %761 = vmatprep.subr.mxu0 0.0
    %762 = vmatpush1.xpose.msra.mxu0 0.0
    %763 = vmatprep.subr.mxu0 0.0
    %764 = vmatpush1.xpose.msra.mxu0 0.0
    %765 = vmatprep.subr.mxu0 0.0
    %766 = vmatpush1.xpose.msra.mxu0 0.0
    %767 = vmatprep.subr.mxu0 0.0
    %768 = vmatpush1.xpose.msra.mxu0 0.0
    %769 = vmatprep.subr.mxu0 0.0
    %770 = vmatpush1.xpose.msra.mxu0 0.0
    %771 = vmatprep.subr.mxu0 0.0
    %772 = vmatpush1.xpose.msra.mxu0 0.0
    %773 = vmatprep.subr.mxu0 0.0
    %774 = vmatpush1.xpose.msra.mxu0 0.0
    %775 = vmatprep.subr.mxu0 0.0
    %776 = vmatpush1.xpose.msra.mxu0 0.0
    %777 = vmatprep.subr.mxu0 0.0
    %778 = vmatpush1.xpose.msra.mxu0 0.0
    %779 = vmatprep.subr.mxu0 0.0
    %780 = vmatpush1.xpose.msra.mxu0 0.0
    %781 = vmatprep.subr.mxu0 0.0
    %782 = vmatpush1.xpose.msra.mxu0 0.0
    %783 = vmatprep.subr.mxu0 0.0
    %784 = vmatpush1.xpose.msra.mxu0 0.0
    %785 = vmatprep.subr.mxu0 0.0
    %786 = vmatpush1.xpose.msra.mxu0 0.0
    %787 = vmatprep.subr.mxu0 0.0
    %788 = vmatpush1.xpose.msra.mxu0 0.0
    %789 = vmatprep.subr.mxu0 0.0
    %790 = vmatpush1.xpose.msra.mxu0 0.0
    %791 = vmatprep.subr.mxu0 0.0
    %792 = vmatpush1.xpose.msra.mxu0 0.0
    %793 = vmatprep.subr.mxu0 0.0
    %794 = vmatpush1.xpose.msra.mxu0 0.0
    %795 = vmatprep.subr.mxu0 0.0
    %796 = vmatpush1.xpose.msra.mxu0 0.0
    %797 = vmatprep.subr.mxu0 0.0
    %798 = vmatpush1.xpose.msra.mxu0 0.0
    %799 = vmatprep.subr.mxu0 0.0
    %800 = vmatpush1.xpose.msra.mxu0 0.0
    %801 = vmatprep.subr.mxu0 0.0
    %802 = vmatpush1.xpose.msra.mxu0 0.0
    %803 = vmatprep.subr.mxu0 0.0
    %804 = vmatpush1.xpose.msra.mxu0 0.0
    %805 = vmatprep.subr.mxu0 0.0
    %806 = vmatpush1.xpose.msra.mxu0 0.0
    %807 = vmatprep.subr.mxu0 0.0
    %808 = vmatpush1.xpose.msra.mxu0 0.0
    %809 = vmatprep.subr.mxu0 0.0
    %810 = vmatpush1.xpose.msra.mxu0 0.0
    %811 = vmatprep.subr.mxu0 0.0
    %812 = vmatpush1.xpose.msra.mxu0 0.0
    %813 = vmatprep.subr.mxu0 0.0
    %814 = vmatpush1.xpose.msra.mxu0 0.0
    %815 = vmatprep.subr.mxu0 0.0
    %816 = vmatpush1.xpose.msra.mxu0 0.0
    %817 = vmatprep.subr.mxu0 0.0
    %818 = vmatpush1.xpose.msra.mxu0 0.0
    %819 = vmatprep.subr.mxu0 0.0
    %820 = vmatpush1.xpose.msra.mxu0 0.0
    %821 = vmatprep.subr.mxu0 0.0
    %822 = vmatpush1.xpose.msra.mxu0 0.0
    %823 = vmatprep.mubr.f32.mxu0 0.0
    %824 = vmatmul.mubr.f32.gmra.mrb[0].mxu0 %v757
    %v825 = vpop.f32.mrb[0].mxu0
    %v826 = vadd.f32 0.0, %v825
    %v827 = vpop.f32.mrb[0].mxu0
    %828 = vdwg.mxu0
    %829 = vmatprep.subr.mxu0 0.0
    %830 = vmatpush1.msra.mxu0 %v826
    %831 = vmatprep.subr.mxu0 0.0
    %832 = vmatpush1.msra.mxu0 0.0
    %833 = vmatprep.subr.mxu0 0.0
    %834 = vmatpush1.msra.mxu0 0.0
    %835 = vmatprep.subr.mxu0 0.0
    %836 = vmatpush1.msra.mxu0 0.0
    %837 = vmatprep.subr.mxu0 0.0
    %838 = vmatpush1.msra.mxu0 0.0
    %839 = vmatprep.subr.mxu0 0.0
    %840 = vmatpush1.msra.mxu0 0.0
    %841 = vmatprep.subr.mxu0 0.0
    %842 = vmatpush1.msra.mxu0 0.0
    %843 = vmatprep.subr.mxu0 0.0
    %844 = vmatpush1.msra.mxu0 0.0
    %845 = vmatprep.subr.mxu0 0.0
    %846 = vmatpush1.msra.mxu0 0.0
    %847 = vmatprep.subr.mxu0 0.0
    %848 = vmatpush1.msra.mxu0 0.0
    %849 = vmatprep.subr.mxu0 0.0
    %850 = vmatpush1.msra.mxu0 0.0
    %851 = vmatprep.subr.mxu0 0.0
    %852 = vmatpush1.msra.mxu0 0.0
    %853 = vmatprep.subr.mxu0 0.0
    %854 = vmatpush1.msra.mxu0 0.0
    %855 = vmatprep.subr.mxu0 0.0
    %856 = vmatpush1.msra.mxu0 0.0
    %857 = vmatprep.subr.mxu0 0.0
    %858 = vmatpush1.msra.mxu0 0.0
    %859 = vmatprep.subr.mxu0 0.0
    %860 = vmatpush1.msra.mxu0 0.0
    %861 = vmatprep.subr.mxu0 0.0
    %862 = vmatpush1.msra.mxu0 0.0
    %863 = vmatprep.subr.mxu0 0.0
    %864 = vmatpush1.msra.mxu0 0.0
    %865 = vmatprep.subr.mxu0 0.0
    %866 = vmatpush1.msra.mxu0 0.0
    %867 = vmatprep.subr.mxu0 0.0
    %868 = vmatpush1.msra.mxu0 0.0
    %869 = vmatprep.subr.mxu0 0.0
    %870 = vmatpush1.msra.mxu0 0.0
    %871 = vmatprep.subr.mxu0 0.0
    %872 = vmatpush1.msra.mxu0 0.0
    %873 = vmatprep.subr.mxu0 0.0
    %874 = vmatpush1.msra.mxu0 0.0
    %875 = vmatprep.subr.mxu0 0.0
    %876 = vmatpush1.msra.mxu0 0.0
    %877 = vmatprep.subr.mxu0 0.0
    %878 = vmatpush1.msra.mxu0 0.0
    %879 = vmatprep.subr.mxu0 0.0
    %880 = vmatpush1.msra.mxu0 0.0
    %881 = vmatprep.subr.mxu0 0.0
    %882 = vmatpush1.msra.mxu0 0.0
    %883 = vmatprep.subr.mxu0 0.0
    %884 = vmatpush1.msra.mxu0 0.0
    %885 = vmatprep.subr.mxu0 0.0
    %886 = vmatpush1.msra.mxu0 0.0
    %887 = vmatprep.subr.mxu0 0.0
    %888 = vmatpush1.msra.mxu0 0.0
    %889 = vmatprep.subr.mxu0 0.0
    %890 = vmatpush1.msra.mxu0 0.0
    %891 = vmatprep.subr.mxu0 0.0
    %892 = vmatpush1.msra.mxu0 0.0
    %893 = vmatprep.mubr.f32.mxu0 0.0
    %894 = vmatmul.mubr.f32.gmra.mrb[0].mxu0 %v454
    %v895 = vpop.f32.mrb[0].mxu0
    %v896 = vadd.f32 0.0, %v895
    %v897 = vpop.f32.mrb[0].mxu0
    %898 = vdwg.mxu0
    %899 = vst.msk [vmem:[#allocation4] sm:$0xff] %vm376, %v826
    %901 = vrot.lane.b32.xlu0 %v896, 9
    %v902 = vpop.permute.xlu0 %901
    %904 = vst.msk [vmem:[#allocation4] sm:$0xff] %vm531, %v902
    %v905 = vld [vmem:[#allocation4] sm:$0xff]
    %v906 = vsel %vm534, %v905, 0.0
    %v907 = vadd.f32 %v906, 0.0
    %v908 = vsel %vm537, %v905, 0.0
    %910 = vrot.lane.b32.xlu0 %v908, 127
    %v911 = vpop.permute.xlu0 %910
    %v913 = vadd.f32 %v907, %v911
    %v914 = vsel %vm544, %v905, 0.0
    %916 = vrot.lane.b32.xlu0 %v914, 126
    %v917 = vpop.permute.xlu0 %916
    %v919 = vadd.f32 %v913, %v917
    %v920 = vsel %vm551, %v905, 0.0
    %922 = vrot.lane.b32.xlu0 %v920, 125
    %v923 = vpop.permute.xlu0 %922
    %v925 = vadd.f32 %v919, %v923
    %v926 = vsel %vm558, %v905, 0.0
    %928 = vrot.lane.b32.xlu0 %v926, 124
    %v929 = vpop.permute.xlu0 %928
    %v931 = vadd.f32 %v925, %v929
    %v932 = vsel %vm565, %v905, 0.0
    %934 = vrot.lane.b32.xlu0 %v932, 123
    %v935 = vpop.permute.xlu0 %934
    %v937 = vadd.f32 %v931, %v935
    %v938 = vsel %vm572, %v905, 0.0
    %940 = vrot.lane.b32.xlu0 %v938, 122
    %v941 = vpop.permute.xlu0 %940
    %v943 = vadd.f32 %v937, %v941
    %v944 = vsel %vm579, %v905, 0.0
    %946 = vrot.lane.b32.xlu0 %v944, 121
    %v947 = vpop.permute.xlu0 %946
    %v949 = vadd.f32 %v943, %v947
    %951 = vrot.lane.b32.xlu0 %v753, 96
    %v952 = vpop.permute.xlu0 %951
    %v954 = vsel %vm376, %v754, 0
    %v956 = vsel %vm376, %v952, 0
    %958 = vmatprep.subr.mxu0 0.0
    %959 = vmatpush1.xpose.msra.mxu0 %v956
    %960 = vmatprep.subr.mxu0 0.0
    %961 = vmatpush1.xpose.msra.mxu0 0.0
    %962 = vmatprep.subr.mxu0 0.0
    %963 = vmatpush1.xpose.msra.mxu0 0.0
    %964 = vmatprep.subr.mxu0 0.0
    %965 = vmatpush1.xpose.msra.mxu0 0.0
    %966 = vmatprep.subr.mxu0 0.0
    %967 = vmatpush1.xpose.msra.mxu0 0.0
    %968 = vmatprep.subr.mxu0 0.0
    %969 = vmatpush1.xpose.msra.mxu0 0.0
    %970 = vmatprep.subr.mxu0 0.0
    %971 = vmatpush1.xpose.msra.mxu0 0.0
    %972 = vmatprep.subr.mxu0 0.0
    %973 = vmatpush1.xpose.msra.mxu0 0.0
    %974 = vmatprep.subr.mxu0 0.0
    %975 = vmatpush1.xpose.msra.mxu0 0.0
    %976 = vmatprep.subr.mxu0 0.0
    %977 = vmatpush1.xpose.msra.mxu0 0.0
    %978 = vmatprep.subr.mxu0 0.0
    %979 = vmatpush1.xpose.msra.mxu0 0.0
    %980 = vmatprep.subr.mxu0 0.0
    %981 = vmatpush1.xpose.msra.mxu0 0.0
    %982 = vmatprep.subr.mxu0 0.0
    %983 = vmatpush1.xpose.msra.mxu0 0.0
    %984 = vmatprep.subr.mxu0 0.0
    %985 = vmatpush1.xpose.msra.mxu0 0.0
    %986 = vmatprep.subr.mxu0 0.0
    %987 = vmatpush1.xpose.msra.mxu0 0.0
    %988 = vmatprep.subr.mxu0 0.0
    %989 = vmatpush1.xpose.msra.mxu0 0.0
    %990 = vmatprep.subr.mxu0 0.0
    %991 = vmatpush1.xpose.msra.mxu0 0.0
    %992 = vmatprep.subr.mxu0 0.0
    %993 = vmatpush1.xpose.msra.mxu0 0.0
    %994 = vmatprep.subr.mxu0 0.0
    %995 = vmatpush1.xpose.msra.mxu0 0.0
    %996 = vmatprep.subr.mxu0 0.0
    %997 = vmatpush1.xpose.msra.mxu0 0.0
    %998 = vmatprep.subr.mxu0 0.0
    %999 = vmatpush1.xpose.msra.mxu0 0.0
    %1000 = vmatprep.subr.mxu0 0.0
    %1001 = vmatpush1.xpose.msra.mxu0 0.0
    %1002 = vmatprep.subr.mxu0 0.0
    %1003 = vmatpush1.xpose.msra.mxu0 0.0
    %1004 = vmatprep.subr.mxu0 0.0
    %1005 = vmatpush1.xpose.msra.mxu0 0.0
    %1006 = vmatprep.subr.mxu0 0.0
    %1007 = vmatpush1.xpose.msra.mxu0 0.0
    %1008 = vmatprep.subr.mxu0 0.0
    %1009 = vmatpush1.xpose.msra.mxu0 0.0
    %1010 = vmatprep.subr.mxu0 0.0
    %1011 = vmatpush1.xpose.msra.mxu0 0.0
    %1012 = vmatprep.subr.mxu0 0.0
    %1013 = vmatpush1.xpose.msra.mxu0 0.0
    %1014 = vmatprep.subr.mxu0 0.0
    %1015 = vmatpush1.xpose.msra.mxu0 0.0
    %1016 = vmatprep.subr.mxu0 0.0
    %1017 = vmatpush1.xpose.msra.mxu0 0.0
    %1018 = vmatprep.subr.mxu0 0.0
    %1019 = vmatpush1.xpose.msra.mxu0 0.0
    %1020 = vmatprep.subr.mxu0 0.0
    %1021 = vmatpush1.xpose.msra.mxu0 0.0
    %1022 = vmatprep.mubr.f32.mxu0 0.0
    %1023 = vmatmul.mubr.f32.gmra.mrb[0].mxu0 %v954
    %v1024 = vpop.f32.mrb[0].mxu0
    %v1025 = vadd.f32 %v949, %v1024
    %v1026 = vpop.f32.mrb[0].mxu0
    %1027 = vdwg.mxu0
    %v1028 = vmul.f32 %v1025, 0.17677669
    %v1029 = vsel %vm376, %v1028, -inf
    %1030 = vmax.xlane.f32.xlu0 %v1029
    %v1031 = vpop.xlane.xlu0 %1030
    %v1032 = vsub.f32 %v1028, %v1031
    %v1033 = vmul.f32 %v1032, 1.442695
    %v1034 = vpow.pop %v1033
    %v1035 = vsel %vm376, %v1034, 0.0
    %1036 = vadd.xlane.f32.xlu0 %v1035
    %v1037 = vpop.xlane.xlu0 %1036
    %v1038 = vrcp.pop %v1037
    %v1039 = vmul.f32 %v1034, %v1038
    %1040 = vrot.lane.b32.xlu0 %v753, 64
    %v1041 = vpop.permute.xlu0 %1040
    %v1044 = vsel %vm376, %v1039, 0
    %1046 = vmatprep.subr.mxu0 0.0
    %1047 = vmatpush1.msra.mxu0 %v1041
    %1048 = vmatprep.subr.mxu0 0.0
    %1049 = vmatpush1.msra.mxu0 0.0
    %1050 = vmatprep.subr.mxu0 0.0
    %1051 = vmatpush1.msra.mxu0 0.0
    %1052 = vmatprep.subr.mxu0 0.0
    %1053 = vmatpush1.msra.mxu0 0.0
    %1054 = vmatprep.subr.mxu0 0.0
    %1055 = vmatpush1.msra.mxu0 0.0
    %1056 = vmatprep.subr.mxu0 0.0
    %1057 = vmatpush1.msra.mxu0 0.0
    %1058 = vmatprep.subr.mxu0 0.0
    %1059 = vmatpush1.msra.mxu0 0.0
    %1060 = vmatprep.subr.mxu0 0.0
    %1061 = vmatpush1.msra.mxu0 0.0
    %1062 = vmatprep.subr.mxu0 0.0
    %1063 = vmatpush1.msra.mxu0 0.0
    %1064 = vmatprep.subr.mxu0 0.0
    %1065 = vmatpush1.msra.mxu0 0.0
    %1066 = vmatprep.subr.mxu0 0.0
    %1067 = vmatpush1.msra.mxu0 0.0
    %1068 = vmatprep.subr.mxu0 0.0
    %1069 = vmatpush1.msra.mxu0 0.0
    %1070 = vmatprep.subr.mxu0 0.0
    %1071 = vmatpush1.msra.mxu0 0.0
    %1072 = vmatprep.subr.mxu0 0.0
    %1073 = vmatpush1.msra.mxu0 0.0
    %1074 = vmatprep.subr.mxu0 0.0
    %1075 = vmatpush1.msra.mxu0 0.0
    %1076 = vmatprep.subr.mxu0 0.0
    %1077 = vmatpush1.msra.mxu0 0.0
    %1078 = vmatprep.subr.mxu0 0.0
    %1079 = vmatpush1.msra.mxu0 0.0
    %1080 = vmatprep.subr.mxu0 0.0
    %1081 = vmatpush1.msra.mxu0 0.0
    %1082 = vmatprep.subr.mxu0 0.0
    %1083 = vmatpush1.msra.mxu0 0.0
    %1084 = vmatprep.subr.mxu0 0.0
    %1085 = vmatpush1.msra.mxu0 0.0
    %1086 = vmatprep.subr.mxu0 0.0
    %1087 = vmatpush1.msra.mxu0 0.0
    %1088 = vmatprep.subr.mxu0 0.0
    %1089 = vmatpush1.msra.mxu0 0.0
    %1090 = vmatprep.subr.mxu0 0.0
    %1091 = vmatpush1.msra.mxu0 0.0
    %1092 = vmatprep.subr.mxu0 0.0
    %1093 = vmatpush1.msra.mxu0 0.0
    %1094 = vmatprep.subr.mxu0 0.0
    %1095 = vmatpush1.msra.mxu0 0.0
    %1096 = vmatprep.subr.mxu0 0.0
    %1097 = vmatpush1.msra.mxu0 0.0
    %1098 = vmatprep.subr.mxu0 0.0
    %1099 = vmatpush1.msra.mxu0 0.0
    %1100 = vmatprep.subr.mxu0 0.0
    %1101 = vmatpush1.msra.mxu0 0.0
    %1102 = vmatprep.subr.mxu0 0.0
    %1103 = vmatpush1.msra.mxu0 0.0
    %1104 = vmatprep.subr.mxu0 0.0
    %1105 = vmatpush1.msra.mxu0 0.0
    %1106 = vmatprep.subr.mxu0 0.0
    %1107 = vmatpush1.msra.mxu0 0.0
    %1108 = vmatprep.subr.mxu0 0.0
    %1109 = vmatpush1.msra.mxu0 0.0
    %1110 = vmatprep.mubr.f32.mxu0 0.0
    %1111 = vmatmul.mubr.f32.gmra.mrb[0].mxu0 %v1044
    %v1112 = vpop.f32.mrb[0].mxu0
    %v1113 = vadd.f32 0.0, %v1112
    %v1114 = vpop.f32.mrb[0].mxu0
    %1115 = vdwg.mxu0
    %1116 = vst.msk [vmem:[#allocation5 + $0x8] sm:$0xff] %vm376, %v1113
    %v1117 = vld [vmem:[#allocation15] sm:$0x1]
    %v1118 = vld [vmem:[#allocation17] sm:$0x1]
    %v1119 = vld [vmem:[#allocation3] sm:$0xff]
    %v1120 = vld [vmem:[#allocation2] sm:$0xff]
    %v1122 = vlaneseq
    %v1123 = vshrl.u32 %v1122, 7
    %v1124 = vsub.s32 0, %v1123
    %v1125 = vrot.slane %v1117, %v1124
    %v1127 = vadd.f32 %v1120, %v1125
    %v1129 = vlaneseq
    %v1130 = vshrl.u32 %v1129, 7
    %v1131 = vsub.s32 0, %v1130
    %v1132 = vrot.slane %v1118, %v1131
    %v1134 = vadd.f32 %v1120, %v1132
    %1136 = vrot.lane.b32.xlu0 %v1134, 120
    %v1137 = vpop.permute.xlu0 %1136
    %1139 = vrot.lane.b32.xlu0 %v1119, 120
    %v1140 = vpop.permute.xlu0 %1139
    %v1141 = vsel %vm376, %v1137, 0
    %v1143 = vsel %vm376, %v1140, 0
    %1145 = vmatprep.subr.mxu0 0.0
    %1146 = vmatpush1.xpose.msra.mxu0 %v1143
    %1147 = vmatprep.subr.mxu0 0.0
    %1148 = vmatpush1.xpose.msra.mxu0 0.0
    %1149 = vmatprep.subr.mxu0 0.0
    %1150 = vmatpush1.xpose.msra.mxu0 0.0
    %1151 = vmatprep.subr.mxu0 0.0
    %1152 = vmatpush1.xpose.msra.mxu0 0.0
    %1153 = vmatprep.subr.mxu0 0.0
    %1154 = vmatpush1.xpose.msra.mxu0 0.0
    %1155 = vmatprep.subr.mxu0 0.0
    %1156 = vmatpush1.xpose.msra.mxu0 0.0
    %1157 = vmatprep.subr.mxu0 0.0
    %1158 = vmatpush1.xpose.msra.mxu0 0.0
    %1159 = vmatprep.subr.mxu0 0.0
    %1160 = vmatpush1.xpose.msra.mxu0 0.0
    %1161 = vmatprep.subr.mxu0 0.0
    %1162 = vmatpush1.xpose.msra.mxu0 0.0
    %1163 = vmatprep.subr.mxu0 0.0
    %1164 = vmatpush1.xpose.msra.mxu0 0.0
    %1165 = vmatprep.subr.mxu0 0.0
    %1166 = vmatpush1.xpose.msra.mxu0 0.0
    %1167 = vmatprep.subr.mxu0 0.0
    %1168 = vmatpush1.xpose.msra.mxu0 0.0
    %1169 = vmatprep.subr.mxu0 0.0
    %1170 = vmatpush1.xpose.msra.mxu0 0.0
    %1171 = vmatprep.subr.mxu0 0.0
    %1172 = vmatpush1.xpose.msra.mxu0 0.0
    %1173 = vmatprep.subr.mxu0 0.0
    %1174 = vmatpush1.xpose.msra.mxu0 0.0
    %1175 = vmatprep.subr.mxu0 0.0
    %1176 = vmatpush1.xpose.msra.mxu0 0.0
    %1177 = vmatprep.subr.mxu0 0.0
    %1178 = vmatpush1.xpose.msra.mxu0 0.0
    %1179 = vmatprep.subr.mxu0 0.0
    %1180 = vmatpush1.xpose.msra.mxu0 0.0
    %1181 = vmatprep.subr.mxu0 0.0
    %1182 = vmatpush1.xpose.msra.mxu0 0.0
    %1183 = vmatprep.subr.mxu0 0.0
    %1184 = vmatpush1.xpose.msra.mxu0 0.0
    %1185 = vmatprep.subr.mxu0 0.0
    %1186 = vmatpush1.xpose.msra.mxu0 0.0
    %1187 = vmatprep.subr.mxu0 0.0
    %1188 = vmatpush1.xpose.msra.mxu0 0.0
    %1189 = vmatprep.subr.mxu0 0.0
    %1190 = vmatpush1.xpose.msra.mxu0 0.0
    %1191 = vmatprep.subr.mxu0 0.0
    %1192 = vmatpush1.xpose.msra.mxu0 0.0
    %1193 = vmatprep.subr.mxu0 0.0
    %1194 = vmatpush1.xpose.msra.mxu0 0.0
    %1195 = vmatprep.subr.mxu0 0.0
    %1196 = vmatpush1.xpose.msra.mxu0 0.0
    %1197 = vmatprep.subr.mxu0 0.0
    %1198 = vmatpush1.xpose.msra.mxu0 0.0
    %1199 = vmatprep.subr.mxu0 0.0
    %1200 = vmatpush1.xpose.msra.mxu0 0.0
    %1201 = vmatprep.subr.mxu0 0.0
    %1202 = vmatpush1.xpose.msra.mxu0 0.0
    %1203 = vmatprep.subr.mxu0 0.0
    %1204 = vmatpush1.xpose.msra.mxu0 0.0
    %1205 = vmatprep.subr.mxu0 0.0
    %1206 = vmatpush1.xpose.msra.mxu0 0.0
    %1207 = vmatprep.subr.mxu0 0.0
    %1208 = vmatpush1.xpose.msra.mxu0 0.0
    %1209 = vmatprep.mubr.f32.mxu0 0.0
    %1210 = vmatmul.mubr.f32.gmra.mrb[0].mxu0 %v1141
    %v1211 = vpop.f32.mrb[0].mxu0
    %v1212 = vadd.f32 0.0, %v1211
    %v1213 = vpop.f32.mrb[0].mxu0
    %1214 = vdwg.mxu0
    %1215 = vmatprep.subr.mxu0 0.0
    %1216 = vmatpush1.msra.mxu0 %v1212
    %1217 = vmatprep.subr.mxu0 0.0
    %1218 = vmatpush1.msra.mxu0 0.0
    %1219 = vmatprep.subr.mxu0 0.0
    %1220 = vmatpush1.msra.mxu0 0.0
    %1221 = vmatprep.subr.mxu0 0.0
    %1222 = vmatpush1.msra.mxu0 0.0
    %1223 = vmatprep.subr.mxu0 0.0
    %1224 = vmatpush1.msra.mxu0 0.0
    %1225 = vmatprep.subr.mxu0 0.0
    %1226 = vmatpush1.msra.mxu0 0.0
    %1227 = vmatprep.subr.mxu0 0.0
    %1228 = vmatpush1.msra.mxu0 0.0
    %1229 = vmatprep.subr.mxu0 0.0
    %1230 = vmatpush1.msra.mxu0 0.0
    %1231 = vmatprep.subr.mxu0 0.0
    %1232 = vmatpush1.msra.mxu0 0.0
    %1233 = vmatprep.subr.mxu0 0.0
    %1234 = vmatpush1.msra.mxu0 0.0
    %1235 = vmatprep.subr.mxu0 0.0
    %1236 = vmatpush1.msra.mxu0 0.0
    %1237 = vmatprep.subr.mxu0 0.0
    %1238 = vmatpush1.msra.mxu0 0.0
    %1239 = vmatprep.subr.mxu0 0.0
    %1240 = vmatpush1.msra.mxu0 0.0
    %1241 = vmatprep.subr.mxu0 0.0
    %1242 = vmatpush1.msra.mxu0 0.0
    %1243 = vmatprep.subr.mxu0 0.0
    %1244 = vmatpush1.msra.mxu0 0.0
    %1245 = vmatprep.subr.mxu0 0.0
    %1246 = vmatpush1.msra.mxu0 0.0
    %1247 = vmatprep.subr.mxu0 0.0
    %1248 = vmatpush1.msra.mxu0 0.0
    %1249 = vmatprep.subr.mxu0 0.0
    %1250 = vmatpush1.msra.mxu0 0.0
    %1251 = vmatprep.subr.mxu0 0.0
    %1252 = vmatpush1.msra.mxu0 0.0
    %1253 = vmatprep.subr.mxu0 0.0
    %1254 = vmatpush1.msra.mxu0 0.0
    %1255 = vmatprep.subr.mxu0 0.0
    %1256 = vmatpush1.msra.mxu0 0.0
    %1257 = vmatprep.subr.mxu0 0.0
    %1258 = vmatpush1.msra.mxu0 0.0
    %1259 = vmatprep.subr.mxu0 0.0
    %1260 = vmatpush1.msra.mxu0 0.0
    %1261 = vmatprep.subr.mxu0 0.0
    %1262 = vmatpush1.msra.mxu0 0.0
    %1263 = vmatprep.subr.mxu0 0.0
    %1264 = vmatpush1.msra.mxu0 0.0
    %1265 = vmatprep.subr.mxu0 0.0
    %1266 = vmatpush1.msra.mxu0 0.0
    %1267 = vmatprep.subr.mxu0 0.0
    %1268 = vmatpush1.msra.mxu0 0.0
    %1269 = vmatprep.subr.mxu0 0.0
    %1270 = vmatpush1.msra.mxu0 0.0
    %1271 = vmatprep.subr.mxu0 0.0
    %1272 = vmatpush1.msra.mxu0 0.0
    %1273 = vmatprep.subr.mxu0 0.0
    %1274 = vmatpush1.msra.mxu0 0.0
    %1275 = vmatprep.subr.mxu0 0.0
    %1276 = vmatpush1.msra.mxu0 0.0
    %1277 = vmatprep.subr.mxu0 0.0
    %1278 = vmatpush1.msra.mxu0 0.0
    %1279 = vmatprep.mubr.f32.mxu0 0.0
    %1280 = vmatmul.mubr.f32.gmra.mrb[0].mxu0 %v454
    %v1281 = vpop.f32.mrb[0].mxu0
    %v1282 = vadd.f32 0.0, %v1281
    %v1283 = vpop.f32.mrb[0].mxu0
    %1284 = vdwg.mxu0
    %1285 = vst.msk [vmem:[#allocation4] sm:$0xff] %vm376, %v1212
    %1287 = vrot.lane.b32.xlu0 %v1282, 9
    %v1288 = vpop.permute.xlu0 %1287
    %1290 = vst.msk [vmem:[#allocation4] sm:$0xff] %vm531, %v1288
    %v1291 = vld [vmem:[#allocation4] sm:$0xff]
    %v1292 = vsel %vm534, %v1291, 0.0
    %v1293 = vadd.f32 %v1292, 0.0
    %v1294 = vsel %vm537, %v1291, 0.0
    %1296 = vrot.lane.b32.xlu0 %v1294, 127
    %v1297 = vpop.permute.xlu0 %1296
    %v1299 = vadd.f32 %v1293, %v1297
    %v1300 = vsel %vm544, %v1291, 0.0
    %1302 = vrot.lane.b32.xlu0 %v1300, 126
    %v1303 = vpop.permute.xlu0 %1302
    %v1305 = vadd.f32 %v1299, %v1303
    %v1306 = vsel %vm551, %v1291, 0.0
    %1308 = vrot.lane.b32.xlu0 %v1306, 125
    %v1309 = vpop.permute.xlu0 %1308
    %v1311 = vadd.f32 %v1305, %v1309
    %v1312 = vsel %vm558, %v1291, 0.0
    %1314 = vrot.lane.b32.xlu0 %v1312, 124
    %v1315 = vpop.permute.xlu0 %1314
    %v1317 = vadd.f32 %v1311, %v1315
    %v1318 = vsel %vm565, %v1291, 0.0
    %1320 = vrot.lane.b32.xlu0 %v1318, 123
    %v1321 = vpop.permute.xlu0 %1320
    %v1323 = vadd.f32 %v1317, %v1321
    %v1324 = vsel %vm572, %v1291, 0.0
    %1326 = vrot.lane.b32.xlu0 %v1324, 122
    %v1327 = vpop.permute.xlu0 %1326
    %v1329 = vadd.f32 %v1323, %v1327
    %v1330 = vsel %vm579, %v1291, 0.0
    %1332 = vrot.lane.b32.xlu0 %v1330, 121
    %v1333 = vpop.permute.xlu0 %1332
    %v1335 = vadd.f32 %v1329, %v1333
    %1337 = vrot.lane.b32.xlu0 %v1127, 120
    %v1338 = vpop.permute.xlu0 %1337
    %1340 = vrot.lane.b32.xlu0 %v1120, 88
    %v1341 = vpop.permute.xlu0 %1340
    %v1342 = vsel %vm376, %v1338, 0
    %v1344 = vsel %vm376, %v1341, 0
    %1346 = vmatprep.subr.mxu0 0.0
    %1347 = vmatpush1.xpose.msra.mxu0 %v1344
    %1348 = vmatprep.subr.mxu0 0.0
    %1349 = vmatpush1.xpose.msra.mxu0 0.0
    %1350 = vmatprep.subr.mxu0 0.0
    %1351 = vmatpush1.xpose.msra.mxu0 0.0
    %1352 = vmatprep.subr.mxu0 0.0
    %1353 = vmatpush1.xpose.msra.mxu0 0.0
    %1354 = vmatprep.subr.mxu0 0.0
    %1355 = vmatpush1.xpose.msra.mxu0 0.0
    %1356 = vmatprep.subr.mxu0 0.0
    %1357 = vmatpush1.xpose.msra.mxu0 0.0
    %1358 = vmatprep.subr.mxu0 0.0
    %1359 = vmatpush1.xpose.msra.mxu0 0.0
    %1360 = vmatprep.subr.mxu0 0.0
    %1361 = vmatpush1.xpose.msra.mxu0 0.0
    %1362 = vmatprep.subr.mxu0 0.0
    %1363 = vmatpush1.xpose.msra.mxu0 0.0
    %1364 = vmatprep.subr.mxu0 0.0
    %1365 = vmatpush1.xpose.msra.mxu0 0.0
    %1366 = vmatprep.subr.mxu0 0.0
    %1367 = vmatpush1.xpose.msra.mxu0 0.0
    %1368 = vmatprep.subr.mxu0 0.0
    %1369 = vmatpush1.xpose.msra.mxu0 0.0
    %1370 = vmatprep.subr.mxu0 0.0
    %1371 = vmatpush1.xpose.msra.mxu0 0.0
    %1372 = vmatprep.subr.mxu0 0.0
    %1373 = vmatpush1.xpose.msra.mxu0 0.0
    %1374 = vmatprep.subr.mxu0 0.0
    %1375 = vmatpush1.xpose.msra.mxu0 0.0
    %1376 = vmatprep.subr.mxu0 0.0
    %1377 = vmatpush1.xpose.msra.mxu0 0.0
    %1378 = vmatprep.subr.mxu0 0.0
    %1379 = vmatpush1.xpose.msra.mxu0 0.0
    %1380 = vmatprep.subr.mxu0 0.0
    %1381 = vmatpush1.xpose.msra.mxu0 0.0
    %1382 = vmatprep.subr.mxu0 0.0
    %1383 = vmatpush1.xpose.msra.mxu0 0.0
    %1384 = vmatprep.subr.mxu0 0.0
    %1385 = vmatpush1.xpose.msra.mxu0 0.0
    %1386 = vmatprep.subr.mxu0 0.0
    %1387 = vmatpush1.xpose.msra.mxu0 0.0
    %1388 = vmatprep.subr.mxu0 0.0
    %1389 = vmatpush1.xpose.msra.mxu0 0.0
    %1390 = vmatprep.subr.mxu0 0.0
    %1391 = vmatpush1.xpose.msra.mxu0 0.0
    %1392 = vmatprep.subr.mxu0 0.0
    %1393 = vmatpush1.xpose.msra.mxu0 0.0
    %1394 = vmatprep.subr.mxu0 0.0
    %1395 = vmatpush1.xpose.msra.mxu0 0.0
    %1396 = vmatprep.subr.mxu0 0.0
    %1397 = vmatpush1.xpose.msra.mxu0 0.0
    %1398 = vmatprep.subr.mxu0 0.0
    %1399 = vmatpush1.xpose.msra.mxu0 0.0
    %1400 = vmatprep.subr.mxu0 0.0
    %1401 = vmatpush1.xpose.msra.mxu0 0.0
    %1402 = vmatprep.subr.mxu0 0.0
    %1403 = vmatpush1.xpose.msra.mxu0 0.0
    %1404 = vmatprep.subr.mxu0 0.0
    %1405 = vmatpush1.xpose.msra.mxu0 0.0
    %1406 = vmatprep.subr.mxu0 0.0
    %1407 = vmatpush1.xpose.msra.mxu0 0.0
    %1408 = vmatprep.subr.mxu0 0.0
    %1409 = vmatpush1.xpose.msra.mxu0 0.0
    %1410 = vmatprep.mubr.f32.mxu0 0.0
    %1411 = vmatmul.mubr.f32.gmra.mrb[0].mxu0 %v1342
    %v1412 = vpop.f32.mrb[0].mxu0
    %v1413 = vadd.f32 %v1335, %v1412
    %v1414 = vpop.f32.mrb[0].mxu0
    %1415 = vdwg.mxu0
    %v1416 = vmul.f32 %v1413, 0.17677669
    %v1417 = vsel %vm376, %v1416, -inf
    %1418 = vmax.xlane.f32.xlu0 %v1417
    %v1419 = vpop.xlane.xlu0 %1418
    %v1420 = vsub.f32 %v1416, %v1419
    %v1421 = vmul.f32 %v1420, 1.442695
    %v1422 = vpow.pop %v1421
    %v1423 = vsel %vm376, %v1422, 0.0
    %1424 = vadd.xlane.f32.xlu0 %v1423
    %v1425 = vpop.xlane.xlu0 %1424
    %v1426 = vrcp.pop %v1425
    %v1427 = vmul.f32 %v1422, %v1426
    %1428 = vrot.lane.b32.xlu0 %v1120, 56
    %v1429 = vpop.permute.xlu0 %1428
    %v1432 = vsel %vm376, %v1427, 0
    %1434 = vmatprep.subr.mxu0 0.0
    %1435 = vmatpush1.msra.mxu0 %v1429
    %1436 = vmatprep.subr.mxu0 0.0
    %1437 = vmatpush1.msra.mxu0 0.0
    %1438 = vmatprep.subr.mxu0 0.0
    %1439 = vmatpush1.msra.mxu0 0.0
    %1440 = vmatprep.subr.mxu0 0.0
    %1441 = vmatpush1.msra.mxu0 0.0
    %1442 = vmatprep.subr.mxu0 0.0
    %1443 = vmatpush1.msra.mxu0 0.0
    %1444 = vmatprep.subr.mxu0 0.0
    %1445 = vmatpush1.msra.mxu0 0.0
    %1446 = vmatprep.subr.mxu0 0.0
    %1447 = vmatpush1.msra.mxu0 0.0
    %1448 = vmatprep.subr.mxu0 0.0
    %1449 = vmatpush1.msra.mxu0 0.0
    %1450 = vmatprep.subr.mxu0 0.0
    %1451 = vmatpush1.msra.mxu0 0.0
    %1452 = vmatprep.subr.mxu0 0.0
    %1453 = vmatpush1.msra.mxu0 0.0
    %1454 = vmatprep.subr.mxu0 0.0
    %1455 = vmatpush1.msra.mxu0 0.0
    %1456 = vmatprep.subr.mxu0 0.0
    %1457 = vmatpush1.msra.mxu0 0.0
    %1458 = vmatprep.subr.mxu0 0.0
    %1459 = vmatpush1.msra.mxu0 0.0
    %1460 = vmatprep.subr.mxu0 0.0
    %1461 = vmatpush1.msra.mxu0 0.0
    %1462 = vmatprep.subr.mxu0 0.0
    %1463 = vmatpush1.msra.mxu0 0.0
    %1464 = vmatprep.subr.mxu0 0.0
    %1465 = vmatpush1.msra.mxu0 0.0
    %1466 = vmatprep.subr.mxu0 0.0
    %1467 = vmatpush1.msra.mxu0 0.0
    %1468 = vmatprep.subr.mxu0 0.0
    %1469 = vmatpush1.msra.mxu0 0.0
    %1470 = vmatprep.subr.mxu0 0.0
    %1471 = vmatpush1.msra.mxu0 0.0
    %1472 = vmatprep.subr.mxu0 0.0
    %1473 = vmatpush1.msra.mxu0 0.0
    %1474 = vmatprep.subr.mxu0 0.0
    %1475 = vmatpush1.msra.mxu0 0.0
    %1476 = vmatprep.subr.mxu0 0.0
    %1477 = vmatpush1.msra.mxu0 0.0
    %1478 = vmatprep.subr.mxu0 0.0
    %1479 = vmatpush1.msra.mxu0 0.0
    %1480 = vmatprep.subr.mxu0 0.0
    %1481 = vmatpush1.msra.mxu0 0.0
    %1482 = vmatprep.subr.mxu0 0.0
    %1483 = vmatpush1.msra.mxu0 0.0
    %1484 = vmatprep.subr.mxu0 0.0
    %1485 = vmatpush1.msra.mxu0 0.0
    %1486 = vmatprep.subr.mxu0 0.0
    %1487 = vmatpush1.msra.mxu0 0.0
    %1488 = vmatprep.subr.mxu0 0.0
    %1489 = vmatpush1.msra.mxu0 0.0
    %1490 = vmatprep.subr.mxu0 0.0
    %1491 = vmatpush1.msra.mxu0 0.0
    %1492 = vmatprep.subr.mxu0 0.0
    %1493 = vmatpush1.msra.mxu0 0.0
    %1494 = vmatprep.subr.mxu0 0.0
    %1495 = vmatpush1.msra.mxu0 0.0
    %1496 = vmatprep.subr.mxu0 0.0
    %1497 = vmatpush1.msra.mxu0 0.0
    %1498 = vmatprep.mubr.f32.mxu0 0.0
    %1499 = vmatmul.mubr.f32.gmra.mrb[0].mxu0 %v1432
    %v1500 = vpop.f32.mrb[0].mxu0
    %v1501 = vadd.f32 0.0, %v1500
    %v1502 = vpop.f32.mrb[0].mxu0
    %1503 = vdwg.mxu0
    %1505 = vrot.lane.b32.xlu0 %v1501, 8
    %v1506 = vpop.permute.xlu0 %1505
    %vm1508 = vcmask 130112
    %1509 = vst.msk [vmem:[#allocation5] sm:$0xff] %vm1508, %v1506
    %v1510 = vld [vmem:[#allocation2 + $0x8] sm:$0xff]
    %v1511 = vadd.f32 %v1510, %v1125
    %v1512 = vadd.f32 %v1510, %v1132
    %1514 = vrot.lane.b32.xlu0 %v1512, 120
    %v1515 = vpop.permute.xlu0 %1514
    %v1516 = vsel %vm376, %v1515, 0
    %1518 = vmatprep.subr.mxu0 0.0
    %1519 = vmatpush1.xpose.msra.mxu0 %v1143
    %1520 = vmatprep.subr.mxu0 0.0
    %1521 = vmatpush1.xpose.msra.mxu0 0.0
    %1522 = vmatprep.subr.mxu0 0.0
    %1523 = vmatpush1.xpose.msra.mxu0 0.0
    %1524 = vmatprep.subr.mxu0 0.0
    %1525 = vmatpush1.xpose.msra.mxu0 0.0
    %1526 = vmatprep.subr.mxu0 0.0
    %1527 = vmatpush1.xpose.msra.mxu0 0.0
    %1528 = vmatprep.subr.mxu0 0.0
    %1529 = vmatpush1.xpose.msra.mxu0 0.0
    %1530 = vmatprep.subr.mxu0 0.0
    %1531 = vmatpush1.xpose.msra.mxu0 0.0
    %1532 = vmatprep.subr.mxu0 0.0
    %1533 = vmatpush1.xpose.msra.mxu0 0.0
    %1534 = vmatprep.subr.mxu0 0.0
    %1535 = vmatpush1.xpose.msra.mxu0 0.0
    %1536 = vmatprep.subr.mxu0 0.0
    %1537 = vmatpush1.xpose.msra.mxu0 0.0
    %1538 = vmatprep.subr.mxu0 0.0
    %1539 = vmatpush1.xpose.msra.mxu0 0.0
    %1540 = vmatprep.subr.mxu0 0.0
    %1541 = vmatpush1.xpose.msra.mxu0 0.0
    %1542 = vmatprep.subr.mxu0 0.0
    %1543 = vmatpush1.xpose.msra.mxu0 0.0
    %1544 = vmatprep.subr.mxu0 0.0
    %1545 = vmatpush1.xpose.msra.mxu0 0.0
    %1546 = vmatprep.subr.mxu0 0.0
    %1547 = vmatpush1.xpose.msra.mxu0 0.0
    %1548 = vmatprep.subr.mxu0 0.0
    %1549 = vmatpush1.xpose.msra.mxu0 0.0
    %1550 = vmatprep.subr.mxu0 0.0
    %1551 = vmatpush1.xpose.msra.mxu0 0.0
    %1552 = vmatprep.subr.mxu0 0.0
    %1553 = vmatpush1.xpose.msra.mxu0 0.0
    %1554 = vmatprep.subr.mxu0 0.0
    %1555 = vmatpush1.xpose.msra.mxu0 0.0
    %1556 = vmatprep.subr.mxu0 0.0
    %1557 = vmatpush1.xpose.msra.mxu0 0.0
    %1558 = vmatprep.subr.mxu0 0.0
    %1559 = vmatpush1.xpose.msra.mxu0 0.0
    %1560 = vmatprep.subr.mxu0 0.0
    %1561 = vmatpush1.xpose.msra.mxu0 0.0
    %1562 = vmatprep.subr.mxu0 0.0
    %1563 = vmatpush1.xpose.msra.mxu0 0.0
    %1564 = vmatprep.subr.mxu0 0.0
    %1565 = vmatpush1.xpose.msra.mxu0 0.0
    %1566 = vmatprep.subr.mxu0 0.0
    %1567 = vmatpush1.xpose.msra.mxu0 0.0
    %1568 = vmatprep.subr.mxu0 0.0
    %1569 = vmatpush1.xpose.msra.mxu0 0.0
    %1570 = vmatprep.subr.mxu0 0.0
    %1571 = vmatpush1.xpose.msra.mxu0 0.0
    %1572 = vmatprep.subr.mxu0 0.0
    %1573 = vmatpush1.xpose.msra.mxu0 0.0
    %1574 = vmatprep.subr.mxu0 0.0
    %1575 = vmatpush1.xpose.msra.mxu0 0.0
    %1576 = vmatprep.subr.mxu0 0.0
    %1577 = vmatpush1.xpose.msra.mxu0 0.0
    %1578 = vmatprep.subr.mxu0 0.0
    %1579 = vmatpush1.xpose.msra.mxu0 0.0
    %1580 = vmatprep.subr.mxu0 0.0
    %1581 = vmatpush1.xpose.msra.mxu0 0.0
    %1582 = vmatprep.mubr.f32.mxu0 0.0
    %1583 = vmatmul.mubr.f32.gmra.mrb[0].mxu0 %v1516
    %v1584 = vpop.f32.mrb[0].mxu0
    %v1585 = vadd.f32 0.0, %v1584
    %v1586 = vpop.f32.mrb[0].mxu0
    %1587 = vdwg.mxu0
    %1588 = vmatprep.subr.mxu0 0.0
    %1589 = vmatpush1.msra.mxu0 %v1585
    %1590 = vmatprep.subr.mxu0 0.0
    %1591 = vmatpush1.msra.mxu0 0.0
    %1592 = vmatprep.subr.mxu0 0.0
    %1593 = vmatpush1.msra.mxu0 0.0
    %1594 = vmatprep.subr.mxu0 0.0
    %1595 = vmatpush1.msra.mxu0 0.0
    %1596 = vmatprep.subr.mxu0 0.0
    %1597 = vmatpush1.msra.mxu0 0.0
    %1598 = vmatprep.subr.mxu0 0.0
    %1599 = vmatpush1.msra.mxu0 0.0
    %1600 = vmatprep.subr.mxu0 0.0
    %1601 = vmatpush1.msra.mxu0 0.0
    %1602 = vmatprep.subr.mxu0 0.0
    %1603 = vmatpush1.msra.mxu0 0.0
    %1604 = vmatprep.subr.mxu0 0.0
    %1605 = vmatpush1.msra.mxu0 0.0
    %1606 = vmatprep.subr.mxu0 0.0
    %1607 = vmatpush1.msra.mxu0 0.0
    %1608 = vmatprep.subr.mxu0 0.0
    %1609 = vmatpush1.msra.mxu0 0.0
    %1610 = vmatprep.subr.mxu0 0.0
    %1611 = vmatpush1.msra.mxu0 0.0
    %1612 = vmatprep.subr.mxu0 0.0
    %1613 = vmatpush1.msra.mxu0 0.0
    %1614 = vmatprep.subr.mxu0 0.0
    %1615 = vmatpush1.msra.mxu0 0.0
    %1616 = vmatprep.subr.mxu0 0.0
    %1617 = vmatpush1.msra.mxu0 0.0
    %1618 = vmatprep.subr.mxu0 0.0
    %1619 = vmatpush1.msra.mxu0 0.0
    %1620 = vmatprep.subr.mxu0 0.0
    %1621 = vmatpush1.msra.mxu0 0.0
    %1622 = vmatprep.subr.mxu0 0.0
    %1623 = vmatpush1.msra.mxu0 0.0
    %1624 = vmatprep.subr.mxu0 0.0
    %1625 = vmatpush1.msra.mxu0 0.0
    %1626 = vmatprep.subr.mxu0 0.0
    %1627 = vmatpush1.msra.mxu0 0.0
    %1628 = vmatprep.subr.mxu0 0.0
    %1629 = vmatpush1.msra.mxu0 0.0
    %1630 = vmatprep.subr.mxu0 0.0
    %1631 = vmatpush1.msra.mxu0 0.0
    %1632 = vmatprep.subr.mxu0 0.0
    %1633 = vmatpush1.msra.mxu0 0.0
    %1634 = vmatprep.subr.mxu0 0.0
    %1635 = vmatpush1.msra.mxu0 0.0
    %1636 = vmatprep.subr.mxu0 0.0
    %1637 = vmatpush1.msra.mxu0 0.0
    %1638 = vmatprep.subr.mxu0 0.0
    %1639 = vmatpush1.msra.mxu0 0.0
    %1640 = vmatprep.subr.mxu0 0.0
    %1641 = vmatpush1.msra.mxu0 0.0
    %1642 = vmatprep.subr.mxu0 0.0
    %1643 = vmatpush1.msra.mxu0 0.0
    %1644 = vmatprep.subr.mxu0 0.0
    %1645 = vmatpush1.msra.mxu0 0.0
    %1646 = vmatprep.subr.mxu0 0.0
    %1647 = vmatpush1.msra.mxu0 0.0
    %1648 = vmatprep.subr.mxu0 0.0
    %1649 = vmatpush1.msra.mxu0 0.0
    %1650 = vmatprep.subr.mxu0 0.0
    %1651 = vmatpush1.msra.mxu0 0.0
    %1652 = vmatprep.mubr.f32.mxu0 0.0
    %1653 = vmatmul.mubr.f32.gmra.mrb[0].mxu0 %v454
    %v1654 = vpop.f32.mrb[0].mxu0
    %v1655 = vadd.f32 0.0, %v1654
    %v1656 = vpop.f32.mrb[0].mxu0
    %1657 = vdwg.mxu0
    %1658 = vst.msk [vmem:[#allocation4] sm:$0xff] %vm376, %v1585
    %1660 = vrot.lane.b32.xlu0 %v1655, 9
    %v1661 = vpop.permute.xlu0 %1660
    %1663 = vst.msk [vmem:[#allocation4] sm:$0xff] %vm531, %v1661
    %v1664 = vld [vmem:[#allocation4] sm:$0xff]
    %v1665 = vsel %vm534, %v1664, 0.0
    %v1666 = vadd.f32 %v1665, 0.0
    %v1667 = vsel %vm537, %v1664, 0.0
    %1669 = vrot.lane.b32.xlu0 %v1667, 127
    %v1670 = vpop.permute.xlu0 %1669
    %v1672 = vadd.f32 %v1666, %v1670
    %v1673 = vsel %vm544, %v1664, 0.0
    %1675 = vrot.lane.b32.xlu0 %v1673, 126
    %v1676 = vpop.permute.xlu0 %1675
    %v1678 = vadd.f32 %v1672, %v1676
    %v1679 = vsel %vm551, %v1664, 0.0
    %1681 = vrot.lane.b32.xlu0 %v1679, 125
    %v1682 = vpop.permute.xlu0 %1681
    %v1684 = vadd.f32 %v1678, %v1682
    %v1685 = vsel %vm558, %v1664, 0.0
    %1687 = vrot.lane.b32.xlu0 %v1685, 124
    %v1688 = vpop.permute.xlu0 %1687
    %v1690 = vadd.f32 %v1684, %v1688
    %v1691 = vsel %vm565, %v1664, 0.0
    %1693 = vrot.lane.b32.xlu0 %v1691, 123
    %v1694 = vpop.permute.xlu0 %1693
    %v1696 = vadd.f32 %v1690, %v1694
    %v1697 = vsel %vm572, %v1664, 0.0
    %1699 = vrot.lane.b32.xlu0 %v1697, 122
    %v1700 = vpop.permute.xlu0 %1699
    %v1702 = vadd.f32 %v1696, %v1700
    %v1703 = vsel %vm579, %v1664, 0.0
    %1705 = vrot.lane.b32.xlu0 %v1703, 121
    %v1706 = vpop.permute.xlu0 %1705
    %v1708 = vadd.f32 %v1702, %v1706
    %1710 = vrot.lane.b32.xlu0 %v1511, 120
    %v1711 = vpop.permute.xlu0 %1710
    %1713 = vrot.lane.b32.xlu0 %v1510, 88
    %v1714 = vpop.permute.xlu0 %1713
    %v1715 = vsel %vm376, %v1711, 0
    %v1717 = vsel %vm376, %v1714, 0
    %1719 = vmatprep.subr.mxu0 0.0
    %1720 = vmatpush1.xpose.msra.mxu0 %v1717
    %1721 = vmatprep.subr.mxu0 0.0
    %1722 = vmatpush1.xpose.msra.mxu0 0.0
    %1723 = vmatprep.subr.mxu0 0.0
    %1724 = vmatpush1.xpose.msra.mxu0 0.0
    %1725 = vmatprep.subr.mxu0 0.0
    %1726 = vmatpush1.xpose.msra.mxu0 0.0
    %1727 = vmatprep.subr.mxu0 0.0
    %1728 = vmatpush1.xpose.msra.mxu0 0.0
    %1729 = vmatprep.subr.mxu0 0.0
    %1730 = vmatpush1.xpose.msra.mxu0 0.0
    %1731 = vmatprep.subr.mxu0 0.0
    %1732 = vmatpush1.xpose.msra.mxu0 0.0
    %1733 = vmatprep.subr.mxu0 0.0
    %1734 = vmatpush1.xpose.msra.mxu0 0.0
    %1735 = vmatprep.subr.mxu0 0.0
    %1736 = vmatpush1.xpose.msra.mxu0 0.0
    %1737 = vmatprep.subr.mxu0 0.0
    %1738 = vmatpush1.xpose.msra.mxu0 0.0
    %1739 = vmatprep.subr.mxu0 0.0
    %1740 = vmatpush1.xpose.msra.mxu0 0.0
    %1741 = vmatprep.subr.mxu0 0.0
    %1742 = vmatpush1.xpose.msra.mxu0 0.0
    %1743 = vmatprep.subr.mxu0 0.0
    %1744 = vmatpush1.xpose.msra.mxu0 0.0
    %1745 = vmatprep.subr.mxu0 0.0
    %1746 = vmatpush1.xpose.msra.mxu0 0.0
    %1747 = vmatprep.subr.mxu0 0.0
    %1748 = vmatpush1.xpose.msra.mxu0 0.0
    %1749 = vmatprep.subr.mxu0 0.0
    %1750 = vmatpush1.xpose.msra.mxu0 0.0
    %1751 = vmatprep.subr.mxu0 0.0
    %1752 = vmatpush1.xpose.msra.mxu0 0.0
    %1753 = vmatprep.subr.mxu0 0.0
    %1754 = vmatpush1.xpose.msra.mxu0 0.0
    %1755 = vmatprep.subr.mxu0 0.0
    %1756 = vmatpush1.xpose.msra.mxu0 0.0
    %1757 = vmatprep.subr.mxu0 0.0
    %1758 = vmatpush1.xpose.msra.mxu0 0.0
    %1759 = vmatprep.subr.mxu0 0.0
    %1760 = vmatpush1.xpose.msra.mxu0 0.0
    %1761 = vmatprep.subr.mxu0 0.0
    %1762 = vmatpush1.xpose.msra.mxu0 0.0
    %1763 = vmatprep.subr.mxu0 0.0
    %1764 = vmatpush1.xpose.msra.mxu0 0.0
    %1765 = vmatprep.subr.mxu0 0.0
    %1766 = vmatpush1.xpose.msra.mxu0 0.0
    %1767 = vmatprep.subr.mxu0 0.0
    %1768 = vmatpush1.xpose.msra.mxu0 0.0
    %1769 = vmatprep.subr.mxu0 0.0
    %1770 = vmatpush1.xpose.msra.mxu0 0.0
    %1771 = vmatprep.subr.mxu0 0.0
    %1772 = vmatpush1.xpose.msra.mxu0 0.0
    %1773 = vmatprep.subr.mxu0 0.0
    %1774 = vmatpush1.xpose.msra.mxu0 0.0
    %1775 = vmatprep.subr.mxu0 0.0
    %1776 = vmatpush1.xpose.msra.mxu0 0.0
    %1777 = vmatprep.subr.mxu0 0.0
    %1778 = vmatpush1.xpose.msra.mxu0 0.0
    %1779 = vmatprep.subr.mxu0 0.0
    %1780 = vmatpush1.xpose.msra.mxu0 0.0
    %1781 = vmatprep.subr.mxu0 0.0
    %1782 = vmatpush1.xpose.msra.mxu0 0.0
    %1783 = vmatprep.mubr.f32.mxu0 0.0
    %1784 = vmatmul.mubr.f32.gmra.mrb[0].mxu0 %v1715
    %v1785 = vpop.f32.mrb[0].mxu0
    %v1786 = vadd.f32 %v1708, %v1785
    %v1787 = vpop.f32.mrb[0].mxu0
    %1788 = vdwg.mxu0
    %v1789 = vmul.f32 %v1786, 0.17677669
    %v1790 = vsel %vm376, %v1789, -inf
    %1791 = vmax.xlane.f32.xlu0 %v1790
    %v1792 = vpop.xlane.xlu0 %1791
    %v1793 = vsub.f32 %v1789, %v1792
    %v1794 = vmul.f32 %v1793, 1.442695
    %v1795 = vpow.pop %v1794
    %v1796 = vsel %vm376, %v1795, 0.0
    %1797 = vadd.xlane.f32.xlu0 %v1796
    %v1798 = vpop.xlane.xlu0 %1797
    %v1799 = vrcp.pop %v1798
    %v1800 = vmul.f32 %v1795, %v1799
    %1801 = vrot.lane.b32.xlu0 %v1510, 56
    %v1802 = vpop.permute.xlu0 %1801
    %v1805 = vsel %vm376, %v1800, 0
    %1807 = vmatprep.subr.mxu0 0.0
    %1808 = vmatpush1.msra.mxu0 %v1802
    %1809 = vmatprep.subr.mxu0 0.0
    %1810 = vmatpush1.msra.mxu0 0.0
    %1811 = vmatprep.subr.mxu0 0.0
    %1812 = vmatpush1.msra.mxu0 0.0
    %1813 = vmatprep.subr.mxu0 0.0
    %1814 = vmatpush1.msra.mxu0 0.0
    %1815 = vmatprep.subr.mxu0 0.0
    %1816 = vmatpush1.msra.mxu0 0.0
    %1817 = vmatprep.subr.mxu0 0.0
    %1818 = vmatpush1.msra.mxu0 0.0
    %1819 = vmatprep.subr.mxu0 0.0
    %1820 = vmatpush1.msra.mxu0 0.0
    %1821 = vmatprep.subr.mxu0 0.0
    %1822 = vmatpush1.msra.mxu0 0.0
    %1823 = vmatprep.subr.mxu0 0.0
    %1824 = vmatpush1.msra.mxu0 0.0
    %1825 = vmatprep.subr.mxu0 0.0
    %1826 = vmatpush1.msra.mxu0 0.0
    %1827 = vmatprep.subr.mxu0 0.0
    %1828 = vmatpush1.msra.mxu0 0.0
    %1829 = vmatprep.subr.mxu0 0.0
    %1830 = vmatpush1.msra.mxu0 0.0
    %1831 = vmatprep.subr.mxu0 0.0
    %1832 = vmatpush1.msra.mxu0 0.0
    %1833 = vmatprep.subr.mxu0 0.0
    %1834 = vmatpush1.msra.mxu0 0.0
    %1835 = vmatprep.subr.mxu0 0.0
    %1836 = vmatpush1.msra.mxu0 0.0
    %1837 = vmatprep.subr.mxu0 0.0
    %1838 = vmatpush1.msra.mxu0 0.0
    %1839 = vmatprep.subr.mxu0 0.0
    %1840 = vmatpush1.msra.mxu0 0.0
    %1841 = vmatprep.subr.mxu0 0.0
    %1842 = vmatpush1.msra.mxu0 0.0
    %1843 = vmatprep.subr.mxu0 0.0
    %1844 = vmatpush1.msra.mxu0 0.0
    %1845 = vmatprep.subr.mxu0 0.0
    %1846 = vmatpush1.msra.mxu0 0.0
    %1847 = vmatprep.subr.mxu0 0.0
    %1848 = vmatpush1.msra.mxu0 0.0
    %1849 = vmatprep.subr.mxu0 0.0
    %1850 = vmatpush1.msra.mxu0 0.0
    %1851 = vmatprep.subr.mxu0 0.0
    %1852 = vmatpush1.msra.mxu0 0.0
    %1853 = vmatprep.subr.mxu0 0.0
    %1854 = vmatpush1.msra.mxu0 0.0
    %1855 = vmatprep.subr.mxu0 0.0
    %1856 = vmatpush1.msra.mxu0 0.0
    %1857 = vmatprep.subr.mxu0 0.0
    %1858 = vmatpush1.msra.mxu0 0.0
    %1859 = vmatprep.subr.mxu0 0.0
    %1860 = vmatpush1.msra.mxu0 0.0
    %1861 = vmatprep.subr.mxu0 0.0
    %1862 = vmatpush1.msra.mxu0 0.0
    %1863 = vmatprep.subr.mxu0 0.0
    %1864 = vmatpush1.msra.mxu0 0.0
    %1865 = vmatprep.subr.mxu0 0.0
    %1866 = vmatpush1.msra.mxu0 0.0
    %1867 = vmatprep.subr.mxu0 0.0
    %1868 = vmatpush1.msra.mxu0 0.0
    %1869 = vmatprep.subr.mxu0 0.0
    %1870 = vmatpush1.msra.mxu0 0.0
    %1871 = vmatprep.mubr.f32.mxu0 0.0
    %1872 = vmatmul.mubr.f32.gmra.mrb[0].mxu0 %v1805
    %v1873 = vpop.f32.mrb[0].mxu0
    %v1874 = vadd.f32 0.0, %v1873
    %v1875 = vpop.f32.mrb[0].mxu0
    %1876 = vdwg.mxu0
    %1878 = vrot.lane.b32.xlu0 %v1874, 8
    %v1879 = vpop.permute.xlu0 %1878
    %1881 = vst.msk [vmem:[#allocation5 + $0x8] sm:$0xff] %vm1508, %v1879
    %v1882 = vld [vmem:[#allocation15] sm:$0x1]
    %v1883 = vld [vmem:[#allocation17] sm:$0x1]
    %v1884 = vld [vmem:[#allocation3] sm:$0xff]
    %v1885 = vld [vmem:[#allocation2] sm:$0xff]
    %v1887 = vlaneseq
    %v1888 = vshrl.u32 %v1887, 7
    %v1889 = vsub.s32 0, %v1888
    %v1890 = vrot.slane %v1882, %v1889
    %v1892 = vadd.f32 %v1885, %v1890
    %v1894 = vlaneseq
    %v1895 = vshrl.u32 %v1894, 7
    %v1896 = vsub.s32 0, %v1895
    %v1897 = vrot.slane %v1883, %v1896
    %v1899 = vadd.f32 %v1885, %v1897
    %1901 = vrot.lane.b32.xlu0 %v1899, 112
    %v1902 = vpop.permute.xlu0 %1901
    %1904 = vrot.lane.b32.xlu0 %v1884, 112
    %v1905 = vpop.permute.xlu0 %1904
    %v1906 = vsel %vm376, %v1902, 0
    %v1908 = vsel %vm376, %v1905, 0
    %1910 = vmatprep.subr.mxu0 0.0
    %1911 = vmatpush1.xpose.msra.mxu0 %v1908
    %1912 = vmatprep.subr.mxu0 0.0
    %1913 = vmatpush1.xpose.msra.mxu0 0.0
    %1914 = vmatprep.subr.mxu0 0.0
    %1915 = vmatpush1.xpose.msra.mxu0 0.0
    %1916 = vmatprep.subr.mxu0 0.0
    %1917 = vmatpush1.xpose.msra.mxu0 0.0
    %1918 = vmatprep.subr.mxu0 0.0
    %1919 = vmatpush1.xpose.msra.mxu0 0.0
    %1920 = vmatprep.subr.mxu0 0.0
    %1921 = vmatpush1.xpose.msra.mxu0 0.0
    %1922 = vmatprep.subr.mxu0 0.0
    %1923 = vmatpush1.xpose.msra.mxu0 0.0
    %1924 = vmatprep.subr.mxu0 0.0
    %1925 = vmatpush1.xpose.msra.mxu0 0.0
    %1926 = vmatprep.subr.mxu0 0.0
    %1927 = vmatpush1.xpose.msra.mxu0 0.0
    %1928 = vmatprep.subr.mxu0 0.0
    %1929 = vmatpush1.xpose.msra.mxu0 0.0
    %1930 = vmatprep.subr.mxu0 0.0
    %1931 = vmatpush1.xpose.msra.mxu0 0.0
    %1932 = vmatprep.subr.mxu0 0.0
    %1933 = vmatpush1.xpose.msra.mxu0 0.0
    %1934 = vmatprep.subr.mxu0 0.0
    %1935 = vmatpush1.xpose.msra.mxu0 0.0
    %1936 = vmatprep.subr.mxu0 0.0
    %1937 = vmatpush1.xpose.msra.mxu0 0.0
    %1938 = vmatprep.subr.mxu0 0.0
    %1939 = vmatpush1.xpose.msra.mxu0 0.0
    %1940 = vmatprep.subr.mxu0 0.0
    %1941 = vmatpush1.xpose.msra.mxu0 0.0
    %1942 = vmatprep.subr.mxu0 0.0
    %1943 = vmatpush1.xpose.msra.mxu0 0.0
    %1944 = vmatprep.subr.mxu0 0.0
    %1945 = vmatpush1.xpose.msra.mxu0 0.0
    %1946 = vmatprep.subr.mxu0 0.0
    %1947 = vmatpush1.xpose.msra.mxu0 0.0
    %1948 = vmatprep.subr.mxu0 0.0
    %1949 = vmatpush1.xpose.msra.mxu0 0.0
    %1950 = vmatprep.subr.mxu0 0.0
    %1951 = vmatpush1.xpose.msra.mxu0 0.0
    %1952 = vmatprep.subr.mxu0 0.0
    %1953 = vmatpush1.xpose.msra.mxu0 0.0
    %1954 = vmatprep.subr.mxu0 0.0
    %1955 = vmatpush1.xpose.msra.mxu0 0.0
    %1956 = vmatprep.subr.mxu0 0.0
    %1957 = vmatpush1.xpose.msra.mxu0 0.0
    %1958 = vmatprep.subr.mxu0 0.0
    %1959 = vmatpush1.xpose.msra.mxu0 0.0
    %1960 = vmatprep.subr.mxu0 0.0
    %1961 = vmatpush1.xpose.msra.mxu0 0.0
    %1962 = vmatprep.subr.mxu0 0.0
    %1963 = vmatpush1.xpose.msra.mxu0 0.0
    %1964 = vmatprep.subr.mxu0 0.0
    %1965 = vmatpush1.xpose.msra.mxu0 0.0
    %1966 = vmatprep.subr.mxu0 0.0
    %1967 = vmatpush1.xpose.msra.mxu0 0.0
    %1968 = vmatprep.subr.mxu0 0.0
    %1969 = vmatpush1.xpose.msra.mxu0 0.0
    %1970 = vmatprep.subr.mxu0 0.0
    %1971 = vmatpush1.xpose.msra.mxu0 0.0
    %1972 = vmatprep.subr.mxu0 0.0
    %1973 = vmatpush1.xpose.msra.mxu0 0.0
    %1974 = vmatprep.mubr.f32.mxu0 0.0
    %1975 = vmatmul.mubr.f32.gmra.mrb[0].mxu0 %v1906
    %v1976 = vpop.f32.mrb[0].mxu0
    %v1977 = vadd.f32 0.0, %v1976
    %v1978 = vpop.f32.mrb[0].mxu0
    %1979 = vdwg.mxu0
    %1980 = vmatprep.subr.mxu0 0.0
    %1981 = vmatpush1.msra.mxu0 %v1977
    %1982 = vmatprep.subr.mxu0 0.0
    %1983 = vmatpush1.msra.mxu0 0.0
    %1984 = vmatprep.subr.mxu0 0.0
    %1985 = vmatpush1.msra.mxu0 0.0
    %1986 = vmatprep.subr.mxu0 0.0
    %1987 = vmatpush1.msra.mxu0 0.0
    %1988 = vmatprep.subr.mxu0 0.0
    %1989 = vmatpush1.msra.mxu0 0.0
    %1990 = vmatprep.subr.mxu0 0.0
    %1991 = vmatpush1.msra.mxu0 0.0
    %1992 = vmatprep.subr.mxu0 0.0
    %1993 = vmatpush1.msra.mxu0 0.0
    %1994 = vmatprep.subr.mxu0 0.0
    %1995 = vmatpush1.msra.mxu0 0.0
    %1996 = vmatprep.subr.mxu0 0.0
    %1997 = vmatpush1.msra.mxu0 0.0
    %1998 = vmatprep.subr.mxu0 0.0
    %1999 = vmatpush1.msra.mxu0 0.0
    %2000 = vmatprep.subr.mxu0 0.0
    %2001 = vmatpush1.msra.mxu0 0.0
    %2002 = vmatprep.subr.mxu0 0.0
    %2003 = vmatpush1.msra.mxu0 0.0
    %2004 = vmatprep.subr.mxu0 0.0
    %2005 = vmatpush1.msra.mxu0 0.0
    %2006 = vmatprep.subr.mxu0 0.0
    %2007 = vmatpush1.msra.mxu0 0.0
    %2008 = vmatprep.subr.mxu0 0.0
    %2009 = vmatpush1.msra.mxu0 0.0
    %2010 = vmatprep.subr.mxu0 0.0
    %2011 = vmatpush1.msra.mxu0 0.0
    %2012 = vmatprep.subr.mxu0 0.0
    %2013 = vmatpush1.msra.mxu0 0.0
    %2014 = vmatprep.subr.mxu0 0.0
    %2015 = vmatpush1.msra.mxu0 0.0
    %2016 = vmatprep.subr.mxu0 0.0
    %2017 = vmatpush1.msra.mxu0 0.0
    %2018 = vmatprep.subr.mxu0 0.0
    %2019 = vmatpush1.msra.mxu0 0.0
    %2020 = vmatprep.subr.mxu0 0.0
    %2021 = vmatpush1.msra.mxu0 0.0
    %2022 = vmatprep.subr.mxu0 0.0
    %2023 = vmatpush1.msra.mxu0 0.0
    %2024 = vmatprep.subr.mxu0 0.0
    %2025 = vmatpush1.msra.mxu0 0.0
    %2026 = vmatprep.subr.mxu0 0.0
    %2027 = vmatpush1.msra.mxu0 0.0
    %2028 = vmatprep.subr.mxu0 0.0
    %2029 = vmatpush1.msra.mxu0 0.0
    %2030 = vmatprep.subr.mxu0 0.0
    %2031 = vmatpush1.msra.mxu0 0.0
    %2032 = vmatprep.subr.mxu0 0.0
    %2033 = vmatpush1.msra.mxu0 0.0
    %2034 = vmatprep.subr.mxu0 0.0
    %2035 = vmatpush1.msra.mxu0 0.0
    %2036 = vmatprep.subr.mxu0 0.0
    %2037 = vmatpush1.msra.mxu0 0.0
    %2038 = vmatprep.subr.mxu0 0.0
    %2039 = vmatpush1.msra.mxu0 0.0
    %2040 = vmatprep.subr.mxu0 0.0
    %2041 = vmatpush1.msra.mxu0 0.0
    %2042 = vmatprep.subr.mxu0 0.0
    %2043 = vmatpush1.msra.mxu0 0.0
    %2044 = vmatprep.mubr.f32.mxu0 0.0
    %2045 = vmatmul.mubr.f32.gmra.mrb[0].mxu0 %v454
    %v2046 = vpop.f32.mrb[0].mxu0
    %v2047 = vadd.f32 0.0, %v2046
    %v2048 = vpop.f32.mrb[0].mxu0
    %2049 = vdwg.mxu0
    %2050 = vst.msk [vmem:[#allocation4] sm:$0xff] %vm376, %v1977
    %2052 = vrot.lane.b32.xlu0 %v2047, 9
    %v2053 = vpop.permute.xlu0 %2052
    %2055 = vst.msk [vmem:[#allocation4] sm:$0xff] %vm531, %v2053
    %v2056 = vld [vmem:[#allocation4] sm:$0xff]
    %v2057 = vsel %vm534, %v2056, 0.0
    %v2058 = vadd.f32 %v2057, 0.0
    %v2059 = vsel %vm537, %v2056, 0.0
    %2061 = vrot.lane.b32.xlu0 %v2059, 127
    %v2062 = vpop.permute.xlu0 %2061
    %v2064 = vadd.f32 %v2058, %v2062
    %v2065 = vsel %vm544, %v2056, 0.0
    %2067 = vrot.lane.b32.xlu0 %v2065, 126
    %v2068 = vpop.permute.xlu0 %2067
    %v2070 = vadd.f32 %v2064, %v2068
    %v2071 = vsel %vm551, %v2056, 0.0
    %2073 = vrot.lane.b32.xlu0 %v2071, 125
    %v2074 = vpop.permute.xlu0 %2073
    %v2076 = vadd.f32 %v2070, %v2074
    %v2077 = vsel %vm558, %v2056, 0.0
    %2079 = vrot.lane.b32.xlu0 %v2077, 124
    %v2080 = vpop.permute.xlu0 %2079
    %v2082 = vadd.f32 %v2076, %v2080
    %v2083 = vsel %vm565, %v2056, 0.0
    %2085 = vrot.lane.b32.xlu0 %v2083, 123
    %v2086 = vpop.permute.xlu0 %2085
    %v2088 = vadd.f32 %v2082, %v2086
    %v2089 = vsel %vm572, %v2056, 0.0
    %2091 = vrot.lane.b32.xlu0 %v2089, 122
    %v2092 = vpop.permute.xlu0 %2091
    %v2094 = vadd.f32 %v2088, %v2092
    %v2095 = vsel %vm579, %v2056, 0.0
    %2097 = vrot.lane.b32.xlu0 %v2095, 121
    %v2098 = vpop.permute.xlu0 %2097
    %v2100 = vadd.f32 %v2094, %v2098
    %2102 = vrot.lane.b32.xlu0 %v1892, 112
    %v2103 = vpop.permute.xlu0 %2102
    %2105 = vrot.lane.b32.xlu0 %v1885, 80
    %v2106 = vpop.permute.xlu0 %2105
    %v2107 = vsel %vm376, %v2103, 0
    %v2109 = vsel %vm376, %v2106, 0
    %2111 = vmatprep.subr.mxu0 0.0
    %2112 = vmatpush1.xpose.msra.mxu0 %v2109
    %2113 = vmatprep.subr.mxu0 0.0
    %2114 = vmatpush1.xpose.msra.mxu0 0.0
    %2115 = vmatprep.subr.mxu0 0.0
    %2116 = vmatpush1.xpose.msra.mxu0 0.0
    %2117 = vmatprep.subr.mxu0 0.0
    %2118 = vmatpush1.xpose.msra.mxu0 0.0
    %2119 = vmatprep.subr.mxu0 0.0
    %2120 = vmatpush1.xpose.msra.mxu0 0.0
    %2121 = vmatprep.subr.mxu0 0.0
    %2122 = vmatpush1.xpose.msra.mxu0 0.0
    %2123 = vmatprep.subr.mxu0 0.0
    %2124 = vmatpush1.xpose.msra.mxu0 0.0
    %2125 = vmatprep.subr.mxu0 0.0
    %2126 = vmatpush1.xpose.msra.mxu0 0.0
    %2127 = vmatprep.subr.mxu0 0.0
    %2128 = vmatpush1.xpose.msra.mxu0 0.0
    %2129 = vmatprep.subr.mxu0 0.0
    %2130 = vmatpush1.xpose.msra.mxu0 0.0
    %2131 = vmatprep.subr.mxu0 0.0
    %2132 = vmatpush1.xpose.msra.mxu0 0.0
    %2133 = vmatprep.subr.mxu0 0.0
    %2134 = vmatpush1.xpose.msra.mxu0 0.0
    %2135 = vmatprep.subr.mxu0 0.0
    %2136 = vmatpush1.xpose.msra.mxu0 0.0
    %2137 = vmatprep.subr.mxu0 0.0
    %2138 = vmatpush1.xpose.msra.mxu0 0.0
    %2139 = vmatprep.subr.mxu0 0.0
    %2140 = vmatpush1.xpose.msra.mxu0 0.0
    %2141 = vmatprep.subr.mxu0 0.0
    %2142 = vmatpush1.xpose.msra.mxu0 0.0
    %2143 = vmatprep.subr.mxu0 0.0
    %2144 = vmatpush1.xpose.msra.mxu0 0.0
    %2145 = vmatprep.subr.mxu0 0.0
    %2146 = vmatpush1.xpose.msra.mxu0 0.0
    %2147 = vmatprep.subr.mxu0 0.0
    %2148 = vmatpush1.xpose.msra.mxu0 0.0
    %2149 = vmatprep.subr.mxu0 0.0
    %2150 = vmatpush1.xpose.msra.mxu0 0.0
    %2151 = vmatprep.subr.mxu0 0.0
    %2152 = vmatpush1.xpose.msra.mxu0 0.0
    %2153 = vmatprep.subr.mxu0 0.0
    %2154 = vmatpush1.xpose.msra.mxu0 0.0
    %2155 = vmatprep.subr.mxu0 0.0
    %2156 = vmatpush1.xpose.msra.mxu0 0.0
    %2157 = vmatprep.subr.mxu0 0.0
    %2158 = vmatpush1.xpose.msra.mxu0 0.0
    %2159 = vmatprep.subr.mxu0 0.0
    %2160 = vmatpush1.xpose.msra.mxu0 0.0
    %2161 = vmatprep.subr.mxu0 0.0
    %2162 = vmatpush1.xpose.msra.mxu0 0.0
    %2163 = vmatprep.subr.mxu0 0.0
    %2164 = vmatpush1.xpose.msra.mxu0 0.0
    %2165 = vmatprep.subr.mxu0 0.0
    %2166 = vmatpush1.xpose.msra.mxu0 0.0
    %2167 = vmatprep.subr.mxu0 0.0
    %2168 = vmatpush1.xpose.msra.mxu0 0.0
    %2169 = vmatprep.subr.mxu0 0.0
    %2170 = vmatpush1.xpose.msra.mxu0 0.0
    %2171 = vmatprep.subr.mxu0 0.0
    %2172 = vmatpush1.xpose.msra.mxu0 0.0
    %2173 = vmatprep.subr.mxu0 0.0
    %2174 = vmatpush1.xpose.msra.mxu0 0.0
    %2175 = vmatprep.mubr.f32.mxu0 0.0
    %2176 = vmatmul.mubr.f32.gmra.mrb[0].mxu0 %v2107
    %v2177 = vpop.f32.mrb[0].mxu0
    %v2178 = vadd.f32 %v2100, %v2177
    %v2179 = vpop.f32.mrb[0].mxu0
    %2180 = vdwg.mxu0
    %v2181 = vmul.f32 %v2178, 0.17677669
    %v2182 = vsel %vm376, %v2181, -inf
    %2183 = vmax.xlane.f32.xlu0 %v2182
    %v2184 = vpop.xlane.xlu0 %2183
    %v2185 = vsub.f32 %v2181, %v2184
    %v2186 = vmul.f32 %v2185, 1.442695
    %v2187 = vpow.pop %v2186
    %v2188 = vsel %vm376, %v2187, 0.0
    %2189 = vadd.xlane.f32.xlu0 %v2188
    %v2190 = vpop.xlane.xlu0 %2189
    %v2191 = vrcp.pop %v2190
    %v2192 = vmul.f32 %v2187, %v2191
    %2193 = vrot.lane.b32.xlu0 %v1885, 48
    %v2194 = vpop.permute.xlu0 %2193
    %v2197 = vsel %vm376, %v2192, 0
    %2199 = vmatprep.subr.mxu0 0.0
    %2200 = vmatpush1.msra.mxu0 %v2194
    %2201 = vmatprep.subr.mxu0 0.0
    %2202 = vmatpush1.msra.mxu0 0.0
    %2203 = vmatprep.subr.mxu0 0.0
    %2204 = vmatpush1.msra.mxu0 0.0
    %2205 = vmatprep.subr.mxu0 0.0
    %2206 = vmatpush1.msra.mxu0 0.0
    %2207 = vmatprep.subr.mxu0 0.0
    %2208 = vmatpush1.msra.mxu0 0.0
    %2209 = vmatprep.subr.mxu0 0.0
    %2210 = vmatpush1.msra.mxu0 0.0
    %2211 = vmatprep.subr.mxu0 0.0
    %2212 = vmatpush1.msra.mxu0 0.0
    %2213 = vmatprep.subr.mxu0 0.0
    %2214 = vmatpush1.msra.mxu0 0.0
    %2215 = vmatprep.subr.mxu0 0.0
    %2216 = vmatpush1.msra.mxu0 0.0
    %2217 = vmatprep.subr.mxu0 0.0
    %2218 = vmatpush1.msra.mxu0 0.0
    %2219 = vmatprep.subr.mxu0 0.0
    %2220 = vmatpush1.msra.mxu0 0.0
    %2221 = vmatprep.subr.mxu0 0.0
    %2222 = vmatpush1.msra.mxu0 0.0
    %2223 = vmatprep.subr.mxu0 0.0
    %2224 = vmatpush1.msra.mxu0 0.0
    %2225 = vmatprep.subr.mxu0 0.0
    %2226 = vmatpush1.msra.mxu0 0.0
    %2227 = vmatprep.subr.mxu0 0.0
    %2228 = vmatpush1.msra.mxu0 0.0
    %2229 = vmatprep.subr.mxu0 0.0
    %2230 = vmatpush1.msra.mxu0 0.0
    %2231 = vmatprep.subr.mxu0 0.0
    %2232 = vmatpush1.msra.mxu0 0.0
    %2233 = vmatprep.subr.mxu0 0.0
    %2234 = vmatpush1.msra.mxu0 0.0
    %2235 = vmatprep.subr.mxu0 0.0
    %2236 = vmatpush1.msra.mxu0 0.0
    %2237 = vmatprep.subr.mxu0 0.0
    %2238 = vmatpush1.msra.mxu0 0.0
    %2239 = vmatprep.subr.mxu0 0.0
    %2240 = vmatpush1.msra.mxu0 0.0
    %2241 = vmatprep.subr.mxu0 0.0
    %2242 = vmatpush1.msra.mxu0 0.0
    %2243 = vmatprep.subr.mxu0 0.0
    %2244 = vmatpush1.msra.mxu0 0.0
    %2245 = vmatprep.subr.mxu0 0.0
    %2246 = vmatpush1.msra.mxu0 0.0
    %2247 = vmatprep.subr.mxu0 0.0
    %2248 = vmatpush1.msra.mxu0 0.0
    %2249 = vmatprep.subr.mxu0 0.0
    %2250 = vmatpush1.msra.mxu0 0.0
    %2251 = vmatprep.subr.mxu0 0.0
    %2252 = vmatpush1.msra.mxu0 0.0
    %2253 = vmatprep.subr.mxu0 0.0
    %2254 = vmatpush1.msra.mxu0 0.0
    %2255 = vmatprep.subr.mxu0 0.0
    %2256 = vmatpush1.msra.mxu0 0.0
    %2257 = vmatprep.subr.mxu0 0.0
    %2258 = vmatpush1.msra.mxu0 0.0
    %2259 = vmatprep.subr.mxu0 0.0
    %2260 = vmatpush1.msra.mxu0 0.0
    %2261 = vmatprep.subr.mxu0 0.0
    %2262 = vmatpush1.msra.mxu0 0.0
    %2263 = vmatprep.mubr.f32.mxu0 0.0
    %2264 = vmatmul.mubr.f32.gmra.mrb[0].mxu0 %v2197
    %v2265 = vpop.f32.mrb[0].mxu0
    %v2266 = vadd.f32 0.0, %v2265
    %v2267 = vpop.f32.mrb[0].mxu0
    %2268 = vdwg.mxu0
    %2270 = vrot.lane.b32.xlu0 %v2266, 16
    %v2271 = vpop.permute.xlu0 %2270
    %vm2273 = vcmask 195712
    %2274 = vst.msk [vmem:[#allocation5] sm:$0xff] %vm2273, %v2271
    %v2275 = vld [vmem:[#allocation2 + $0x8] sm:$0xff]
    %v2276 = vadd.f32 %v2275, %v1890
    %v2277 = vadd.f32 %v2275, %v1897
    %2279 = vrot.lane.b32.xlu0 %v2277, 112
    %v2280 = vpop.permute.xlu0 %2279
    %v2281 = vsel %vm376, %v2280, 0
    %2283 = vmatprep.subr.mxu0 0.0
    %2284 = vmatpush1.xpose.msra.mxu0 %v1908
    %2285 = vmatprep.subr.mxu0 0.0
    %2286 = vmatpush1.xpose.msra.mxu0 0.0
    %2287 = vmatprep.subr.mxu0 0.0
    %2288 = vmatpush1.xpose.msra.mxu0 0.0
    %2289 = vmatprep.subr.mxu0 0.0
    %2290 = vmatpush1.xpose.msra.mxu0 0.0
    %2291 = vmatprep.subr.mxu0 0.0
    %2292 = vmatpush1.xpose.msra.mxu0 0.0
    %2293 = vmatprep.subr.mxu0 0.0
    %2294 = vmatpush1.xpose.msra.mxu0 0.0
    %2295 = vmatprep.subr.mxu0 0.0
    %2296 = vmatpush1.xpose.msra.mxu0 0.0
    %2297 = vmatprep.subr.mxu0 0.0
    %2298 = vmatpush1.xpose.msra.mxu0 0.0
    %2299 = vmatprep.subr.mxu0 0.0
    %2300 = vmatpush1.xpose.msra.mxu0 0.0
    %2301 = vmatprep.subr.mxu0 0.0
    %2302 = vmatpush1.xpose.msra.mxu0 0.0
    %2303 = vmatprep.subr.mxu0 0.0
    %2304 = vmatpush1.xpose.msra.mxu0 0.0
    %2305 = vmatprep.subr.mxu0 0.0
    %2306 = vmatpush1.xpose.msra.mxu0 0.0
    %2307 = vmatprep.subr.mxu0 0.0
    %2308 = vmatpush1.xpose.msra.mxu0 0.0
    %2309 = vmatprep.subr.mxu0 0.0
    %2310 = vmatpush1.xpose.msra.mxu0 0.0
    %2311 = vmatprep.subr.mxu0 0.0
    %2312 = vmatpush1.xpose.msra.mxu0 0.0
    %2313 = vmatprep.subr.mxu0 0.0
    %2314 = vmatpush1.xpose.msra.mxu0 0.0
    %2315 = vmatprep.subr.mxu0 0.0
    %2316 = vmatpush1.xpose.msra.mxu0 0.0
    %2317 = vmatprep.subr.mxu0 0.0
    %2318 = vmatpush1.xpose.msra.mxu0 0.0
    %2319 = vmatprep.subr.mxu0 0.0
    %2320 = vmatpush1.xpose.msra.mxu0 0.0
    %2321 = vmatprep.subr.mxu0 0.0
    %2322 = vmatpush1.xpose.msra.mxu0 0.0
    %2323 = vmatprep.subr.mxu0 0.0
    %2324 = vmatpush1.xpose.msra.mxu0 0.0
    %2325 = vmatprep.subr.mxu0 0.0
    %2326 = vmatpush1.xpose.msra.mxu0 0.0
    %2327 = vmatprep.subr.mxu0 0.0
    %2328 = vmatpush1.xpose.msra.mxu0 0.0
    %2329 = vmatprep.subr.mxu0 0.0
    %2330 = vmatpush1.xpose.msra.mxu0 0.0
    %2331 = vmatprep.subr.mxu0 0.0
    %2332 = vmatpush1.xpose.msra.mxu0 0.0
    %2333 = vmatprep.subr.mxu0 0.0
    %2334 = vmatpush1.xpose.msra.mxu0 0.0
    %2335 = vmatprep.subr.mxu0 0.0
    %2336 = vmatpush1.xpose.msra.mxu0 0.0
    %2337 = vmatprep.subr.mxu0 0.0
    %2338 = vmatpush1.xpose.msra.mxu0 0.0
    %2339 = vmatprep.subr.mxu0 0.0
    %2340 = vmatpush1.xpose.msra.mxu0 0.0
    %2341 = vmatprep.subr.mxu0 0.0
    %2342 = vmatpush1.xpose.msra.mxu0 0.0
    %2343 = vmatprep.subr.mxu0 0.0
    %2344 = vmatpush1.xpose.msra.mxu0 0.0
    %2345 = vmatprep.subr.mxu0 0.0
    %2346 = vmatpush1.xpose.msra.mxu0 0.0
    %2347 = vmatprep.mubr.f32.mxu0 0.0
    %2348 = vmatmul.mubr.f32.gmra.mrb[0].mxu0 %v2281
    %v2349 = vpop.f32.mrb[0].mxu0
    %v2350 = vadd.f32 0.0, %v2349
    %v2351 = vpop.f32.mrb[0].mxu0
    %2352 = vdwg.mxu0
    %2353 = vmatprep.subr.mxu0 0.0
    %2354 = vmatpush1.msra.mxu0 %v2350
    %2355 = vmatprep.subr.mxu0 0.0
    %2356 = vmatpush1.msra.mxu0 0.0
    %2357 = vmatprep.subr.mxu0 0.0
    %2358 = vmatpush1.msra.mxu0 0.0
    %2359 = vmatprep.subr.mxu0 0.0
    %2360 = vmatpush1.msra.mxu0 0.0
    %2361 = vmatprep.subr.mxu0 0.0
    %2362 = vmatpush1.msra.mxu0 0.0
    %2363 = vmatprep.subr.mxu0 0.0
    %2364 = vmatpush1.msra.mxu0 0.0
    %2365 = vmatprep.subr.mxu0 0.0
    %2366 = vmatpush1.msra.mxu0 0.0
    %2367 = vmatprep.subr.mxu0 0.0
    %2368 = vmatpush1.msra.mxu0 0.0
    %2369 = vmatprep.subr.mxu0 0.0
    %2370 = vmatpush1.msra.mxu0 0.0
    %2371 = vmatprep.subr.mxu0 0.0
    %2372 = vmatpush1.msra.mxu0 0.0
    %2373 = vmatprep.subr.mxu0 0.0
    %2374 = vmatpush1.msra.mxu0 0.0
    %2375 = vmatprep.subr.mxu0 0.0
    %2376 = vmatpush1.msra.mxu0 0.0
    %2377 = vmatprep.subr.mxu0 0.0
    %2378 = vmatpush1.msra.mxu0 0.0
    %2379 = vmatprep.subr.mxu0 0.0
    %2380 = vmatpush1.msra.mxu0 0.0
    %2381 = vmatprep.subr.mxu0 0.0
    %2382 = vmatpush1.msra.mxu0 0.0
    %2383 = vmatprep.subr.mxu0 0.0
    %2384 = vmatpush1.msra.mxu0 0.0
    %2385 = vmatprep.subr.mxu0 0.0
    %2386 = vmatpush1.msra.mxu0 0.0
    %2387 = vmatprep.subr.mxu0 0.0
    %2388 = vmatpush1.msra.mxu0 0.0
    %2389 = vmatprep.subr.mxu0 0.0
    %2390 = vmatpush1.msra.mxu0 0.0
    %2391 = vmatprep.subr.mxu0 0.0
    %2392 = vmatpush1.msra.mxu0 0.0
    %2393 = vmatprep.subr.mxu0 0.0
    %2394 = vmatpush1.msra.mxu0 0.0
    %2395 = vmatprep.subr.mxu0 0.0
    %2396 = vmatpush1.msra.mxu0 0.0
    %2397 = vmatprep.subr.mxu0 0.0
    %2398 = vmatpush1.msra.mxu0 0.0
    %2399 = vmatprep.subr.mxu0 0.0
    %2400 = vmatpush1.msra.mxu0 0.0
    %2401 = vmatprep.subr.mxu0 0.0
    %2402 = vmatpush1.msra.mxu0 0.0
    %2403 = vmatprep.subr.mxu0 0.0
    %2404 = vmatpush1.msra.mxu0 0.0
    %2405 = vmatprep.subr.mxu0 0.0
    %2406 = vmatpush1.msra.mxu0 0.0
    %2407 = vmatprep.subr.mxu0 0.0
    %2408 = vmatpush1.msra.mxu0 0.0
    %2409 = vmatprep.subr.mxu0 0.0
    %2410 = vmatpush1.msra.mxu0 0.0
    %2411 = vmatprep.subr.mxu0 0.0
    %2412 = vmatpush1.msra.mxu0 0.0
    %2413 = vmatprep.subr.mxu0 0.0
    %2414 = vmatpush1.msra.mxu0 0.0
    %2415 = vmatprep.subr.mxu0 0.0
    %2416 = vmatpush1.msra.mxu0 0.0
    %2417 = vmatprep.mubr.f32.mxu0 0.0
    %2418 = vmatmul.mubr.f32.gmra.mrb[0].mxu0 %v454
    %v2419 = vpop.f32.mrb[0].mxu0
    %v2420 = vadd.f32 0.0, %v2419
    %v2421 = vpop.f32.mrb[0].mxu0
    %2422 = vdwg.mxu0
    %2423 = vst.msk [vmem:[#allocation4] sm:$0xff] %vm376, %v2350
    %2425 = vrot.lane.b32.xlu0 %v2420, 9
    %v2426 = vpop.permute.xlu0 %2425
    %2428 = vst.msk [vmem:[#allocation4] sm:$0xff] %vm531, %v2426
    %v2429 = vld [vmem:[#allocation4] sm:$0xff]
    %v2430 = vsel %vm534, %v2429, 0.0
    %v2431 = vadd.f32 %v2430, 0.0
    %v2432 = vsel %vm537, %v2429, 0.0
    %2434 = vrot.lane.b32.xlu0 %v2432, 127
    %v2435 = vpop.permute.xlu0 %2434
    %v2437 = vadd.f32 %v2431, %v2435
    %v2438 = vsel %vm544, %v2429, 0.0
    %2440 = vrot.lane.b32.xlu0 %v2438, 126
    %v2441 = vpop.permute.xlu0 %2440
    %v2443 = vadd.f32 %v2437, %v2441
    %v2444 = vsel %vm551, %v2429, 0.0
    %2446 = vrot.lane.b32.xlu0 %v2444, 125
    %v2447 = vpop.permute.xlu0 %2446
    %v2449 = vadd.f32 %v2443, %v2447
    %v2450 = vsel %vm558, %v2429, 0.0
    %2452 = vrot.lane.b32.xlu0 %v2450, 124
    %v2453 = vpop.permute.xlu0 %2452
    %v2455 = vadd.f32 %v2449, %v2453
    %v2456 = vsel %vm565, %v2429, 0.0
    %2458 = vrot.lane.b32.xlu0 %v2456, 123
    %v2459 = vpop.permute.xlu0 %2458
    %v2461 = vadd.f32 %v2455, %v2459
    %v2462 = vsel %vm572, %v2429, 0.0
    %2464 = vrot.lane.b32.xlu0 %v2462, 122
    %v2465 = vpop.permute.xlu0 %2464
    %v2467 = vadd.f32 %v2461, %v2465
    %v2468 = vsel %vm579, %v2429, 0.0
    %2470 = vrot.lane.b32.xlu0 %v2468, 121
    %v2471 = vpop.permute.xlu0 %2470
    %v2473 = vadd.f32 %v2467, %v2471
    %2475 = vrot.lane.b32.xlu0 %v2276, 112
    %v2476 = vpop.permute.xlu0 %2475
    %2478 = vrot.lane.b32.xlu0 %v2275, 80
    %v2479 = vpop.permute.xlu0 %2478
    %v2480 = vsel %vm376, %v2476, 0
    %v2482 = vsel %vm376, %v2479, 0
    %2484 = vmatprep.subr.mxu0 0.0
    %2485 = vmatpush1.xpose.msra.mxu0 %v2482
    %2486 = vmatprep.subr.mxu0 0.0
    %2487 = vmatpush1.xpose.msra.mxu0 0.0
    %2488 = vmatprep.subr.mxu0 0.0
    %2489 = vmatpush1.xpose.msra.mxu0 0.0
    %2490 = vmatprep.subr.mxu0 0.0
    %2491 = vmatpush1.xpose.msra.mxu0 0.0
    %2492 = vmatprep.subr.mxu0 0.0
    %2493 = vmatpush1.xpose.msra.mxu0 0.0
    %2494 = vmatprep.subr.mxu0 0.0
    %2495 = vmatpush1.xpose.msra.mxu0 0.0
    %2496 = vmatprep.subr.mxu0 0.0
    %2497 = vmatpush1.xpose.msra.mxu0 0.0
    %2498 = vmatprep.subr.mxu0 0.0
    %2499 = vmatpush1.xpose.msra.mxu0 0.0
    %2500 = vmatprep.subr.mxu0 0.0
    %2501 = vmatpush1.xpose.msra.mxu0 0.0
    %2502 = vmatprep.subr.mxu0 0.0
    %2503 = vmatpush1.xpose.msra.mxu0 0.0
    %2504 = vmatprep.subr.mxu0 0.0
    %2505 = vmatpush1.xpose.msra.mxu0 0.0
    %2506 = vmatprep.subr.mxu0 0.0
    %2507 = vmatpush1.xpose.msra.mxu0 0.0
    %2508 = vmatprep.subr.mxu0 0.0
    %2509 = vmatpush1.xpose.msra.mxu0 0.0
    %2510 = vmatprep.subr.mxu0 0.0
    %2511 = vmatpush1.xpose.msra.mxu0 0.0
    %2512 = vmatprep.subr.mxu0 0.0
    %2513 = vmatpush1.xpose.msra.mxu0 0.0
    %2514 = vmatprep.subr.mxu0 0.0
    %2515 = vmatpush1.xpose.msra.mxu0 0.0
    %2516 = vmatprep.subr.mxu0 0.0
    %2517 = vmatpush1.xpose.msra.mxu0 0.0
    %2518 = vmatprep.subr.mxu0 0.0
    %2519 = vmatpush1.xpose.msra.mxu0 0.0
    %2520 = vmatprep.subr.mxu0 0.0
    %2521 = vmatpush1.xpose.msra.mxu0 0.0
    %2522 = vmatprep.subr.mxu0 0.0
    %2523 = vmatpush1.xpose.msra.mxu0 0.0
    %2524 = vmatprep.subr.mxu0 0.0
    %2525 = vmatpush1.xpose.msra.mxu0 0.0
    %2526 = vmatprep.subr.mxu0 0.0
    %2527 = vmatpush1.xpose.msra.mxu0 0.0
    %2528 = vmatprep.subr.mxu0 0.0
    %2529 = vmatpush1.xpose.msra.mxu0 0.0
    %2530 = vmatprep.subr.mxu0 0.0
    %2531 = vmatpush1.xpose.msra.mxu0 0.0
    %2532 = vmatprep.subr.mxu0 0.0
    %2533 = vmatpush1.xpose.msra.mxu0 0.0
    %2534 = vmatprep.subr.mxu0 0.0
    %2535 = vmatpush1.xpose.msra.mxu0 0.0
    %2536 = vmatprep.subr.mxu0 0.0
    %2537 = vmatpush1.xpose.msra.mxu0 0.0
    %2538 = vmatprep.subr.mxu0 0.0
    %2539 = vmatpush1.xpose.msra.mxu0 0.0
    %2540 = vmatprep.subr.mxu0 0.0
    %2541 = vmatpush1.xpose.msra.mxu0 0.0
    %2542 = vmatprep.subr.mxu0 0.0
    %2543 = vmatpush1.xpose.msra.mxu0 0.0
    %2544 = vmatprep.subr.mxu0 0.0
    %2545 = vmatpush1.xpose.msra.mxu0 0.0
    %2546 = vmatprep.subr.mxu0 0.0
    %2547 = vmatpush1.xpose.msra.mxu0 0.0
    %2548 = vmatprep.mubr.f32.mxu0 0.0
    %2549 = vmatmul.mubr.f32.gmra.mrb[0].mxu0 %v2480
    %v2550 = vpop.f32.mrb[0].mxu0
    %v2551 = vadd.f32 %v2473, %v2550
    %v2552 = vpop.f32.mrb[0].mxu0
    %2553 = vdwg.mxu0
    %v2554 = vmul.f32 %v2551, 0.17677669
    %v2555 = vsel %vm376, %v2554, -inf
    %2556 = vmax.xlane.f32.xlu0 %v2555
    %v2557 = vpop.xlane.xlu0 %2556
    %v2558 = vsub.f32 %v2554, %v2557
    %v2559 = vmul.f32 %v2558, 1.442695
    %v2560 = vpow.pop %v2559
    %v2561 = vsel %vm376, %v2560, 0.0
    %2562 = vadd.xlane.f32.xlu0 %v2561
    %v2563 = vpop.xlane.xlu0 %2562
    %v2564 = vrcp.pop %v2563
    %v2565 = vmul.f32 %v2560, %v2564
    %2566 = vrot.lane.b32.xlu0 %v2275, 48
    %v2567 = vpop.permute.xlu0 %2566
    %v2570 = vsel %vm376, %v2565, 0
    %2572 = vmatprep.subr.mxu0 0.0
    %2573 = vmatpush1.msra.mxu0 %v2567
    %2574 = vmatprep.subr.mxu0 0.0
    %2575 = vmatpush1.msra.mxu0 0.0
    %2576 = vmatprep.subr.mxu0 0.0
    %2577 = vmatpush1.msra.mxu0 0.0
    %2578 = vmatprep.subr.mxu0 0.0
    %2579 = vmatpush1.msra.mxu0 0.0
    %2580 = vmatprep.subr.mxu0 0.0
    %2581 = vmatpush1.msra.mxu0 0.0
    %2582 = vmatprep.subr.mxu0 0.0
    %2583 = vmatpush1.msra.mxu0 0.0
    %2584 = vmatprep.subr.mxu0 0.0
    %2585 = vmatpush1.msra.mxu0 0.0
    %2586 = vmatprep.subr.mxu0 0.0
    %2587 = vmatpush1.msra.mxu0 0.0
    %2588 = vmatprep.subr.mxu0 0.0
    %2589 = vmatpush1.msra.mxu0 0.0
    %2590 = vmatprep.subr.mxu0 0.0
    %2591 = vmatpush1.msra.mxu0 0.0
    %2592 = vmatprep.subr.mxu0 0.0
    %2593 = vmatpush1.msra.mxu0 0.0
    %2594 = vmatprep.subr.mxu0 0.0
    %2595 = vmatpush1.msra.mxu0 0.0
    %2596 = vmatprep.subr.mxu0 0.0
    %2597 = vmatpush1.msra.mxu0 0.0
    %2598 = vmatprep.subr.mxu0 0.0
    %2599 = vmatpush1.msra.mxu0 0.0
    %2600 = vmatprep.subr.mxu0 0.0
    %2601 = vmatpush1.msra.mxu0 0.0
    %2602 = vmatprep.subr.mxu0 0.0
    %2603 = vmatpush1.msra.mxu0 0.0
    %2604 = vmatprep.subr.mxu0 0.0
    %2605 = vmatpush1.msra.mxu0 0.0
    %2606 = vmatprep.subr.mxu0 0.0
    %2607 = vmatpush1.msra.mxu0 0.0
    %2608 = vmatprep.subr.mxu0 0.0
    %2609 = vmatpush1.msra.mxu0 0.0
    %2610 = vmatprep.subr.mxu0 0.0
    %2611 = vmatpush1.msra.mxu0 0.0
    %2612 = vmatprep.subr.mxu0 0.0
    %2613 = vmatpush1.msra.mxu0 0.0
    %2614 = vmatprep.subr.mxu0 0.0
    %2615 = vmatpush1.msra.mxu0 0.0
    %2616 = vmatprep.subr.mxu0 0.0
    %2617 = vmatpush1.msra.mxu0 0.0
    %2618 = vmatprep.subr.mxu0 0.0
    %2619 = vmatpush1.msra.mxu0 0.0
    %2620 = vmatprep.subr.mxu0 0.0
    %2621 = vmatpush1.msra.mxu0 0.0
    %2622 = vmatprep.subr.mxu0 0.0
    %2623 = vmatpush1.msra.mxu0 0.0
    %2624 = vmatprep.subr.mxu0 0.0
    %2625 = vmatpush1.msra.mxu0 0.0
    %2626 = vmatprep.subr.mxu0 0.0
    %2627 = vmatpush1.msra.mxu0 0.0
    %2628 = vmatprep.subr.mxu0 0.0
    %2629 = vmatpush1.msra.mxu0 0.0
    %2630 = vmatprep.subr.mxu0 0.0
    %2631 = vmatpush1.msra.mxu0 0.0
    %2632 = vmatprep.subr.mxu0 0.0
    %2633 = vmatpush1.msra.mxu0 0.0
    %2634 = vmatprep.subr.mxu0 0.0
    %2635 = vmatpush1.msra.mxu0 0.0
    %2636 = vmatprep.mubr.f32.mxu0 0.0
    %2637 = vmatmul.mubr.f32.gmra.mrb[0].mxu0 %v2570
    %v2638 = vpop.f32.mrb[0].mxu0
    %v2639 = vadd.f32 0.0, %v2638
    %v2640 = vpop.f32.mrb[0].mxu0
    %2641 = vdwg.mxu0
    %2643 = vrot.lane.b32.xlu0 %v2639, 16
    %v2644 = vpop.permute.xlu0 %2643
    %2646 = vst.msk [vmem:[#allocation5 + $0x8] sm:$0xff] %vm2273, %v2644
    %v2647 = vld [vmem:[#allocation15] sm:$0x1]
    %v2648 = vld [vmem:[#allocation17] sm:$0x1]
    %v2649 = vld [vmem:[#allocation3] sm:$0xff]
    %v2650 = vld [vmem:[#allocation2] sm:$0xff]
    %v2652 = vlaneseq
    %v2653 = vshrl.u32 %v2652, 7
    %v2654 = vsub.s32 0, %v2653
    %v2655 = vrot.slane %v2647, %v2654
    %v2657 = vadd.f32 %v2650, %v2655
    %v2659 = vlaneseq
    %v2660 = vshrl.u32 %v2659, 7
    %v2661 = vsub.s32 0, %v2660
    %v2662 = vrot.slane %v2648, %v2661
    %v2664 = vadd.f32 %v2650, %v2662
    %2666 = vrot.lane.b32.xlu0 %v2664, 104
    %v2667 = vpop.permute.xlu0 %2666
    %2669 = vrot.lane.b32.xlu0 %v2649, 104
    %v2670 = vpop.permute.xlu0 %2669
    %v2671 = vsel %vm376, %v2667, 0
    %v2673 = vsel %vm376, %v2670, 0
    %2675 = vmatprep.subr.mxu0 0.0
    %2676 = vmatpush1.xpose.msra.mxu0 %v2673
    %2677 = vmatprep.subr.mxu0 0.0
    %2678 = vmatpush1.xpose.msra.mxu0 0.0
    %2679 = vmatprep.subr.mxu0 0.0
    %2680 = vmatpush1.xpose.msra.mxu0 0.0
    %2681 = vmatprep.subr.mxu0 0.0
    %2682 = vmatpush1.xpose.msra.mxu0 0.0
    %2683 = vmatprep.subr.mxu0 0.0
    %2684 = vmatpush1.xpose.msra.mxu0 0.0
    %2685 = vmatprep.subr.mxu0 0.0
    %2686 = vmatpush1.xpose.msra.mxu0 0.0
    %2687 = vmatprep.subr.mxu0 0.0
    %2688 = vmatpush1.xpose.msra.mxu0 0.0
    %2689 = vmatprep.subr.mxu0 0.0
    %2690 = vmatpush1.xpose.msra.mxu0 0.0
    %2691 = vmatprep.subr.mxu0 0.0
    %2692 = vmatpush1.xpose.msra.mxu0 0.0
    %2693 = vmatprep.subr.mxu0 0.0
    %2694 = vmatpush1.xpose.msra.mxu0 0.0
    %2695 = vmatprep.subr.mxu0 0.0
    %2696 = vmatpush1.xpose.msra.mxu0 0.0
    %2697 = vmatprep.subr.mxu0 0.0
    %2698 = vmatpush1.xpose.msra.mxu0 0.0
    %2699 = vmatprep.subr.mxu0 0.0
    %2700 = vmatpush1.xpose.msra.mxu0 0.0
    %2701 = vmatprep.subr.mxu0 0.0
    %2702 = vmatpush1.xpose.msra.mxu0 0.0
    %2703 = vmatprep.subr.mxu0 0.0
    %2704 = vmatpush1.xpose.msra.mxu0 0.0
    %2705 = vmatprep.subr.mxu0 0.0
    %2706 = vmatpush1.xpose.msra.mxu0 0.0
    %2707 = vmatprep.subr.mxu0 0.0
    %2708 = vmatpush1.xpose.msra.mxu0 0.0
    %2709 = vmatprep.subr.mxu0 0.0
    %2710 = vmatpush1.xpose.msra.mxu0 0.0
    %2711 = vmatprep.subr.mxu0 0.0
    %2712 = vmatpush1.xpose.msra.mxu0 0.0
    %2713 = vmatprep.subr.mxu0 0.0
    %2714 = vmatpush1.xpose.msra.mxu0 0.0
    %2715 = vmatprep.subr.mxu0 0.0
    %2716 = vmatpush1.xpose.msra.mxu0 0.0
    %2717 = vmatprep.subr.mxu0 0.0
    %2718 = vmatpush1.xpose.msra.mxu0 0.0
    %2719 = vmatprep.subr.mxu0 0.0
    %2720 = vmatpush1.xpose.msra.mxu0 0.0
    %2721 = vmatprep.subr.mxu0 0.0
    %2722 = vmatpush1.xpose.msra.mxu0 0.0
    %2723 = vmatprep.subr.mxu0 0.0
    %2724 = vmatpush1.xpose.msra.mxu0 0.0
    %2725 = vmatprep.subr.mxu0 0.0
    %2726 = vmatpush1.xpose.msra.mxu0 0.0
    %2727 = vmatprep.subr.mxu0 0.0
    %2728 = vmatpush1.xpose.msra.mxu0 0.0
    %2729 = vmatprep.subr.mxu0 0.0
    %2730 = vmatpush1.xpose.msra.mxu0 0.0
    %2731 = vmatprep.subr.mxu0 0.0
    %2732 = vmatpush1.xpose.msra.mxu0 0.0
    %2733 = vmatprep.subr.mxu0 0.0
    %2734 = vmatpush1.xpose.msra.mxu0 0.0
    %2735 = vmatprep.subr.mxu0 0.0
    %2736 = vmatpush1.xpose.msra.mxu0 0.0
    %2737 = vmatprep.subr.mxu0 0.0
    %2738 = vmatpush1.xpose.msra.mxu0 0.0
    %2739 = vmatprep.mubr.f32.mxu0 0.0
    %2740 = vmatmul.mubr.f32.gmra.mrb[0].mxu0 %v2671
    %v2741 = vpop.f32.mrb[0].mxu0
    %v2742 = vadd.f32 0.0, %v2741
    %v2743 = vpop.f32.mrb[0].mxu0
    %2744 = vdwg.mxu0
    %2745 = vmatprep.subr.mxu0 0.0
    %2746 = vmatpush1.msra.mxu0 %v2742
    %2747 = vmatprep.subr.mxu0 0.0
    %2748 = vmatpush1.msra.mxu0 0.0
    %2749 = vmatprep.subr.mxu0 0.0
    %2750 = vmatpush1.msra.mxu0 0.0
    %2751 = vmatprep.subr.mxu0 0.0
    %2752 = vmatpush1.msra.mxu0 0.0
    %2753 = vmatprep.subr.mxu0 0.0
    %2754 = vmatpush1.msra.mxu0 0.0
    %2755 = vmatprep.subr.mxu0 0.0
    %2756 = vmatpush1.msra.mxu0 0.0
    %2757 = vmatprep.subr.mxu0 0.0
    %2758 = vmatpush1.msra.mxu0 0.0
    %2759 = vmatprep.subr.mxu0 0.0
    %2760 = vmatpush1.msra.mxu0 0.0
    %2761 = vmatprep.subr.mxu0 0.0
    %2762 = vmatpush1.msra.mxu0 0.0
    %2763 = vmatprep.subr.mxu0 0.0
    %2764 = vmatpush1.msra.mxu0 0.0
    %2765 = vmatprep.subr.mxu0 0.0
    %2766 = vmatpush1.msra.mxu0 0.0
    %2767 = vmatprep.subr.mxu0 0.0
    %2768 = vmatpush1.msra.mxu0 0.0
    %2769 = vmatprep.subr.mxu0 0.0
    %2770 = vmatpush1.msra.mxu0 0.0
    %2771 = vmatprep.subr.mxu0 0.0
    %2772 = vmatpush1.msra.mxu0 0.0
    %2773 = vmatprep.subr.mxu0 0.0
    %2774 = vmatpush1.msra.mxu0 0.0
    %2775 = vmatprep.subr.mxu0 0.0
    %2776 = vmatpush1.msra.mxu0 0.0
    %2777 = vmatprep.subr.mxu0 0.0
    %2778 = vmatpush1.msra.mxu0 0.0
    %2779 = vmatprep.subr.mxu0 0.0
    %2780 = vmatpush1.msra.mxu0 0.0
    %2781 = vmatprep.subr.mxu0 0.0
    %2782 = vmatpush1.msra.mxu0 0.0
    %2783 = vmatprep.subr.mxu0 0.0
    %2784 = vmatpush1.msra.mxu0 0.0
    %2785 = vmatprep.subr.mxu0 0.0
    %2786 = vmatpush1.msra.mxu0 0.0
    %2787 = vmatprep.subr.mxu0 0.0
    %2788 = vmatpush1.msra.mxu0 0.0
    %2789 = vmatprep.subr.mxu0 0.0
    %2790 = vmatpush1.msra.mxu0 0.0
    %2791 = vmatprep.subr.mxu0 0.0
    %2792 = vmatpush1.msra.mxu0 0.0
    %2793 = vmatprep.subr.mxu0 0.0
    %2794 = vmatpush1.msra.mxu0 0.0
    %2795 = vmatprep.subr.mxu0 0.0
    %2796 = vmatpush1.msra.mxu0 0.0
    %2797 = vmatprep.subr.mxu0 0.0
    %2798 = vmatpush1.msra.mxu0 0.0
    %2799 = vmatprep.subr.mxu0 0.0
    %2800 = vmatpush1.msra.mxu0 0.0
    %2801 = vmatprep.subr.mxu0 0.0
    %2802 = vmatpush1.msra.mxu0 0.0
    %2803 = vmatprep.subr.mxu0 0.0
    %2804 = vmatpush1.msra.mxu0 0.0
    %2805 = vmatprep.subr.mxu0 0.0
    %2806 = vmatpush1.msra.mxu0 0.0
    %2807 = vmatprep.subr.mxu0 0.0
    %2808 = vmatpush1.msra.mxu0 0.0
    %2809 = vmatprep.mubr.f32.mxu0 0.0
    %2810 = vmatmul.mubr.f32.gmra.mrb[0].mxu0 %v454
    %v2811 = vpop.f32.mrb[0].mxu0
    %v2812 = vadd.f32 0.0, %v2811
    %v2813 = vpop.f32.mrb[0].mxu0
    %2814 = vdwg.mxu0
    %2815 = vst.msk [vmem:[#allocation4] sm:$0xff] %vm376, %v2742
    %2817 = vrot.lane.b32.xlu0 %v2812, 9
    %v2818 = vpop.permute.xlu0 %2817
    %2820 = vst.msk [vmem:[#allocation4] sm:$0xff] %vm531, %v2818
    %v2821 = vld [vmem:[#allocation4] sm:$0xff]
    %v2822 = vsel %vm534, %v2821, 0.0
    %v2823 = vadd.f32 %v2822, 0.0
    %v2824 = vsel %vm537, %v2821, 0.0
    %2826 = vrot.lane.b32.xlu0 %v2824, 127
    %v2827 = vpop.permute.xlu0 %2826
    %v2829 = vadd.f32 %v2823, %v2827
    %v2830 = vsel %vm544, %v2821, 0.0
    %2832 = vrot.lane.b32.xlu0 %v2830, 126
    %v2833 = vpop.permute.xlu0 %2832
    %v2835 = vadd.f32 %v2829, %v2833
    %v2836 = vsel %vm551, %v2821, 0.0
    %2838 = vrot.lane.b32.xlu0 %v2836, 125
    %v2839 = vpop.permute.xlu0 %2838
    %v2841 = vadd.f32 %v2835, %v2839
    %v2842 = vsel %vm558, %v2821, 0.0
    %2844 = vrot.lane.b32.xlu0 %v2842, 124
    %v2845 = vpop.permute.xlu0 %2844
    %v2847 = vadd.f32 %v2841, %v2845
    %v2848 = vsel %vm565, %v2821, 0.0
    %2850 = vrot.lane.b32.xlu0 %v2848, 123
    %v2851 = vpop.permute.xlu0 %2850
    %v2853 = vadd.f32 %v2847, %v2851
    %v2854 = vsel %vm572, %v2821, 0.0
    %2856 = vrot.lane.b32.xlu0 %v2854, 122
    %v2857 = vpop.permute.xlu0 %2856
    %v2859 = vadd.f32 %v2853, %v2857
    %v2860 = vsel %vm579, %v2821, 0.0
    %2862 = vrot.lane.b32.xlu0 %v2860, 121
    %v2863 = vpop.permute.xlu0 %2862
    %v2865 = vadd.f32 %v2859, %v2863
    %2867 = vrot.lane.b32.xlu0 %v2657, 104
    %v2868 = vpop.permute.xlu0 %2867
    %2870 = vrot.lane.b32.xlu0 %v2650, 72
    %v2871 = vpop.permute.xlu0 %2870
    %v2872 = vsel %vm376, %v2868, 0
    %v2874 = vsel %vm376, %v2871, 0
    %2876 = vmatprep.subr.mxu0 0.0
    %2877 = vmatpush1.xpose.msra.mxu0 %v2874
    %2878 = vmatprep.subr.mxu0 0.0
    %2879 = vmatpush1.xpose.msra.mxu0 0.0
    %2880 = vmatprep.subr.mxu0 0.0
    %2881 = vmatpush1.xpose.msra.mxu0 0.0
    %2882 = vmatprep.subr.mxu0 0.0
    %2883 = vmatpush1.xpose.msra.mxu0 0.0
    %2884 = vmatprep.subr.mxu0 0.0
    %2885 = vmatpush1.xpose.msra.mxu0 0.0
    %2886 = vmatprep.subr.mxu0 0.0
    %2887 = vmatpush1.xpose.msra.mxu0 0.0
    %2888 = vmatprep.subr.mxu0 0.0
    %2889 = vmatpush1.xpose.msra.mxu0 0.0
    %2890 = vmatprep.subr.mxu0 0.0
    %2891 = vmatpush1.xpose.msra.mxu0 0.0
    %2892 = vmatprep.subr.mxu0 0.0
    %2893 = vmatpush1.xpose.msra.mxu0 0.0
    %2894 = vmatprep.subr.mxu0 0.0
    %2895 = vmatpush1.xpose.msra.mxu0 0.0
    %2896 = vmatprep.subr.mxu0 0.0
    %2897 = vmatpush1.xpose.msra.mxu0 0.0
    %2898 = vmatprep.subr.mxu0 0.0
    %2899 = vmatpush1.xpose.msra.mxu0 0.0
    %2900 = vmatprep.subr.mxu0 0.0
    %2901 = vmatpush1.xpose.msra.mxu0 0.0
    %2902 = vmatprep.subr.mxu0 0.0
    %2903 = vmatpush1.xpose.msra.mxu0 0.0
    %2904 = vmatprep.subr.mxu0 0.0
    %2905 = vmatpush1.xpose.msra.mxu0 0.0
    %2906 = vmatprep.subr.mxu0 0.0
    %2907 = vmatpush1.xpose.msra.mxu0 0.0
    %2908 = vmatprep.subr.mxu0 0.0
    %2909 = vmatpush1.xpose.msra.mxu0 0.0
    %2910 = vmatprep.subr.mxu0 0.0
    %2911 = vmatpush1.xpose.msra.mxu0 0.0
    %2912 = vmatprep.subr.mxu0 0.0
    %2913 = vmatpush1.xpose.msra.mxu0 0.0
    %2914 = vmatprep.subr.mxu0 0.0
    %2915 = vmatpush1.xpose.msra.mxu0 0.0
    %2916 = vmatprep.subr.mxu0 0.0
    %2917 = vmatpush1.xpose.msra.mxu0 0.0
    %2918 = vmatprep.subr.mxu0 0.0
    %2919 = vmatpush1.xpose.msra.mxu0 0.0
    %2920 = vmatprep.subr.mxu0 0.0
    %2921 = vmatpush1.xpose.msra.mxu0 0.0
    %2922 = vmatprep.subr.mxu0 0.0
    %2923 = vmatpush1.xpose.msra.mxu0 0.0
    %2924 = vmatprep.subr.mxu0 0.0
    %2925 = vmatpush1.xpose.msra.mxu0 0.0
    %2926 = vmatprep.subr.mxu0 0.0
    %2927 = vmatpush1.xpose.msra.mxu0 0.0
    %2928 = vmatprep.subr.mxu0 0.0
    %2929 = vmatpush1.xpose.msra.mxu0 0.0
    %2930 = vmatprep.subr.mxu0 0.0
    %2931 = vmatpush1.xpose.msra.mxu0 0.0
    %2932 = vmatprep.subr.mxu0 0.0
    %2933 = vmatpush1.xpose.msra.mxu0 0.0
    %2934 = vmatprep.subr.mxu0 0.0
    %2935 = vmatpush1.xpose.msra.mxu0 0.0
    %2936 = vmatprep.subr.mxu0 0.0
    %2937 = vmatpush1.xpose.msra.mxu0 0.0
    %2938 = vmatprep.subr.mxu0 0.0
    %2939 = vmatpush1.xpose.msra.mxu0 0.0
    %2940 = vmatprep.mubr.f32.mxu0 0.0
    %2941 = vmatmul.mubr.f32.gmra.mrb[0].mxu0 %v2872
    %v2942 = vpop.f32.mrb[0].mxu0
    %v2943 = vadd.f32 %v2865, %v2942
    %v2944 = vpop.f32.mrb[0].mxu0
    %2945 = vdwg.mxu0
    %v2946 = vmul.f32 %v2943, 0.17677669
    %v2947 = vsel %vm376, %v2946, -inf
    %2948 = vmax.xlane.f32.xlu0 %v2947
    %v2949 = vpop.xlane.xlu0 %2948
    %v2950 = vsub.f32 %v2946, %v2949
    %v2951 = vmul.f32 %v2950, 1.442695
    %v2952 = vpow.pop %v2951
    %v2953 = vsel %vm376, %v2952, 0.0
    %2954 = vadd.xlane.f32.xlu0 %v2953
    %v2955 = vpop.xlane.xlu0 %2954
    %v2956 = vrcp.pop %v2955
    %v2957 = vmul.f32 %v2952, %v2956
    %2958 = vrot.lane.b32.xlu0 %v2650, 40
    %v2959 = vpop.permute.xlu0 %2958
    %v2962 = vsel %vm376, %v2957, 0
    %2964 = vmatprep.subr.mxu0 0.0
    %2965 = vmatpush1.msra.mxu0 %v2959
    %2966 = vmatprep.subr.mxu0 0.0
    %2967 = vmatpush1.msra.mxu0 0.0
    %2968 = vmatprep.subr.mxu0 0.0
    %2969 = vmatpush1.msra.mxu0 0.0
    %2970 = vmatprep.subr.mxu0 0.0
    %2971 = vmatpush1.msra.mxu0 0.0
    %2972 = vmatprep.subr.mxu0 0.0
    %2973 = vmatpush1.msra.mxu0 0.0
    %2974 = vmatprep.subr.mxu0 0.0
    %2975 = vmatpush1.msra.mxu0 0.0
    %2976 = vmatprep.subr.mxu0 0.0
    %2977 = vmatpush1.msra.mxu0 0.0
    %2978 = vmatprep.subr.mxu0 0.0
    %2979 = vmatpush1.msra.mxu0 0.0
    %2980 = vmatprep.subr.mxu0 0.0
    %2981 = vmatpush1.msra.mxu0 0.0
    %2982 = vmatprep.subr.mxu0 0.0
    %2983 = vmatpush1.msra.mxu0 0.0
    %2984 = vmatprep.subr.mxu0 0.0
    %2985 = vmatpush1.msra.mxu0 0.0
    %2986 = vmatprep.subr.mxu0 0.0
    %2987 = vmatpush1.msra.mxu0 0.0
    %2988 = vmatprep.subr.mxu0 0.0
    %2989 = vmatpush1.msra.mxu0 0.0
    %2990 = vmatprep.subr.mxu0 0.0
    %2991 = vmatpush1.msra.mxu0 0.0
    %2992 = vmatprep.subr.mxu0 0.0
    %2993 = vmatpush1.msra.mxu0 0.0
    %2994 = vmatprep.subr.mxu0 0.0
    %2995 = vmatpush1.msra.mxu0 0.0
    %2996 = vmatprep.subr.mxu0 0.0
    %2997 = vmatpush1.msra.mxu0 0.0
    %2998 = vmatprep.subr.mxu0 0.0
    %2999 = vmatpush1.msra.mxu0 0.0
    %3000 = vmatprep.subr.mxu0 0.0
    %3001 = vmatpush1.msra.mxu0 0.0
    %3002 = vmatprep.subr.mxu0 0.0
    %3003 = vmatpush1.msra.mxu0 0.0
    %3004 = vmatprep.subr.mxu0 0.0
    %3005 = vmatpush1.msra.mxu0 0.0
    %3006 = vmatprep.subr.mxu0 0.0
    %3007 = vmatpush1.msra.mxu0 0.0
    %3008 = vmatprep.subr.mxu0 0.0
    %3009 = vmatpush1.msra.mxu0 0.0
    %3010 = vmatprep.subr.mxu0 0.0
    %3011 = vmatpush1.msra.mxu0 0.0
    %3012 = vmatprep.subr.mxu0 0.0
    %3013 = vmatpush1.msra.mxu0 0.0
    %3014 = vmatprep.subr.mxu0 0.0
    %3015 = vmatpush1.msra.mxu0 0.0
    %3016 = vmatprep.subr.mxu0 0.0
    %3017 = vmatpush1.msra.mxu0 0.0
    %3018 = vmatprep.subr.mxu0 0.0
    %3019 = vmatpush1.msra.mxu0 0.0
    %3020 = vmatprep.subr.mxu0 0.0
    %3021 = vmatpush1.msra.mxu0 0.0
    %3022 = vmatprep.subr.mxu0 0.0
    %3023 = vmatpush1.msra.mxu0 0.0
    %3024 = vmatprep.subr.mxu0 0.0
    %3025 = vmatpush1.msra.mxu0 0.0
    %3026 = vmatprep.subr.mxu0 0.0
    %3027 = vmatpush1.msra.mxu0 0.0
    %3028 = vmatprep.mubr.f32.mxu0 0.0
    %3029 = vmatmul.mubr.f32.gmra.mrb[0].mxu0 %v2962
    %v3030 = vpop.f32.mrb[0].mxu0
    %v3031 = vadd.f32 0.0, %v3030
    %v3032 = vpop.f32.mrb[0].mxu0
    %3033 = vdwg.mxu0
    %3035 = vrot.lane.b32.xlu0 %v3031, 24
    %v3036 = vpop.permute.xlu0 %3035
    %vm3038 = vcmask 261312
    %3039 = vst.msk [vmem:[#allocation5] sm:$0xff] %vm3038, %v3036
    %v3040 = vld [vmem:[#allocation2 + $0x8] sm:$0xff]
    %v3041 = vadd.f32 %v3040, %v2655
    %v3042 = vadd.f32 %v3040, %v2662
    %3044 = vrot.lane.b32.xlu0 %v3042, 104
    %v3045 = vpop.permute.xlu0 %3044
    %v3046 = vsel %vm376, %v3045, 0
    %3048 = vmatprep.subr.mxu0 0.0
    %3049 = vmatpush1.xpose.msra.mxu0 %v2673
    %3050 = vmatprep.subr.mxu0 0.0
    %3051 = vmatpush1.xpose.msra.mxu0 0.0
    %3052 = vmatprep.subr.mxu0 0.0
    %3053 = vmatpush1.xpose.msra.mxu0 0.0
    %3054 = vmatprep.subr.mxu0 0.0
    %3055 = vmatpush1.xpose.msra.mxu0 0.0
    %3056 = vmatprep.subr.mxu0 0.0
    %3057 = vmatpush1.xpose.msra.mxu0 0.0
    %3058 = vmatprep.subr.mxu0 0.0
    %3059 = vmatpush1.xpose.msra.mxu0 0.0
    %3060 = vmatprep.subr.mxu0 0.0
    %3061 = vmatpush1.xpose.msra.mxu0 0.0
    %3062 = vmatprep.subr.mxu0 0.0
    %3063 = vmatpush1.xpose.msra.mxu0 0.0
    %3064 = vmatprep.subr.mxu0 0.0
    %3065 = vmatpush1.xpose.msra.mxu0 0.0
    %3066 = vmatprep.subr.mxu0 0.0
    %3067 = vmatpush1.xpose.msra.mxu0 0.0
    %3068 = vmatprep.subr.mxu0 0.0
    %3069 = vmatpush1.xpose.msra.mxu0 0.0
    %3070 = vmatprep.subr.mxu0 0.0
    %3071 = vmatpush1.xpose.msra.mxu0 0.0
    %3072 = vmatprep.subr.mxu0 0.0
    %3073 = vmatpush1.xpose.msra.mxu0 0.0
    %3074 = vmatprep.subr.mxu0 0.0
    %3075 = vmatpush1.xpose.msra.mxu0 0.0
    %3076 = vmatprep.subr.mxu0 0.0
    %3077 = vmatpush1.xpose.msra.mxu0 0.0
    %3078 = vmatprep.subr.mxu0 0.0
    %3079 = vmatpush1.xpose.msra.mxu0 0.0
    %3080 = vmatprep.subr.mxu0 0.0
    %3081 = vmatpush1.xpose.msra.mxu0 0.0
    %3082 = vmatprep.subr.mxu0 0.0
    %3083 = vmatpush1.xpose.msra.mxu0 0.0
    %3084 = vmatprep.subr.mxu0 0.0
    %3085 = vmatpush1.xpose.msra.mxu0 0.0
    %3086 = vmatprep.subr.mxu0 0.0
    %3087 = vmatpush1.xpose.msra.mxu0 0.0
    %3088 = vmatprep.subr.mxu0 0.0
    %3089 = vmatpush1.xpose.msra.mxu0 0.0
    %3090 = vmatprep.subr.mxu0 0.0
    %3091 = vmatpush1.xpose.msra.mxu0 0.0
    %3092 = vmatprep.subr.mxu0 0.0
    %3093 = vmatpush1.xpose.msra.mxu0 0.0
    %3094 = vmatprep.subr.mxu0 0.0
    %3095 = vmatpush1.xpose.msra.mxu0 0.0
    %3096 = vmatprep.subr.mxu0 0.0
    %3097 = vmatpush1.xpose.msra.mxu0 0.0
    %3098 = vmatprep.subr.mxu0 0.0
    %3099 = vmatpush1.xpose.msra.mxu0 0.0
    %3100 = vmatprep.subr.mxu0 0.0
    %3101 = vmatpush1.xpose.msra.mxu0 0.0
    %3102 = vmatprep.subr.mxu0 0.0
    %3103 = vmatpush1.xpose.msra.mxu0 0.0
    %3104 = vmatprep.subr.mxu0 0.0
    %3105 = vmatpush1.xpose.msra.mxu0 0.0
    %3106 = vmatprep.subr.mxu0 0.0
    %3107 = vmatpush1.xpose.msra.mxu0 0.0
    %3108 = vmatprep.subr.mxu0 0.0
    %3109 = vmatpush1.xpose.msra.mxu0 0.0
    %3110 = vmatprep.subr.mxu0 0.0
    %3111 = vmatpush1.xpose.msra.mxu0 0.0
    %3112 = vmatprep.mubr.f32.mxu0 0.0
    %3113 = vmatmul.mubr.f32.gmra.mrb[0].mxu0 %v3046
    %v3114 = vpop.f32.mrb[0].mxu0
    %v3115 = vadd.f32 0.0, %v3114
    %v3116 = vpop.f32.mrb[0].mxu0
    %3117 = vdwg.mxu0
    %3118 = vmatprep.subr.mxu0 0.0
    %3119 = vmatpush1.msra.mxu0 %v3115
    %3120 = vmatprep.subr.mxu0 0.0
    %3121 = vmatpush1.msra.mxu0 0.0
    %3122 = vmatprep.subr.mxu0 0.0
    %3123 = vmatpush1.msra.mxu0 0.0
    %3124 = vmatprep.subr.mxu0 0.0
    %3125 = vmatpush1.msra.mxu0 0.0
    %3126 = vmatprep.subr.mxu0 0.0
    %3127 = vmatpush1.msra.mxu0 0.0
    %3128 = vmatprep.subr.mxu0 0.0
    %3129 = vmatpush1.msra.mxu0 0.0
    %3130 = vmatprep.subr.mxu0 0.0
    %3131 = vmatpush1.msra.mxu0 0.0
    %3132 = vmatprep.subr.mxu0 0.0
    %3133 = vmatpush1.msra.mxu0 0.0
    %3134 = vmatprep.subr.mxu0 0.0
    %3135 = vmatpush1.msra.mxu0 0.0
    %3136 = vmatprep.subr.mxu0 0.0
    %3137 = vmatpush1.msra.mxu0 0.0
    %3138 = vmatprep.subr.mxu0 0.0
    %3139 = vmatpush1.msra.mxu0 0.0
    %3140 = vmatprep.subr.mxu0 0.0
    %3141 = vmatpush1.msra.mxu0 0.0
    %3142 = vmatprep.subr.mxu0 0.0
    %3143 = vmatpush1.msra.mxu0 0.0
    %3144 = vmatprep.subr.mxu0 0.0
    %3145 = vmatpush1.msra.mxu0 0.0
    %3146 = vmatprep.subr.mxu0 0.0
    %3147 = vmatpush1.msra.mxu0 0.0
    %3148 = vmatprep.subr.mxu0 0.0
    %3149 = vmatpush1.msra.mxu0 0.0
    %3150 = vmatprep.subr.mxu0 0.0
    %3151 = vmatpush1.msra.mxu0 0.0
    %3152 = vmatprep.subr.mxu0 0.0
    %3153 = vmatpush1.msra.mxu0 0.0
    %3154 = vmatprep.subr.mxu0 0.0
    %3155 = vmatpush1.msra.mxu0 0.0
    %3156 = vmatprep.subr.mxu0 0.0
    %3157 = vmatpush1.msra.mxu0 0.0
    %3158 = vmatprep.subr.mxu0 0.0
    %3159 = vmatpush1.msra.mxu0 0.0
    %3160 = vmatprep.subr.mxu0 0.0
    %3161 = vmatpush1.msra.mxu0 0.0
    %3162 = vmatprep.subr.mxu0 0.0
    %3163 = vmatpush1.msra.mxu0 0.0
    %3164 = vmatprep.subr.mxu0 0.0
    %3165 = vmatpush1.msra.mxu0 0.0
    %3166 = vmatprep.subr.mxu0 0.0
    %3167 = vmatpush1.msra.mxu0 0.0
    %3168 = vmatprep.subr.mxu0 0.0
    %3169 = vmatpush1.msra.mxu0 0.0
    %3170 = vmatprep.subr.mxu0 0.0
    %3171 = vmatpush1.msra.mxu0 0.0
    %3172 = vmatprep.subr.mxu0 0.0
    %3173 = vmatpush1.msra.mxu0 0.0
    %3174 = vmatprep.subr.mxu0 0.0
    %3175 = vmatpush1.msra.mxu0 0.0
    %3176 = vmatprep.subr.mxu0 0.0
    %3177 = vmatpush1.msra.mxu0 0.0
    %3178 = vmatprep.subr.mxu0 0.0
    %3179 = vmatpush1.msra.mxu0 0.0
    %3180 = vmatprep.subr.mxu0 0.0
    %3181 = vmatpush1.msra.mxu0 0.0
    %3182 = vmatprep.mubr.f32.mxu0 0.0
    %3183 = vmatmul.mubr.f32.gmra.mrb[0].mxu0 %v454
    %v3184 = vpop.f32.mrb[0].mxu0
    %v3185 = vadd.f32 0.0, %v3184
    %v3186 = vpop.f32.mrb[0].mxu0
    %3187 = vdwg.mxu0
    %3188 = vst.msk [vmem:[#allocation4] sm:$0xff] %vm376, %v3115
    %3190 = vrot.lane.b32.xlu0 %v3185, 9
    %v3191 = vpop.permute.xlu0 %3190
    %3193 = vst.msk [vmem:[#allocation4] sm:$0xff] %vm531, %v3191
    %v3194 = vld [vmem:[#allocation4] sm:$0xff]
    %v3195 = vsel %vm534, %v3194, 0.0
    %v3196 = vadd.f32 %v3195, 0.0
    %v3197 = vsel %vm537, %v3194, 0.0
    %3199 = vrot.lane.b32.xlu0 %v3197, 127
    %v3200 = vpop.permute.xlu0 %3199
    %v3202 = vadd.f32 %v3196, %v3200
    %v3203 = vsel %vm544, %v3194, 0.0
    %3205 = vrot.lane.b32.xlu0 %v3203, 126
    %v3206 = vpop.permute.xlu0 %3205
    %v3208 = vadd.f32 %v3202, %v3206
    %v3209 = vsel %vm551, %v3194, 0.0
    %3211 = vrot.lane.b32.xlu0 %v3209, 125
    %v3212 = vpop.permute.xlu0 %3211
    %v3214 = vadd.f32 %v3208, %v3212
    %v3215 = vsel %vm558, %v3194, 0.0
    %3217 = vrot.lane.b32.xlu0 %v3215, 124
    %v3218 = vpop.permute.xlu0 %3217
    %v3220 = vadd.f32 %v3214, %v3218
    %v3221 = vsel %vm565, %v3194, 0.0
    %3223 = vrot.lane.b32.xlu0 %v3221, 123
    %v3224 = vpop.permute.xlu0 %3223
    %v3226 = vadd.f32 %v3220, %v3224
    %v3227 = vsel %vm572, %v3194, 0.0
    %3229 = vrot.lane.b32.xlu0 %v3227, 122
    %v3230 = vpop.permute.xlu0 %3229
    %v3232 = vadd.f32 %v3226, %v3230
    %v3233 = vsel %vm579, %v3194, 0.0
    %3235 = vrot.lane.b32.xlu0 %v3233, 121
    %v3236 = vpop.permute.xlu0 %3235
    %v3238 = vadd.f32 %v3232, %v3236
    %3240 = vrot.lane.b32.xlu0 %v3041, 104
    %v3241 = vpop.permute.xlu0 %3240
    %3243 = vrot.lane.b32.xlu0 %v3040, 72
    %v3244 = vpop.permute.xlu0 %3243
    %v3245 = vsel %vm376, %v3241, 0
    %v3247 = vsel %vm376, %v3244, 0
    %3249 = vmatprep.subr.mxu0 0.0
    %3250 = vmatpush1.xpose.msra.mxu0 %v3247
    %3251 = vmatprep.subr.mxu0 0.0
    %3252 = vmatpush1.xpose.msra.mxu0 0.0
    %3253 = vmatprep.subr.mxu0 0.0
    %3254 = vmatpush1.xpose.msra.mxu0 0.0
    %3255 = vmatprep.subr.mxu0 0.0
    %3256 = vmatpush1.xpose.msra.mxu0 0.0
    %3257 = vmatprep.subr.mxu0 0.0
    %3258 = vmatpush1.xpose.msra.mxu0 0.0
    %3259 = vmatprep.subr.mxu0 0.0
    %3260 = vmatpush1.xpose.msra.mxu0 0.0
    %3261 = vmatprep.subr.mxu0 0.0
    %3262 = vmatpush1.xpose.msra.mxu0 0.0
    %3263 = vmatprep.subr.mxu0 0.0
    %3264 = vmatpush1.xpose.msra.mxu0 0.0
    %3265 = vmatprep.subr.mxu0 0.0
    %3266 = vmatpush1.xpose.msra.mxu0 0.0
    %3267 = vmatprep.subr.mxu0 0.0
    %3268 = vmatpush1.xpose.msra.mxu0 0.0
    %3269 = vmatprep.subr.mxu0 0.0
    %3270 = vmatpush1.xpose.msra.mxu0 0.0
    %3271 = vmatprep.subr.mxu0 0.0
    %3272 = vmatpush1.xpose.msra.mxu0 0.0
    %3273 = vmatprep.subr.mxu0 0.0
    %3274 = vmatpush1.xpose.msra.mxu0 0.0
    %3275 = vmatprep.subr.mxu0 0.0
    %3276 = vmatpush1.xpose.msra.mxu0 0.0
    %3277 = vmatprep.subr.mxu0 0.0
    %3278 = vmatpush1.xpose.msra.mxu0 0.0
    %3279 = vmatprep.subr.mxu0 0.0
    %3280 = vmatpush1.xpose.msra.mxu0 0.0
    %3281 = vmatprep.subr.mxu0 0.0
    %3282 = vmatpush1.xpose.msra.mxu0 0.0
    %3283 = vmatprep.subr.mxu0 0.0
    %3284 = vmatpush1.xpose.msra.mxu0 0.0
    %3285 = vmatprep.subr.mxu0 0.0
    %3286 = vmatpush1.xpose.msra.mxu0 0.0
    %3287 = vmatprep.subr.mxu0 0.0
    %3288 = vmatpush1.xpose.msra.mxu0 0.0
    %3289 = vmatprep.subr.mxu0 0.0
    %3290 = vmatpush1.xpose.msra.mxu0 0.0
    %3291 = vmatprep.subr.mxu0 0.0
    %3292 = vmatpush1.xpose.msra.mxu0 0.0
    %3293 = vmatprep.subr.mxu0 0.0
    %3294 = vmatpush1.xpose.msra.mxu0 0.0
    %3295 = vmatprep.subr.mxu0 0.0
    %3296 = vmatpush1.xpose.msra.mxu0 0.0
    %3297 = vmatprep.subr.mxu0 0.0
    %3298 = vmatpush1.xpose.msra.mxu0 0.0
    %3299 = vmatprep.subr.mxu0 0.0
    %3300 = vmatpush1.xpose.msra.mxu0 0.0
    %3301 = vmatprep.subr.mxu0 0.0
    %3302 = vmatpush1.xpose.msra.mxu0 0.0
    %3303 = vmatprep.subr.mxu0 0.0
    %3304 = vmatpush1.xpose.msra.mxu0 0.0
    %3305 = vmatprep.subr.mxu0 0.0
    %3306 = vmatpush1.xpose.msra.mxu0 0.0
    %3307 = vmatprep.subr.mxu0 0.0
    %3308 = vmatpush1.xpose.msra.mxu0 0.0
    %3309 = vmatprep.subr.mxu0 0.0
    %3310 = vmatpush1.xpose.msra.mxu0 0.0
    %3311 = vmatprep.subr.mxu0 0.0
    %3312 = vmatpush1.xpose.msra.mxu0 0.0
    %3313 = vmatprep.mubr.f32.mxu0 0.0
    %3314 = vmatmul.mubr.f32.gmra.mrb[0].mxu0 %v3245
    %v3315 = vpop.f32.mrb[0].mxu0
    %v3316 = vadd.f32 %v3238, %v3315
    %v3317 = vpop.f32.mrb[0].mxu0
    %3318 = vdwg.mxu0
    %v3319 = vmul.f32 %v3316, 0.17677669
    %v3320 = vsel %vm376, %v3319, -inf
    %3321 = vmax.xlane.f32.xlu0 %v3320
    %v3322 = vpop.xlane.xlu0 %3321
    %v3323 = vsub.f32 %v3319, %v3322
    %v3324 = vmul.f32 %v3323, 1.442695
    %v3325 = vpow.pop %v3324
    %v3326 = vsel %vm376, %v3325, 0.0
    %3327 = vadd.xlane.f32.xlu0 %v3326
    %v3328 = vpop.xlane.xlu0 %3327
    %v3329 = vrcp.pop %v3328
    %v3330 = vmul.f32 %v3325, %v3329
    %3331 = vrot.lane.b32.xlu0 %v3040, 40
    %v3332 = vpop.permute.xlu0 %3331
    %v3335 = vsel %vm376, %v3330, 0
    %3337 = vmatprep.subr.mxu0 0.0
    %3338 = vmatpush1.msra.mxu0 %v3332
    %3339 = vmatprep.subr.mxu0 0.0
    %3340 = vmatpush1.msra.mxu0 0.0
    %3341 = vmatprep.subr.mxu0 0.0
    %3342 = vmatpush1.msra.mxu0 0.0
    %3343 = vmatprep.subr.mxu0 0.0
    %3344 = vmatpush1.msra.mxu0 0.0
    %3345 = vmatprep.subr.mxu0 0.0
    %3346 = vmatpush1.msra.mxu0 0.0
    %3347 = vmatprep.subr.mxu0 0.0
    %3348 = vmatpush1.msra.mxu0 0.0
    %3349 = vmatprep.subr.mxu0 0.0
    %3350 = vmatpush1.msra.mxu0 0.0
    %3351 = vmatprep.subr.mxu0 0.0
    %3352 = vmatpush1.msra.mxu0 0.0
    %3353 = vmatprep.subr.mxu0 0.0
    %3354 = vmatpush1.msra.mxu0 0.0
    %3355 = vmatprep.subr.mxu0 0.0
    %3356 = vmatpush1.msra.mxu0 0.0
    %3357 = vmatprep.subr.mxu0 0.0
    %3358 = vmatpush1.msra.mxu0 0.0
    %3359 = vmatprep.subr.mxu0 0.0
    %3360 = vmatpush1.msra.mxu0 0.0
    %3361 = vmatprep.subr.mxu0 0.0
    %3362 = vmatpush1.msra.mxu0 0.0
    %3363 = vmatprep.subr.mxu0 0.0
    %3364 = vmatpush1.msra.mxu0 0.0
    %3365 = vmatprep.subr.mxu0 0.0
    %3366 = vmatpush1.msra.mxu0 0.0
    %3367 = vmatprep.subr.mxu0 0.0
    %3368 = vmatpush1.msra.mxu0 0.0
    %3369 = vmatprep.subr.mxu0 0.0
    %3370 = vmatpush1.msra.mxu0 0.0
    %3371 = vmatprep.subr.mxu0 0.0
    %3372 = vmatpush1.msra.mxu0 0.0
    %3373 = vmatprep.subr.mxu0 0.0
    %3374 = vmatpush1.msra.mxu0 0.0
    %3375 = vmatprep.subr.mxu0 0.0
    %3376 = vmatpush1.msra.mxu0 0.0
    %3377 = vmatprep.subr.mxu0 0.0
    %3378 = vmatpush1.msra.mxu0 0.0
    %3379 = vmatprep.subr.mxu0 0.0
    %3380 = vmatpush1.msra.mxu0 0.0
    %3381 = vmatprep.subr.mxu0 0.0
    %3382 = vmatpush1.msra.mxu0 0.0
    %3383 = vmatprep.subr.mxu0 0.0
    %3384 = vmatpush1.msra.mxu0 0.0
    %3385 = vmatprep.subr.mxu0 0.0
    %3386 = vmatpush1.msra.mxu0 0.0
    %3387 = vmatprep.subr.mxu0 0.0
    %3388 = vmatpush1.msra.mxu0 0.0
    %3389 = vmatprep.subr.mxu0 0.0
    %3390 = vmatpush1.msra.mxu0 0.0
    %3391 = vmatprep.subr.mxu0 0.0
    %3392 = vmatpush1.msra.mxu0 0.0
    %3393 = vmatprep.subr.mxu0 0.0
    %3394 = vmatpush1.msra.mxu0 0.0
    %3395 = vmatprep.subr.mxu0 0.0
    %3396 = vmatpush1.msra.mxu0 0.0
    %3397 = vmatprep.subr.mxu0 0.0
    %3398 = vmatpush1.msra.mxu0 0.0
    %3399 = vmatprep.subr.mxu0 0.0
    %3400 = vmatpush1.msra.mxu0 0.0
    %3401 = vmatprep.mubr.f32.mxu0 0.0
    %3402 = vmatmul.mubr.f32.gmra.mrb[0].mxu0 %v3335
    %v3403 = vpop.f32.mrb[0].mxu0
    %v3404 = vadd.f32 0.0, %v3403
    %v3405 = vpop.f32.mrb[0].mxu0
    %3406 = vdwg.mxu0
    %3408 = vrot.lane.b32.xlu0 %v3404, 24
    %v3409 = vpop.permute.xlu0 %3408
    %3411 = vst.msk [vmem:[#allocation5 + $0x8] sm:$0xff] %vm3038, %v3409
    %v3412 = vld [vmem:[#allocation5] sm:$0xff]
    %v3413 = vld [vmem:[#allocation5 + $0x8] sm:$0xff]
    %v3414 = vld [vmem:[%s9] sm:$0xff]
    %v3415 = vld [vmem:[%s9 + $0x8] sm:$0xff]
    %v3416 = vld [vmem:[%s9 + $0x10] sm:$0xff]
    %v3417 = vld [vmem:[%s9 + $0x18] sm:$0xff]
    %v3418 = vld [vmem:[%s10] sm:$0x1]
    %v3420 = vlaneseq
    %v3421 = vshrl.u32 %v3420, 7
    %v3422 = vsub.s32 0, %v3421
    %v3423 = vrot.slane %v3418, %v3422
    %v3426 = vsel %vm128, %v3412, 0
    %v3429 = vsel %vm128, %v3413, 0
    %3431 = vmatprep.subr.mxu0 0.0
    %3432 = vmatpush1.msra.mxu0 %v3414
    %3433 = vmatprep.subr.mxu0 0.0
    %3434 = vmatpush1.msra.mxu0 %v3415
    %3435 = vmatprep.subr.mxu0 0.0
    %3436 = vmatpush1.msra.mxu0 %v3416
    %3437 = vmatprep.subr.mxu0 0.0
    %3438 = vmatpush1.msra.mxu0 %v3417
    %3439 = vmatprep.subr.mxu0 0.0
    %3440 = vmatpush1.msra.mxu0 0.0
    %3441 = vmatprep.subr.mxu0 0.0
    %3442 = vmatpush1.msra.mxu0 0.0
    %3443 = vmatprep.subr.mxu0 0.0
    %3444 = vmatpush1.msra.mxu0 0.0
    %3445 = vmatprep.subr.mxu0 0.0
    %3446 = vmatpush1.msra.mxu0 0.0
    %3447 = vmatprep.subr.mxu0 0.0
    %3448 = vmatpush1.msra.mxu0 0.0
    %3449 = vmatprep.subr.mxu0 0.0
    %3450 = vmatpush1.msra.mxu0 0.0
    %3451 = vmatprep.subr.mxu0 0.0
    %3452 = vmatpush1.msra.mxu0 0.0
    %3453 = vmatprep.subr.mxu0 0.0
    %3454 = vmatpush1.msra.mxu0 0.0
    %3455 = vmatprep.subr.mxu0 0.0
    %3456 = vmatpush1.msra.mxu0 0.0
    %3457 = vmatprep.subr.mxu0 0.0
    %3458 = vmatpush1.msra.mxu0 0.0
    %3459 = vmatprep.subr.mxu0 0.0
    %3460 = vmatpush1.msra.mxu0 0.0
    %3461 = vmatprep.subr.mxu0 0.0
    %3462 = vmatpush1.msra.mxu0 0.0
    %3463 = vmatprep.subr.mxu0 0.0
    %3464 = vmatpush1.msra.mxu0 0.0
    %3465 = vmatprep.subr.mxu0 0.0
    %3466 = vmatpush1.msra.mxu0 0.0
    %3467 = vmatprep.subr.mxu0 0.0
    %3468 = vmatpush1.msra.mxu0 0.0
    %3469 = vmatprep.subr.mxu0 0.0
    %3470 = vmatpush1.msra.mxu0 0.0
    %3471 = vmatprep.subr.mxu0 0.0
    %3472 = vmatpush1.msra.mxu0 0.0
    %3473 = vmatprep.subr.mxu0 0.0
    %3474 = vmatpush1.msra.mxu0 0.0
    %3475 = vmatprep.subr.mxu0 0.0
    %3476 = vmatpush1.msra.mxu0 0.0
    %3477 = vmatprep.subr.mxu0 0.0
    %3478 = vmatpush1.msra.mxu0 0.0
    %3479 = vmatprep.subr.mxu0 0.0
    %3480 = vmatpush1.msra.mxu0 0.0
    %3481 = vmatprep.subr.mxu0 0.0
    %3482 = vmatpush1.msra.mxu0 0.0
    %3483 = vmatprep.subr.mxu0 0.0
    %3484 = vmatpush1.msra.mxu0 0.0
    %3485 = vmatprep.subr.mxu0 0.0
    %3486 = vmatpush1.msra.mxu0 0.0
    %3487 = vmatprep.subr.mxu0 0.0
    %3488 = vmatpush1.msra.mxu0 0.0
    %3489 = vmatprep.subr.mxu0 0.0
    %3490 = vmatpush1.msra.mxu0 0.0
    %3491 = vmatprep.subr.mxu0 0.0
    %3492 = vmatpush1.msra.mxu0 0.0
    %3493 = vmatprep.subr.mxu0 0.0
    %3494 = vmatpush1.msra.mxu0 0.0
    %3495 = vmatprep.mubr.f32.mxu0 0.0
    %3496 = vmatmul.mubr.f32.gmra.mrb[0].mxu0 %v3426
    %v3497 = vpop.f32.mrb[0].mxu0
    %v3498 = vadd.f32 %v3423, %v3497
    %v3499 = vpop.f32.mrb[0].mxu0
    %3500 = vmatprep.mubr.f32.mxu0 0.0
    %3501 = vmatmul.mubr.f32.gmra.mrb[0].mxu0 %v3429
    %v3502 = vpop.f32.mrb[0].mxu0
    %v3503 = vadd.f32 %v3423, %v3502
    %v3504 = vpop.f32.mrb[0].mxu0
    %3505 = vdwg.mxu0
    %3506 = vst.msk [vmem:[#allocation18] sm:$0xff] %vm128, %v3498
    %3507 = vst.msk [vmem:[#allocation18 + $0x8] sm:$0xff] %vm128, %v3503
    // Predicated region
    $region74: #{tpu_custom_call.1} parent=1 // pred_check
      _
    $region75: #{tpu_custom_call.1} parent=1 // pred_check_branch
      %3509 = sbr.rel (0) target = $region77
    $region76: #{tpu_custom_call.1} parent=1 // pred_region
      %s3511 = ssub.s32 256, 256
      %3512 = vsyncadd [#allocation8], %s3511
      %s3513 = sshll.u32 [#allocation18], 4
      %s3514 = int_to_ptr.vmem [resolvable:$true] %s3513
      %3519 = dma.vmem_to_hbm [thread:$0]  %s3514, 256, %s11, [#allocation8], 128, 128, 8
    $region77: #{tpu_custom_call.1} parent=1 // pred_fallthru
      _
    // Predicated region
    $region78: #{tpu_custom_call.1} parent=1 // pred_check
      _
    $region79: #{tpu_custom_call.1} parent=1 // pred_check_branch
      %3521 = sbr.rel (0) target = $region81
    $region80: #{tpu_custom_call.1} parent=1 // pred_region
      %3522 = dma.done [#allocation8], 256
    $region81: #{tpu_custom_call.1} parent=1 // pred_fallthru
      _
    %3523 = vsyncpa [#allocation7], 1
    %3524 = vsyncpa [#allocation10], 1
    %3525 = vsyncpa [#allocation13], 1
    %3526 = vsyncpa [#allocation16], 1
    %3527 = vsyncpa [#allocation8], 1

</llo_original>
